<compile_context>
chip_gen: v5e
topology: v5e:2x2
jax: 0.10.0
libtpu: 0.0.40
codegen_flags: <defaults>
</compile_context>

<pallas_src>
import functools

import jax
import jax.numpy as jnp
from jax.experimental import pallas as pl
from jax.experimental.pallas import tpu as pltpu

# Original module hard-codes PATCH_SIZE = 64; scaled to 16 for a small runnable
# example (all formulas are written in terms of PATCH_SIZE, so semantics and
# the tiled-kernel structure are identical at P=64).
PATCH_SIZE = 16

_VMEM_LIMIT = 48 * 1024 * 1024  # fits every generation (v7x: 64 MiB physical)


def _round_up(x, m):
    return (x + m - 1) // m * m


def _pick_tile(dim, base, cap):
    return min(_round_up(dim, base), cap)


# ---------------------------------------------------------------------------
# Tiled matmul + bias (+ReLU) kernel:  out = act(A @ B + bias)
# ---------------------------------------------------------------------------
def _mm_bias_kernel(a_ref, b_ref, bias_ref, o_ref, acc_ref, *, relu):
    @pl.when(pl.program_id(2) == 0)
    def _():
        acc_ref[...] = jnp.zeros_like(acc_ref)

    acc_ref[...] += jnp.dot(a_ref[...], b_ref[...],
                            preferred_element_type=jnp.float32)

    @pl.when(pl.program_id(2) == pl.num_programs(2) - 1)
    def _():
        acc = acc_ref[...] + bias_ref[...]
        if relu:
            acc = jnp.maximum(acc, 0.0)
        o_ref[...] = acc.astype(o_ref.dtype)


def matmul_bias(a, b, bias, *, relu=False):
    """a:(M,Ka) any float, b:(Kb,N) bf16 (possibly K-pre-padded, Kb>=Ka), bias:(N,)."""
    M, Ka = a.shape
    Kb, N = b.shape
    tm = _pick_tile(M, 8, 256)
    tn = _pick_tile(N, 128, 256)
    tk = _pick_tile(Kb, 128, 512)
    Mp, Np, Kp = _round_up(M, tm), _round_up(N, tn), _round_up(Kb, tk)

    a_p = a.astype(jnp.bfloat16)
    if (Mp, Kp) != (M, Ka):
        a_p = jnp.pad(a_p, ((0, Mp - M), (0, Kp - Ka)))
    b_p = b.astype(jnp.bfloat16)
    if (Kp, Np) != (Kb, N):
        b_p = jnp.pad(b_p, ((0, Kp - Kb), (0, Np - N)))
    bias_p = bias.astype(jnp.float32)
    if Np != N:
        bias_p = jnp.pad(bias_p, ((0, Np - N),))
    bias_p = bias_p.reshape(1, Np)

    out = pl.pallas_call(
        functools.partial(_mm_bias_kernel, relu=relu),
        out_shape=jax.ShapeDtypeStruct((Mp, Np), jnp.float32),
        grid_spec=pltpu.PrefetchScalarGridSpec(
            num_scalar_prefetch=0,
            grid=(Mp // tm, Np // tn, Kp // tk),
            in_specs=[
                pl.BlockSpec((tm, tk), lambda i, j, k: (i, k)),
                pl.BlockSpec((tk, tn), lambda i, j, k: (k, j)),
                pl.BlockSpec((1, tn), lambda i, j, k: (0, j)),
            ],
            out_specs=pl.BlockSpec((tm, tn), lambda i, j, k: (i, j)),
            scratch_shapes=[pltpu.VMEM((tm, tn), jnp.float32)],
        ),
        compiler_params=pltpu.CompilerParams(
            dimension_semantics=("parallel", "parallel", "arbitrary"),
            vmem_limit_bytes=_VMEM_LIMIT,
        ),
    )(a_p, b_p, bias_p)
    if (Mp, Np) != (M, N):
        out = out[:M, :N]
    return out


# ---------------------------------------------------------------------------
# Fused encode head: [mu | logvar] = h @ W_cat + b_cat ;  z = mu + eps*exp(.5*lv)
# ---------------------------------------------------------------------------
def _encode_head_kernel(h_ref, w_ref, bias_ref, eps_ref,
                        mu_ref, lv_ref, z_ref, acc_ref, *, lanes):
    @pl.when(pl.program_id(0) == 0)
    def _():
        acc_ref[...] = jnp.zeros_like(acc_ref)

    acc_ref[...] += jnp.dot(h_ref[...], w_ref[...],
                            preferred_element_type=jnp.float32)

    @pl.when(pl.program_id(0) == pl.num_programs(0) - 1)
    def _():
        acc = acc_ref[...] + bias_ref[...]
        mu = acc[:, :lanes]
        lv = acc[:, lanes:]
        mu_ref[...] = mu
        lv_ref[...] = lv
        z_ref[...] = mu + eps_ref[...] * jnp.exp(0.5 * lv)


def encode_head(h, w_cat, b_cat, eps):
    """h:(B,K), w_cat:(K, 2*LP) bf16, b_cat:(2*LP,), eps:(B,L) -> mu, logvar, z."""
    B, K = h.shape
    Np = w_cat.shape[1]
    LP = Np // 2
    L = eps.shape[1]
    Bp = _round_up(B, 8)
    tk = _pick_tile(K, 128, 512)
    Kp = _round_up(K, tk)

    h_p = h.astype(jnp.bfloat16)
    if (Bp, Kp) != (B, K):
        h_p = jnp.pad(h_p, ((0, Bp - B), (0, Kp - K)))
    w_p = w_cat if Kp == K else jnp.pad(w_cat, ((0, Kp - K), (0, 0)))
    eps_p = jnp.pad(eps.astype(jnp.float32), ((0, Bp - B), (0, LP - L)))
    bias_2d = b_cat.astype(jnp.float32).reshape(1, Np)

    mu, lv, z = pl.pallas_call(
        functools.partial(_encode_head_kernel, lanes=LP),
        out_shape=(jax.ShapeDtypeStruct((Bp, LP), jnp.float32),) * 3,
        grid_spec=pltpu.PrefetchScalarGridSpec(
            num_scalar_prefetch=0,
            grid=(Kp // tk,),
            in_specs=[
                pl.BlockSpec((Bp, tk), lambda k: (0, k)),
                pl.BlockSpec((tk, Np), lambda k: (k, 0)),
                pl.BlockSpec((1, Np), lambda k: (0, 0)),
                pl.BlockSpec((Bp, LP), lambda k: (0, 0)),
            ],
            out_specs=[
                pl.BlockSpec((Bp, LP), lambda k: (0, 0)),
                pl.BlockSpec((Bp, LP), lambda k: (0, 0)),
                pl.BlockSpec((Bp, LP), lambda k: (0, 0)),
            ],
            scratch_shapes=[pltpu.VMEM((Bp, Np), jnp.float32)],
        ),
        compiler_params=pltpu.CompilerParams(
            dimension_semantics=("arbitrary",),
            vmem_limit_bytes=_VMEM_LIMIT,
        ),
    )(h_p, w_p, bias_2d, eps_p)
    return mu[:B, :L], lv[:B, :L], z[:B, :L]


# ---------------------------------------------------------------------------
# Conv / ConvTranspose via im2col + Pallas matmul
# ---------------------------------------------------------------------------
def _im2col(x, k, stride, pad):
    """x: (B,C,H,W) -> patches (B*Ho*Wo, C*k*k), feature order (C, kh, kw)."""
    B, C, H, W = x.shape
    xp = jnp.pad(x, ((0, 0), (0, 0), (pad, pad), (pad, pad)))
    Ho = (H + 2 * pad - k) // stride + 1
    Wo = (W + 2 * pad - k) // stride + 1
    cols = []
    for i in range(k):
        for j in range(k):
            cols.append(xp[:, :, i:i + stride * Ho:stride, j:j + stride * Wo:stride])
    patches = jnp.stack(cols, axis=2)                       # (B, C, k*k, Ho, Wo)
    patches = patches.transpose(0, 3, 4, 1, 2).reshape(B * Ho * Wo, C * k * k)
    return patches, Ho, Wo


def conv2d(x, wmat, bias, *, k, stride, pad, relu):
    """PyTorch-semantics Conv2d.  wmat: (Cin*k*k[, K-padded], Cout) bf16."""
    B = x.shape[0]
    Cout = wmat.shape[1]
    patches, Ho, Wo = _im2col(x.astype(jnp.bfloat16), k, stride, pad)
    out = matmul_bias(patches, wmat, bias, relu=relu)       # (B*Ho*Wo, Cout)
    return out.reshape(B, Ho, Wo, Cout).transpose(0, 3, 1, 2)


def conv_transpose2d(x, wmat4, bias4, *, relu):
    """PyTorch ConvTranspose2d(k=4, stride=2, padding=1) via 4-phase sub-pixel
    decomposition: one matmul (N = 4*Cout) on 2x2 windows of the un-dilated
    input, then depth-to-space interleave.  wmat4: (Cin*4, 4*Cout) bf16."""
    B, Cin, H, W = x.shape
    Cout = wmat4.shape[1] // 4
    xp = jnp.pad(x.astype(jnp.bfloat16), ((0, 0), (0, 0), (1, 1), (1, 1)))
    patches, Hw, Ww = _im2col(xp, 2, 1, 0)                  # Hw=H+1, Ww=W+1
    out = matmul_bias(patches, wmat4, bias4, relu=relu)     # (B*Hw*Ww, 4*Cout)
    out = out.reshape(B, Hw, Ww, 4, Cout)
    rows = []
    for ph in range(2):
        cols = []
        for pw in range(2):
            idx = 2 * ph + pw
            cols.append(out[:, ph:ph + H, pw:pw + W, idx, :])   # (B,H,W,Cout)
        rows.append(jnp.stack(cols, axis=3))                    # (B,H,W,2,Cout)
    y = jnp.stack(rows, axis=2)                                 # (B,H,2,W,2,Cout)
    y = y.reshape(B, 2 * H, 2 * W, Cout).transpose(0, 3, 1, 2)  # NCHW
    return y


# ---------------------------------------------------------------------------
# Parameters (PyTorch layout) + one-time device-layout preparation
# ---------------------------------------------------------------------------
def init_params(key, num_geo, num_classes, latent_dim):
    P = PATCH_SIZE
    hidden = 128 * (P // 4) * (P // 4)
    cin = num_geo + num_classes
    dec_in = latent_dim + num_geo * P * P
    keys = jax.random.split(key, 14)

    def uni(k, shape, fan_in):
        bound = 1.0 / jnp.sqrt(jnp.float32(fan_in))
        return jax.random.uniform(k, shape, jnp.float32, -bound, bound)

    return {
        "enc1_w": uni(keys[0], (64, cin, 4, 4), cin * 16),
        "enc1_b": uni(keys[1], (64,), cin * 16),
        "enc2_w": uni(keys[2], (128, 64, 4, 4), 64 * 16),
        "enc2_b": uni(keys[3], (128,), 64 * 16),
        "fc_mu_w": uni(keys[4], (latent_dim, hidden), hidden),     # (out, in)
        "fc_mu_b": uni(keys[5], (latent_dim,), hidden),
        "fc_lv_w": uni(keys[6], (latent_dim, hidden), hidden),
        "fc_lv_b": uni(keys[7], (latent_dim,), hidden),
        "dec_fc_w": uni(keys[8], (hidden, dec_in), dec_in),        # (out, in)
        "dec_fc_b": uni(keys[9], (hidden,), dec_in),
        "dec1_w": uni(keys[10], (128, 64, 4, 4), 64 * 16),         # ConvT(128->64)
        "dec1_b": uni(keys[11], (64,), 64 * 16),
        "dec2_w": uni(keys[12], (64, num_classes, 4, 4), num_classes * 16),
        "dec2_b": uni(keys[13], (num_classes,), num_classes * 16),
    }


def prepare_params(params, latent_dim):
    """Transpose / reshape / cast / K-pad all weights ONCE (not per call)."""
    bf16, f32 = jnp.bfloat16, jnp.float32
    LP = _round_up(latent_dim, 128)

    def conv_mat(w):                       # (Cout,Cin,k,k) -> (K-padded, Cout) bf16
        Cout = w.shape[0]
        m = w.reshape(Cout, -1).T
        Kp = _round_up(m.shape[0], 128)
        if Kp != m.shape[0]:
            m = jnp.pad(m, ((0, Kp - m.shape[0]), (0, 0)))
        return m.astype(bf16)

    def convT_mat(w):                      # (Cin,Cout,4,4) -> (Cin*4, 4*Cout) bf16
        Cin, Cout = w.shape[0], w.shape[1]
        w_conv = jnp.transpose(w, (1, 0, 2, 3))[:, :, ::-1, ::-1]   # flipped
        mats = [w_conv[:, :, ph::2, pw::2].reshape(Cout, Cin * 4).T
                for ph in range(2) for pw in range(2)]
        return jnp.concatenate(mats, axis=1).astype(bf16)

    def pad_n(v, n):
        return jnp.pad(v.astype(f32), ((0, n - v.shape[0]),))

    fc_cat_w = jnp.concatenate([
        jnp.pad(params["fc_mu_w"].T, ((0, 0), (0, LP - latent_dim))),
        jnp.pad(params["fc_lv_w"].T, ((0, 0), (0, LP - latent_dim))),
    ], axis=1).astype(bf16)                                         # (hidden, 2*LP)
    fc_cat_b = jnp.concatenate([pad_n(params["fc_mu_b"], LP),
                                pad_n(params["fc_lv_b"], LP)])

    dec_fc_wT = params["dec_fc_w"].T                                # (dec_in, hidden)
    dec_in_p = _round_up(dec_fc_wT.shape[0], 512)
    if dec_in_p != dec_fc_wT.shape[0]:
        dec_fc_wT = jnp.pad(dec_fc_wT, ((0, dec_in_p - dec_fc_wT.shape[0]), (0, 0)))
    dec_fc_wT = dec_fc_wT.astype(bf16)

    return {
        "enc1_w": conv_mat(params["enc1_w"]), "enc1_b": params["enc1_b"].astype(f32),
        "enc2_w": conv_mat(params["enc2_w"]), "enc2_b": params["enc2_b"].astype(f32),
        "fc_cat_w": fc_cat_w, "fc_cat_b": fc_cat_b,
        "dec_fc_w": dec_fc_wT, "dec_fc_b": params["dec_fc_b"].astype(f32),
        "dec1_w": convT_mat(params["dec1_w"]),
        "dec1_b": jnp.tile(params["dec1_b"].astype(f32), 4),
        "dec2_w": convT_mat(params["dec2_w"]),
        "dec2_b": jnp.tile(params["dec2_b"].astype(f32), 4),
    }


# ---------------------------------------------------------------------------
# CVAE forward
# ---------------------------------------------------------------------------
def cvae_forward(prep, x, c, eps):
    B = x.shape[0]
    P = x.shape[-1]

    # ---- encode ----
    h = jnp.concatenate([x, c], axis=1)                             # (B, geo+cls, P, P)
    h = conv2d(h, prep["enc1_w"], prep["enc1_b"], k=4, stride=2, pad=1, relu=True)
    h = conv2d(h, prep["enc2_w"], prep["enc2_b"], k=4, stride=2, pad=1, relu=True)
    h = h.reshape(B, -1)                                            # flatten(1), NCHW order

    # ---- fc_mu + fc_logvar + reparameterize (fused) ----
    mu, logvar, z = encode_head(h, prep["fc_cat_w"], prep["fc_cat_b"], eps)

    # ---- decode ----
    geo_flat = x.reshape(B, -1)
    hd = jnp.concatenate([z, geo_flat], axis=1)
    hd = matmul_bias(hd, prep["dec_fc_w"], prep["dec_fc_b"], relu=False)
    hd = hd.reshape(B, 128, P // 4, P // 4)
    hd = conv_transpose2d(hd, prep["dec1_w"], prep["dec1_b"], relu=True)
    out = conv_transpose2d(hd, prep["dec2_w"], prep["dec2_b"], relu=False)
    return out, mu, logvar


if __name__ == "__main__":
    B, num_geo, num_classes, latent_dim = 2, 2, 3, 8
    P = PATCH_SIZE

    key = jax.random.PRNGKey(0)
    k_params, k_x, k_c, k_eps = jax.random.split(key, 4)

    params = init_params(k_params, num_geo, num_classes, latent_dim)
    prep = prepare_params(params, latent_dim)

    x = jax.random.normal(k_x, (B, num_geo, P, P), jnp.float32)        # NCHW
    c = jax.random.normal(k_c, (B, num_classes, P, P), jnp.float32)    # NCHW
    eps = jax.random.normal(k_eps, (B, latent_dim), jnp.float32)       # torch.randn_like(std)

    fwd = jax.jit(functools.partial(cvae_forward, prep))
    recon, mu, logvar = fwd(x, c, eps)
    jax.block_until_ready((recon, mu, logvar))

    assert recon.shape == (B, num_classes, P, P), recon.shape
    assert mu.shape == (B, latent_dim) and logvar.shape == (B, latent_dim)
    assert recon.dtype == jnp.float32
    print("KERNEL_OK")
</pallas_src>

<mosaic_0001>
module attributes {stable_mosaic.version = 11 : i64} {
  func.func @_mm_bias_kernel(%arg0: i32, %arg1: i32, %arg2: i32, %arg3: memref<128x128xbf16, #tpu.memory_space<vmem>>, %arg4: memref<128x128xbf16, #tpu.memory_space<vmem>>, %arg5: memref<1x128xf32, #tpu.memory_space<vmem>>, %arg6: memref<128x128xf32, #tpu.memory_space<vmem>>, %arg7: memref<128x128xf32, #tpu.memory_space<vmem>>) attributes {dimension_semantics = [#tpu.dimension_semantics<parallel>, #tpu.dimension_semantics<parallel>, #tpu.dimension_semantics<arbitrary>], iteration_bounds = array<i64: 1, 1, 1>, scalar_prefetch = 0 : i64, scratch_operands = 1 : i64, tpu.core_type = #tpu.core_type<tc>, window_params = [{transform_indices = @transform_0, window_bounds = array<i64: 128, 128>}, {transform_indices = @transform_1, window_bounds = array<i64: 128, 128>}, {transform_indices = @transform_2, window_bounds = array<i64: 1, 128>}, {transform_indices = @transform_3, window_bounds = array<i64: 128, 128>}]} {
    %c0_i32 = arith.constant 0 : i32
    %0 = arith.cmpi eq, %arg2, %c0_i32 : i32
    %1 = arith.extui %0 : i1 to i32
    %c0_i32_0 = arith.constant 0 : i32
    %2 = arith.cmpi ne, %1, %c0_i32_0 : i32
    scf.if %2 {
      %cst_10 = arith.constant 0.000000e+00 : f32
      %12 = vector.broadcast %cst_10 : f32 to vector<128x128xf32>
      %c0_11 = arith.constant 0 : index
      %c0_12 = arith.constant 0 : index
      %13 = vector.load %arg7[%c0_11, %c0_12] : memref<128x128xf32, #tpu.memory_space<vmem>>, vector<128x128xf32>
      tpu.vector_store %arg7[%c0_11, %c0_12], %12 {strides = array<i32>} : memref<128x128xf32, #tpu.memory_space<vmem>>, vector<128x128xf32>,
    } else {
    }
    %c0 = arith.constant 0 : index
    %c0_1 = arith.constant 0 : index
    %3 = vector.load %arg7[%c0, %c0_1] : memref<128x128xf32, #tpu.memory_space<vmem>>, vector<128x128xf32>
    %c0_2 = arith.constant 0 : index
    %c0_3 = arith.constant 0 : index
    %4 = vector.load %arg3[%c0_2, %c0_3] : memref<128x128xbf16, #tpu.memory_space<vmem>>, vector<128x128xbf16>
    %c0_4 = arith.constant 0 : index
    %c0_5 = arith.constant 0 : index
    %5 = vector.load %arg4[%c0_4, %c0_5] : memref<128x128xbf16, #tpu.memory_space<vmem>>, vector<128x128xbf16>
    %cst = arith.constant dense<0.000000e+00> : vector<128x128xf32>
    %6 = tpu.matmul %4, %5, %cst {dimension_numbers = #tpu.dot_dimension_numbers<[1], [0], [0], [1], [0, 0, 1, 1], [], []>} : vector<128x128xbf16>, vector<128x128xbf16>, vector<128x128xf32> -> vector<128x128xf32>
    %7 = arith.addf %3, %6 : vector<128x128xf32>
    %c0_6 = arith.constant 0 : index
    %c0_7 = arith.constant 0 : index
    %8 = vector.load %arg7[%c0_6, %c0_7] : memref<128x128xf32, #tpu.memory_space<vmem>>, vector<128x128xf32>
    tpu.vector_store %arg7[%c0_6, %c0_7], %7 {strides = array<i32>} : memref<128x128xf32, #tpu.memory_space<vmem>>, vector<128x128xf32>,
    %c0_i32_8 = arith.constant 0 : i32
    %9 = arith.cmpi eq, %arg2, %c0_i32_8 : i32
    %10 = arith.extui %9 : i1 to i32
    %c0_i32_9 = arith.constant 0 : i32
    %11 = arith.cmpi ne, %10, %c0_i32_9 : i32
    scf.if %11 {
      %c0_10 = arith.constant 0 : index
      %c0_11 = arith.constant 0 : index
      %12 = vector.load %arg7[%c0_10, %c0_11] : memref<128x128xf32, #tpu.memory_space<vmem>>, vector<128x128xf32>
      %c0_12 = arith.constant 0 : index
      %c0_13 = arith.constant 0 : index
      %13 = vector.load %arg5[%c0_12, %c0_13] : memref<1x128xf32, #tpu.memory_space<vmem>>, vector<1x128xf32>
      %14 = vector.broadcast %13 : vector<1x128xf32> to vector<128x128xf32>
      %15 = arith.addf %12, %14 : vector<128x128xf32>
      %cst_14 = arith.constant 0.000000e+00 : f32
      %16 = vector.broadcast %cst_14 : f32 to vector<128x128xf32>
      %17 = arith.maximumf %15, %16 : vector<128x128xf32>
      %c0_15 = arith.constant 0 : index
      %c0_16 = arith.constant 0 : index
      %18 = vector.load %arg6[%c0_15, %c0_16] : memref<128x128xf32, #tpu.memory_space<vmem>>, vector<128x128xf32>
      tpu.vector_store %arg6[%c0_15, %c0_16], %17 {strides = array<i32>} : memref<128x128xf32, #tpu.memory_space<vmem>>, vector<128x128xf32>,
    } else {
    }
    return
  }
  func.func @transform_0(%arg0: i32, %arg1: i32, %arg2: i32) -> (i32, i32) {
    %c0_i32 = arith.constant 0 : i32
    return %arg0, %arg2 : i32, i32
  }
  func.func @transform_1(%arg0: i32, %arg1: i32, %arg2: i32) -> (i32, i32) {
    %c0_i32 = arith.constant 0 : i32
    return %arg2, %arg1 : i32, i32
  }
  func.func @transform_2(%arg0: i32, %arg1: i32, %arg2: i32) -> (i32, i32) {
    %c0_i32 = arith.constant 0 : i32
    %c0_i32_0 = arith.constant 0 : i32
    return %c0_i32, %arg1 : i32, i32
  }
  func.func @transform_3(%arg0: i32, %arg1: i32, %arg2: i32) -> (i32, i32) {
    %c0_i32 = arith.constant 0 : i32
    return %arg0, %arg1 : i32, i32
  }
}

module attributes {stable_mosaic.version = 11 : i64} {
  func.func @_mm_bias_kernel(%arg0: i32, %arg1: i32, %arg2: i32, %arg3: memref<32x512xbf16, #tpu.memory_space<vmem>>, %arg4: memref<512x128xbf16, #tpu.memory_space<vmem>>, %arg5: memref<1x128xf32, #tpu.memory_space<vmem>>, %arg6: memref<32x128xf32, #tpu.memory_space<vmem>>, %arg7: memref<32x128xf32, #tpu.memory_space<vmem>>) attributes {dimension_semantics = [#tpu.dimension_semantics<parallel>, #tpu.dimension_semantics<parallel>, #tpu.dimension_semantics<arbitrary>], iteration_bounds = array<i64: 1, 1, 2>, scalar_prefetch = 0 : i64, scratch_operands = 1 : i64, tpu.core_type = #tpu.core_type<tc>, window_params = [{transform_indices = @transform_0, window_bounds = array<i64: 32, 512>}, {transform_indices = @transform_1, window_bounds = array<i64: 512, 128>}, {transform_indices = @transform_2, window_bounds = array<i64: 1, 128>}, {transform_indices = @transform_3, window_bounds = array<i64: 32, 128>}]} {
    %c0_i32 = arith.constant 0 : i32
    %0 = arith.cmpi eq, %arg2, %c0_i32 : i32
    %1 = arith.extui %0 : i1 to i32
    %c0_i32_0 = arith.constant 0 : i32
    %2 = arith.cmpi ne, %1, %c0_i32_0 : i32
    scf.if %2 {
      %cst_9 = arith.constant 0.000000e+00 : f32
      %12 = vector.broadcast %cst_9 : f32 to vector<32x128xf32>
      %c0_10 = arith.constant 0 : index
      %c0_11 = arith.constant 0 : index
      %13 = vector.load %arg7[%c0_10, %c0_11] : memref<32x128xf32, #tpu.memory_space<vmem>>, vector<32x128xf32>
      tpu.vector_store %arg7[%c0_10, %c0_11], %12 {strides = array<i32>} : memref<32x128xf32, #tpu.memory_space<vmem>>, vector<32x128xf32>,
    } else {
    }
    %c0 = arith.constant 0 : index
    %c0_1 = arith.constant 0 : index
    %3 = vector.load %arg7[%c0, %c0_1] : memref<32x128xf32, #tpu.memory_space<vmem>>, vector<32x128xf32>
    %c0_2 = arith.constant 0 : index
    %c0_3 = arith.constant 0 : index
    %4 = vector.load %arg3[%c0_2, %c0_3] : memref<32x512xbf16, #tpu.memory_space<vmem>>, vector<32x512xbf16>
    %c0_4 = arith.constant 0 : index
    %c0_5 = arith.constant 0 : index
    %5 = vector.load %arg4[%c0_4, %c0_5] : memref<512x128xbf16, #tpu.memory_space<vmem>>, vector<512x128xbf16>
    %cst = arith.constant dense<0.000000e+00> : vector<32x128xf32>
    %6 = tpu.matmul %4, %5, %cst {dimension_numbers = #tpu.dot_dimension_numbers<[1], [0], [0], [1], [0, 0, 1, 1], [], []>} : vector<32x512xbf16>, vector<512x128xbf16>, vector<32x128xf32> -> vector<32x128xf32>
    %7 = arith.addf %3, %6 : vector<32x128xf32>
    %c0_6 = arith.constant 0 : index
    %c0_7 = arith.constant 0 : index
    %8 = vector.load %arg7[%c0_6, %c0_7] : memref<32x128xf32, #tpu.memory_space<vmem>>, vector<32x128xf32>
    tpu.vector_store %arg7[%c0_6, %c0_7], %7 {strides = array<i32>} : memref<32x128xf32, #tpu.memory_space<vmem>>, vector<32x128xf32>,
    %c1_i32 = arith.constant 1 : i32
    %9 = arith.cmpi eq, %arg2, %c1_i32 : i32
    %10 = arith.extui %9 : i1 to i32
    %c0_i32_8 = arith.constant 0 : i32
    %11 = arith.cmpi ne, %10, %c0_i32_8 : i32
    scf.if %11 {
      %c0_9 = arith.constant 0 : index
      %c0_10 = arith.constant 0 : index
      %12 = vector.load %arg7[%c0_9, %c0_10] : memref<32x128xf32, #tpu.memory_space<vmem>>, vector<32x128xf32>
      %c0_11 = arith.constant 0 : index
      %c0_12 = arith.constant 0 : index
      %13 = vector.load %arg5[%c0_11, %c0_12] : memref<1x128xf32, #tpu.memory_space<vmem>>, vector<1x128xf32>
      %14 = vector.broadcast %13 : vector<1x128xf32> to vector<32x128xf32>
      %15 = arith.addf %12, %14 : vector<32x128xf32>
      %cst_13 = arith.constant 0.000000e+00 : f32
      %16 = vector.broadcast %cst_13 : f32 to vector<32x128xf32>
      %17 = arith.maximumf %15, %16 : vector<32x128xf32>
      %c0_14 = arith.constant 0 : index
      %c0_15 = arith.constant 0 : index
      %18 = vector.load %arg6[%c0_14, %c0_15] : memref<32x128xf32, #tpu.memory_space<vmem>>, vector<32x128xf32>
      tpu.vector_store %arg6[%c0_14, %c0_15], %17 {strides = array<i32>} : memref<32x128xf32, #tpu.memory_space<vmem>>, vector<32x128xf32>,
    } else {
    }
    return
  }
  func.func @transform_0(%arg0: i32, %arg1: i32, %arg2: i32) -> (i32, i32) {
    %c0_i32 = arith.constant 0 : i32
    return %arg0, %arg2 : i32, i32
  }
  func.func @transform_1(%arg0: i32, %arg1: i32, %arg2: i32) -> (i32, i32) {
    %c0_i32 = arith.constant 0 : i32
    return %arg2, %arg1 : i32, i32
  }
  func.func @transform_2(%arg0: i32, %arg1: i32, %arg2: i32) -> (i32, i32) {
    %c0_i32 = arith.constant 0 : i32
    %c0_i32_0 = arith.constant 0 : i32
    return %c0_i32, %arg1 : i32, i32
  }
  func.func @transform_3(%arg0: i32, %arg1: i32, %arg2: i32) -> (i32, i32) {
    %c0_i32 = arith.constant 0 : i32
    return %arg0, %arg1 : i32, i32
  }
}

module attributes {stable_mosaic.version = 11 : i64} {
  func.func @_encode_head_kernel(%arg0: i32, %arg1: memref<8x512xbf16, #tpu.memory_space<vmem>>, %arg2: memref<512x256xbf16, #tpu.memory_space<vmem>>, %arg3: memref<1x256xf32, #tpu.memory_space<vmem>>, %arg4: memref<8x128xf32, #tpu.memory_space<vmem>>, %arg5: memref<8x128xf32, #tpu.memory_space<vmem>>, %arg6: memref<8x128xf32, #tpu.memory_space<vmem>>, %arg7: memref<8x128xf32, #tpu.memory_space<vmem>>, %arg8: memref<8x256xf32, #tpu.memory_space<vmem>>) attributes {dimension_semantics = [#tpu.dimension_semantics<arbitrary>], iteration_bounds = array<i64: 4>, scalar_prefetch = 0 : i64, scratch_operands = 1 : i64, tpu.core_type = #tpu.core_type<tc>, window_params = [{transform_indices = @transform_0, window_bounds = array<i64: 8, 512>}, {transform_indices = @transform_1, window_bounds = array<i64: 512, 256>}, {pipeline_mode = #tpu.pipeline_mode<synchronous>, transform_indices = @transform_2, window_bounds = array<i64: 1, 256>}, {pipeline_mode = #tpu.pipeline_mode<synchronous>, transform_indices = @transform_3, window_bounds = array<i64: 8, 128>}, {pipeline_mode = #tpu.pipeline_mode<synchronous>, transform_indices = @transform_4, window_bounds = array<i64: 8, 128>}, {pipeline_mode = #tpu.pipeline_mode<synchronous>, transform_indices = @transform_5, window_bounds = array<i64: 8, 128>}, {pipeline_mode = #tpu.pipeline_mode<synchronous>, transform_indices = @transform_6, window_bounds = array<i64: 8, 128>}]} {
    %c0_i32 = arith.constant 0 : i32
    %0 = arith.cmpi eq, %arg0, %c0_i32 : i32
    %1 = arith.extui %0 : i1 to i32
    %c0_i32_0 = arith.constant 0 : i32
    %2 = arith.cmpi ne, %1, %c0_i32_0 : i32
    scf.if %2 {
      %cst_9 = arith.constant 0.000000e+00 : f32
      %12 = vector.broadcast %cst_9 : f32 to vector<8x256xf32>
      %c0_10 = arith.constant 0 : index
      %c0_11 = arith.constant 0 : index
      %13 = vector.load %arg8[%c0_10, %c0_11] : memref<8x256xf32, #tpu.memory_space<vmem>>, vector<8x256xf32>
      tpu.vector_store %arg8[%c0_10, %c0_11], %12 {strides = array<i32>} : memref<8x256xf32, #tpu.memory_space<vmem>>, vector<8x256xf32>,
    } else {
    }
    %c0 = arith.constant 0 : index
    %c0_1 = arith.constant 0 : index
    %3 = vector.load %arg8[%c0, %c0_1] : memref<8x256xf32, #tpu.memory_space<vmem>>, vector<8x256xf32>
    %c0_2 = arith.constant 0 : index
    %c0_3 = arith.constant 0 : index
    %4 = vector.load %arg1[%c0_2, %c0_3] : memref<8x512xbf16, #tpu.memory_space<vmem>>, vector<8x512xbf16>
    %c0_4 = arith.constant 0 : index
    %c0_5 = arith.constant 0 : index
    %5 = vector.load %arg2[%c0_4, %c0_5] : memref<512x256xbf16, #tpu.memory_space<vmem>>, vector<512x256xbf16>
    %cst = arith.constant dense<0.000000e+00> : vector<8x256xf32>
    %6 = tpu.matmul %4, %5, %cst {dimension_numbers = #tpu.dot_dimension_numbers<[1], [0], [0], [1], [0, 0, 1, 1], [], []>} : vector<8x512xbf16>, vector<512x256xbf16>, vector<8x256xf32> -> vector<8x256xf32>
    %7 = arith.addf %3, %6 : vector<8x256xf32>
    %c0_6 = arith.constant 0 : index
    %c0_7 = arith.constant 0 : index
    %8 = vector.load %arg8[%c0_6, %c0_7] : memref<8x256xf32, #tpu.memory_space<vmem>>, vector<8x256xf32>
    tpu.vector_store %arg8[%c0_6, %c0_7], %7 {strides = array<i32>} : memref<8x256xf32, #tpu.memory_space<vmem>>, vector<8x256xf32>,
    %c3_i32 = arith.constant 3 : i32
    %9 = arith.cmpi eq, %arg0, %c3_i32 : i32
    %10 = arith.extui %9 : i1 to i32
    %c0_i32_8 = arith.constant 0 : i32
    %11 = arith.cmpi ne, %10, %c0_i32_8 : i32
    scf.if %11 {
      %c0_9 = arith.constant 0 : index
      %c0_10 = arith.constant 0 : index
      %12 = vector.load %arg8[%c0_9, %c0_10] : memref<8x256xf32, #tpu.memory_space<vmem>>, vector<8x256xf32>
      %c0_11 = arith.constant 0 : index
      %c0_12 = arith.constant 0 : index
      %13 = vector.load %arg3[%c0_11, %c0_12] : memref<1x256xf32, #tpu.memory_space<vmem>>, vector<1x256xf32>
      %14 = vector.broadcast %13 : vector<1x256xf32> to vector<8x256xf32>
      %15 = arith.addf %12, %14 : vector<8x256xf32>
      %16 = vector.extract_strided_slice %15 {offsets = [0, 0], sizes = [8, 128], strides = [1, 1]} : vector<8x256xf32> to vector<8x128xf32>
      %17 = vector.extract_strided_slice %15 {offsets = [0, 128], sizes = [8, 128], strides = [1, 1]} : vector<8x256xf32> to vector<8x128xf32>
      %c0_13 = arith.constant 0 : index
      %c0_14 = arith.constant 0 : index
      %18 = vector.load %arg5[%c0_13, %c0_14] : memref<8x128xf32, #tpu.memory_space<vmem>>, vector<8x128xf32>
      tpu.vector_store %arg5[%c0_13, %c0_14], %16 {strides = array<i32>} : memref<8x128xf32, #tpu.memory_space<vmem>>, vector<8x128xf32>,
      %c0_15 = arith.constant 0 : index
      %c0_16 = arith.constant 0 : index
      %19 = vector.load %arg6[%c0_15, %c0_16] : memref<8x128xf32, #tpu.memory_space<vmem>>, vector<8x128xf32>
      tpu.vector_store %arg6[%c0_15, %c0_16], %17 {strides = array<i32>} : memref<8x128xf32, #tpu.memory_space<vmem>>, vector<8x128xf32>,
      %c0_17 = arith.constant 0 : index
      %c0_18 = arith.constant 0 : index
      %20 = vector.load %arg4[%c0_17, %c0_18] : memref<8x128xf32, #tpu.memory_space<vmem>>, vector<8x128xf32>
      %cst_19 = arith.constant 5.000000e-01 : f32
      %21 = vector.broadcast %cst_19 : f32 to vector<8x128xf32>
      %22 = arith.mulf %21, %17 : vector<8x128xf32>
      %23 = math.exp %22 : vector<8x128xf32>
      %24 = arith.mulf %20, %23 : vector<8x128xf32>
      %25 = arith.addf %16, %24 : vector<8x128xf32>
      %c0_20 = arith.constant 0 : index
      %c0_21 = arith.constant 0 : index
      %26 = vector.load %arg7[%c0_20, %c0_21] : memref<8x128xf32, #tpu.memory_space<vmem>>, vector<8x128xf32>
      tpu.vector_store %arg7[%c0_20, %c0_21], %25 {strides = array<i32>} : memref<8x128xf32, #tpu.memory_space<vmem>>, vector<8x128xf32>,
    } else {
    }
    return
  }
  func.func @transform_0(%arg0: i32) -> (i32, i32) {
    %c0_i32 = arith.constant 0 : i32
    %c0_i32_0 = arith.constant 0 : i32
    return %c0_i32, %arg0 : i32, i32
  }
  func.func @transform_1(%arg0: i32) -> (i32, i32) {
    %c0_i32 = arith.constant 0 : i32
    %c0_i32_0 = arith.constant 0 : i32
    return %arg0, %c0_i32 : i32, i32
  }
  func.func @transform_2(%arg0: i32) -> (i32, i32) {
    %c0_i32 = arith.constant 0 : i32
    %c0_i32_0 = arith.constant 0 : i32
    %c0_i32_1 = arith.constant 0 : i32
    return %c0_i32, %c0_i32_0 : i32, i32
  }
  func.func @transform_3(%arg0: i32) -> (i32, i32) {
    %c0_i32 = arith.constant 0 : i32
    %c0_i32_0 = arith.constant 0 : i32
    %c0_i32_1 = arith.constant 0 : i32
    return %c0_i32, %c0_i32_0 : i32, i32
  }
  func.func @transform_4(%arg0: i32) -> (i32, i32) {
    %c0_i32 = arith.constant 0 : i32
    %c0_i32_0 = arith.constant 0 : i32
    %c0_i32_1 = arith.constant 0 : i32
    return %c0_i32, %c0_i32_0 : i32, i32
  }
  func.func @transform_5(%arg0: i32) -> (i32, i32) {
    %c0_i32 = arith.constant 0 : i32
    %c0_i32_0 = arith.constant 0 : i32
    %c0_i32_1 = arith.constant 0 : i32
    return %c0_i32, %c0_i32_0 : i32, i32
  }
  func.func @transform_6(%arg0: i32) -> (i32, i32) {
    %c0_i32 = arith.constant 0 : i32
    %c0_i32_0 = arith.constant 0 : i32
    %c0_i32_1 = arith.constant 0 : i32
    return %c0_i32, %c0_i32_0 : i32, i32
  }
}

module attributes {stable_mosaic.version = 11 : i64} {
  func.func @_mm_bias_kernel(%arg0: i32, %arg1: i32, %arg2: i32, %arg3: memref<8x512xbf16, #tpu.memory_space<vmem>>, %arg4: memref<512x256xbf16, #tpu.memory_space<vmem>>, %arg5: memref<1x256xf32, #tpu.memory_space<vmem>>, %arg6: memref<8x256xf32, #tpu.memory_space<vmem>>, %arg7: memref<8x256xf32, #tpu.memory_space<vmem>>) attributes {dimension_semantics = [#tpu.dimension_semantics<parallel>, #tpu.dimension_semantics<parallel>, #tpu.dimension_semantics<arbitrary>], iteration_bounds = array<i64: 1, 8, 2>, scalar_prefetch = 0 : i64, scratch_operands = 1 : i64, tpu.core_type = #tpu.core_type<tc>, window_params = [{transform_indices = @transform_0, window_bounds = array<i64: 8, 512>}, {transform_indices = @transform_1, window_bounds = array<i64: 512, 256>}, {transform_indices = @transform_2, window_bounds = array<i64: 1, 256>}, {transform_indices = @transform_3, window_bounds = array<i64: 8, 256>}]} {
    %c0_i32 = arith.constant 0 : i32
    %0 = arith.cmpi eq, %arg2, %c0_i32 : i32
    %1 = arith.extui %0 : i1 to i32
    %c0_i32_0 = arith.constant 0 : i32
    %2 = arith.cmpi ne, %1, %c0_i32_0 : i32
    scf.if %2 {
      %cst_9 = arith.constant 0.000000e+00 : f32
      %12 = vector.broadcast %cst_9 : f32 to vector<8x256xf32>
      %c0_10 = arith.constant 0 : index
      %c0_11 = arith.constant 0 : index
      %13 = vector.load %arg7[%c0_10, %c0_11] : memref<8x256xf32, #tpu.memory_space<vmem>>, vector<8x256xf32>
      tpu.vector_store %arg7[%c0_10, %c0_11], %12 {strides = array<i32>} : memref<8x256xf32, #tpu.memory_space<vmem>>, vector<8x256xf32>,
    } else {
    }
    %c0 = arith.constant 0 : index
    %c0_1 = arith.constant 0 : index
    %3 = vector.load %arg7[%c0, %c0_1] : memref<8x256xf32, #tpu.memory_space<vmem>>, vector<8x256xf32>
    %c0_2 = arith.constant 0 : index
    %c0_3 = arith.constant 0 : index
    %4 = vector.load %arg3[%c0_2, %c0_3] : memref<8x512xbf16, #tpu.memory_space<vmem>>, vector<8x512xbf16>
    %c0_4 = arith.constant 0 : index
    %c0_5 = arith.constant 0 : index
    %5 = vector.load %arg4[%c0_4, %c0_5] : memref<512x256xbf16, #tpu.memory_space<vmem>>, vector<512x256xbf16>
    %cst = arith.constant dense<0.000000e+00> : vector<8x256xf32>
    %6 = tpu.matmul %4, %5, %cst {dimension_numbers = #tpu.dot_dimension_numbers<[1], [0], [0], [1], [0, 0, 1, 1], [], []>} : vector<8x512xbf16>, vector<512x256xbf16>, vector<8x256xf32> -> vector<8x256xf32>
    %7 = arith.addf %3, %6 : vector<8x256xf32>
    %c0_6 = arith.constant 0 : index
    %c0_7 = arith.constant 0 : index
    %8 = vector.load %arg7[%c0_6, %c0_7] : memref<8x256xf32, #tpu.memory_space<vmem>>, vector<8x256xf32>
    tpu.vector_store %arg7[%c0_6, %c0_7], %7 {strides = array<i32>} : memref<8x256xf32, #tpu.memory_space<vmem>>, vector<8x256xf32>,
    %c1_i32 = arith.constant 1 : i32
    %9 = arith.cmpi eq, %arg2, %c1_i32 : i32
    %10 = arith.extui %9 : i1 to i32
    %c0_i32_8 = arith.constant 0 : i32
    %11 = arith.cmpi ne, %10, %c0_i32_8 : i32
    scf.if %11 {
      %c0_9 = arith.constant 0 : index
      %c0_10 = arith.constant 0 : index
      %12 = vector.load %arg7[%c0_9, %c0_10] : memref<8x256xf32, #tpu.memory_space<vmem>>, vector<8x256xf32>
      %c0_11 = arith.constant 0 : index
      %c0_12 = arith.constant 0 : index
      %13 = vector.load %arg5[%c0_11, %c0_12] : memref<1x256xf32, #tpu.memory_space<vmem>>, vector<1x256xf32>
      %14 = vector.broadcast %13 : vector<1x256xf32> to vector<8x256xf32>
      %15 = arith.addf %12, %14 : vector<8x256xf32>
      %c0_13 = arith.constant 0 : index
      %c0_14 = arith.constant 0 : index
      %16 = vector.load %arg6[%c0_13, %c0_14] : memref<8x256xf32, #tpu.memory_space<vmem>>, vector<8x256xf32>
      tpu.vector_store %arg6[%c0_13, %c0_14], %15 {strides = array<i32>} : memref<8x256xf32, #tpu.memory_space<vmem>>, vector<8x256xf32>,
    } else {
    }
    return
  }
  func.func @transform_0(%arg0: i32, %arg1: i32, %arg2: i32) -> (i32, i32) {
    %c0_i32 = arith.constant 0 : i32
    return %arg0, %arg2 : i32, i32
  }
  func.func @transform_1(%arg0: i32, %arg1: i32, %arg2: i32) -> (i32, i32) {
    %c0_i32 = arith.constant 0 : i32
    return %arg2, %arg1 : i32, i32
  }
  func.func @transform_2(%arg0: i32, %arg1: i32, %arg2: i32) -> (i32, i32) {
    %c0_i32 = arith.constant 0 : i32
    %c0_i32_0 = arith.constant 0 : i32
    return %c0_i32, %arg1 : i32, i32
  }
  func.func @transform_3(%arg0: i32, %arg1: i32, %arg2: i32) -> (i32, i32) {
    %c0_i32 = arith.constant 0 : i32
    return %arg0, %arg1 : i32, i32
  }
}

module attributes {stable_mosaic.version = 11 : i64} {
  func.func @_mm_bias_kernel(%arg0: i32, %arg1: i32, %arg2: i32, %arg3: memref<56x512xbf16, #tpu.memory_space<vmem>>, %arg4: memref<512x256xbf16, #tpu.memory_space<vmem>>, %arg5: memref<1x256xf32, #tpu.memory_space<vmem>>, %arg6: memref<56x256xf32, #tpu.memory_space<vmem>>, %arg7: memref<56x256xf32, #tpu.memory_space<vmem>>) attributes {dimension_semantics = [#tpu.dimension_semantics<parallel>, #tpu.dimension_semantics<parallel>, #tpu.dimension_semantics<arbitrary>], iteration_bounds = array<i64: 1, 1, 1>, scalar_prefetch = 0 : i64, scratch_operands = 1 : i64, tpu.core_type = #tpu.core_type<tc>, window_params = [{transform_indices = @transform_0, window_bounds = array<i64: 56, 512>}, {transform_indices = @transform_1, window_bounds = array<i64: 512, 256>}, {transform_indices = @transform_2, window_bounds = array<i64: 1, 256>}, {transform_indices = @transform_3, window_bounds = array<i64: 56, 256>}]} {
    %c0_i32 = arith.constant 0 : i32
    %0 = arith.cmpi eq, %arg2, %c0_i32 : i32
    %1 = arith.extui %0 : i1 to i32
    %c0_i32_0 = arith.constant 0 : i32
    %2 = arith.cmpi ne, %1, %c0_i32_0 : i32
    scf.if %2 {
      %cst_10 = arith.constant 0.000000e+00 : f32
      %12 = vector.broadcast %cst_10 : f32 to vector<56x256xf32>
      %c0_11 = arith.constant 0 : index
      %c0_12 = arith.constant 0 : index
      %13 = vector.load %arg7[%c0_11, %c0_12] : memref<56x256xf32, #tpu.memory_space<vmem>>, vector<56x256xf32>
      tpu.vector_store %arg7[%c0_11, %c0_12], %12 {strides = array<i32>} : memref<56x256xf32, #tpu.memory_space<vmem>>, vector<56x256xf32>,
    } else {
    }
    %c0 = arith.constant 0 : index
    %c0_1 = arith.constant 0 : index
    %3 = vector.load %arg7[%c0, %c0_1] : memref<56x256xf32, #tpu.memory_space<vmem>>, vector<56x256xf32>
    %c0_2 = arith.constant 0 : index
    %c0_3 = arith.constant 0 : index
    %4 = vector.load %arg3[%c0_2, %c0_3] : memref<56x512xbf16, #tpu.memory_space<vmem>>, vector<56x512xbf16>
    %c0_4 = arith.constant 0 : index
    %c0_5 = arith.constant 0 : index
    %5 = vector.load %arg4[%c0_4, %c0_5] : memref<512x256xbf16, #tpu.memory_space<vmem>>, vector<512x256xbf16>
    %cst = arith.constant dense<0.000000e+00> : vector<56x256xf32>
    %6 = tpu.matmul %4, %5, %cst {dimension_numbers = #tpu.dot_dimension_numbers<[1], [0], [0], [1], [0, 0, 1, 1], [], []>} : vector<56x512xbf16>, vector<512x256xbf16>, vector<56x256xf32> -> vector<56x256xf32>
    %7 = arith.addf %3, %6 : vector<56x256xf32>
    %c0_6 = arith.constant 0 : index
    %c0_7 = arith.constant 0 : index
    %8 = vector.load %arg7[%c0_6, %c0_7] : memref<56x256xf32, #tpu.memory_space<vmem>>, vector<56x256xf32>
    tpu.vector_store %arg7[%c0_6, %c0_7], %7 {strides = array<i32>} : memref<56x256xf32, #tpu.memory_space<vmem>>, vector<56x256xf32>,
    %c0_i32_8 = arith.constant 0 : i32
    %9 = arith.cmpi eq, %arg2, %c0_i32_8 : i32
    %10 = arith.extui %9 : i1 to i32
    %c0_i32_9 = arith.constant 0 : i32
    %11 = arith.cmpi ne, %10, %c0_i32_9 : i32
    scf.if %11 {
      %c0_10 = arith.constant 0 : index
      %c0_11 = arith.constant 0 : index
      %12 = vector.load %arg7[%c0_10, %c0_11] : memref<56x256xf32, #tpu.memory_space<vmem>>, vector<56x256xf32>
      %c0_12 = arith.constant 0 : index
      %c0_13 = arith.constant 0 : index
      %13 = vector.load %arg5[%c0_12, %c0_13] : memref<1x256xf32, #tpu.memory_space<vmem>>, vector<1x256xf32>
      %14 = vector.broadcast %13 : vector<1x256xf32> to vector<56x256xf32>
      %15 = arith.addf %12, %14 : vector<56x256xf32>
      %cst_14 = arith.constant 0.000000e+00 : f32
      %16 = vector.broadcast %cst_14 : f32 to vector<56x256xf32>
      %17 = arith.maximumf %15, %16 : vector<56x256xf32>
      %c0_15 = arith.constant 0 : index
      %c0_16 = arith.constant 0 : index
      %18 = vector.load %arg6[%c0_15, %c0_16] : memref<56x256xf32, #tpu.memory_space<vmem>>, vector<56x256xf32>
      tpu.vector_store %arg6[%c0_15, %c0_16], %17 {strides = array<i32>} : memref<56x256xf32, #tpu.memory_space<vmem>>, vector<56x256xf32>,
    } else {
    }
    return
  }
  func.func @transform_0(%arg0: i32, %arg1: i32, %arg2: i32) -> (i32, i32) {
    %c0_i32 = arith.constant 0 : i32
    return %arg0, %arg2 : i32, i32
  }
  func.func @transform_1(%arg0: i32, %arg1: i32, %arg2: i32) -> (i32, i32) {
    %c0_i32 = arith.constant 0 : i32
    return %arg2, %arg1 : i32, i32
  }
  func.func @transform_2(%arg0: i32, %arg1: i32, %arg2: i32) -> (i32, i32) {
    %c0_i32 = arith.constant 0 : i32
    %c0_i32_0 = arith.constant 0 : i32
    return %c0_i32, %arg1 : i32, i32
  }
  func.func @transform_3(%arg0: i32, %arg1: i32, %arg2: i32) -> (i32, i32) {
    %c0_i32 = arith.constant 0 : i32
    return %arg0, %arg1 : i32, i32
  }
}

module attributes {stable_mosaic.version = 11 : i64} {
  func.func @_mm_bias_kernel(%arg0: i32, %arg1: i32, %arg2: i32, %arg3: memref<168x256xbf16, #tpu.memory_space<vmem>>, %arg4: memref<256x128xbf16, #tpu.memory_space<vmem>>, %arg5: memref<1x128xf32, #tpu.memory_space<vmem>>, %arg6: memref<168x128xf32, #tpu.memory_space<vmem>>, %arg7: memref<168x128xf32, #tpu.memory_space<vmem>>) attributes {dimension_semantics = [#tpu.dimension_semantics<parallel>, #tpu.dimension_semantics<parallel>, #tpu.dimension_semantics<arbitrary>], iteration_bounds = array<i64: 1, 1, 1>, scalar_prefetch = 0 : i64, scratch_operands = 1 : i64, tpu.core_type = #tpu.core_type<tc>, window_params = [{transform_indices = @transform_0, window_bounds = array<i64: 168, 256>}, {transform_indices = @transform_1, window_bounds = array<i64: 256, 128>}, {transform_indices = @transform_2, window_bounds = array<i64: 1, 128>}, {transform_indices = @transform_3, window_bounds = array<i64: 168, 128>}]} {
    %c0_i32 = arith.constant 0 : i32
    %0 = arith.cmpi eq, %arg2, %c0_i32 : i32
    %1 = arith.extui %0 : i1 to i32
    %c0_i32_0 = arith.constant 0 : i32
    %2 = arith.cmpi ne, %1, %c0_i32_0 : i32
    scf.if %2 {
      %cst_10 = arith.constant 0.000000e+00 : f32
      %12 = vector.broadcast %cst_10 : f32 to vector<168x128xf32>
      %c0_11 = arith.constant 0 : index
      %c0_12 = arith.constant 0 : index
      %13 = vector.load %arg7[%c0_11, %c0_12] : memref<168x128xf32, #tpu.memory_space<vmem>>, vector<168x128xf32>
      tpu.vector_store %arg7[%c0_11, %c0_12], %12 {strides = array<i32>} : memref<168x128xf32, #tpu.memory_space<vmem>>, vector<168x128xf32>,
    } else {
    }
    %c0 = arith.constant 0 : index
    %c0_1 = arith.constant 0 : index
    %3 = vector.load %arg7[%c0, %c0_1] : memref<168x128xf32, #tpu.memory_space<vmem>>, vector<168x128xf32>
    %c0_2 = arith.constant 0 : index
    %c0_3 = arith.constant 0 : index
    %4 = vector.load %arg3[%c0_2, %c0_3] : memref<168x256xbf16, #tpu.memory_space<vmem>>, vector<168x256xbf16>
    %c0_4 = arith.constant 0 : index
    %c0_5 = arith.constant 0 : index
    %5 = vector.load %arg4[%c0_4, %c0_5] : memref<256x128xbf16, #tpu.memory_space<vmem>>, vector<256x128xbf16>
    %cst = arith.constant dense<0.000000e+00> : vector<168x128xf32>
    %6 = tpu.matmul %4, %5, %cst {dimension_numbers = #tpu.dot_dimension_numbers<[1], [0], [0], [1], [0, 0, 1, 1], [], []>} : vector<168x256xbf16>, vector<256x128xbf16>, vector<168x128xf32> -> vector<168x128xf32>
    %7 = arith.addf %3, %6 : vector<168x128xf32>
    %c0_6 = arith.constant 0 : index
    %c0_7 = arith.constant 0 : index
    %8 = vector.load %arg7[%c0_6, %c0_7] : memref<168x128xf32, #tpu.memory_space<vmem>>, vector<168x128xf32>
    tpu.vector_store %arg7[%c0_6, %c0_7], %7 {strides = array<i32>} : memref<168x128xf32, #tpu.memory_space<vmem>>, vector<168x128xf32>,
    %c0_i32_8 = arith.constant 0 : i32
    %9 = arith.cmpi eq, %arg2, %c0_i32_8 : i32
    %10 = arith.extui %9 : i1 to i32
    %c0_i32_9 = arith.constant 0 : i32
    %11 = arith.cmpi ne, %10, %c0_i32_9 : i32
    scf.if %11 {
      %c0_10 = arith.constant 0 : index
      %c0_11 = arith.constant 0 : index
      %12 = vector.load %arg7[%c0_10, %c0_11] : memref<168x128xf32, #tpu.memory_space<vmem>>, vector<168x128xf32>
      %c0_12 = arith.constant 0 : index
      %c0_13 = arith.constant 0 : index
      %13 = vector.load %arg5[%c0_12, %c0_13] : memref<1x128xf32, #tpu.memory_space<vmem>>, vector<1x128xf32>
      %14 = vector.broadcast %13 : vector<1x128xf32> to vector<168x128xf32>
      %15 = arith.addf %12, %14 : vector<168x128xf32>
      %c0_14 = arith.constant 0 : index
      %c0_15 = arith.constant 0 : index
      %16 = vector.load %arg6[%c0_14, %c0_15] : memref<168x128xf32, #tpu.memory_space<vmem>>, vector<168x128xf32>
      tpu.vector_store %arg6[%c0_14, %c0_15], %15 {strides = array<i32>} : memref<168x128xf32, #tpu.memory_space<vmem>>, vector<168x128xf32>,
    } else {
    }
    return
  }
  func.func @transform_0(%arg0: i32, %arg1: i32, %arg2: i32) -> (i32, i32) {
    %c0_i32 = arith.constant 0 : i32
    return %arg0, %arg2 : i32, i32
  }
  func.func @transform_1(%arg0: i32, %arg1: i32, %arg2: i32) -> (i32, i32) {
    %c0_i32 = arith.constant 0 : i32
    return %arg2, %arg1 : i32, i32
  }
  func.func @transform_2(%arg0: i32, %arg1: i32, %arg2: i32) -> (i32, i32) {
    %c0_i32 = arith.constant 0 : i32
    %c0_i32_0 = arith.constant 0 : i32
    return %c0_i32, %arg1 : i32, i32
  }
  func.func @transform_3(%arg0: i32, %arg1: i32, %arg2: i32) -> (i32, i32) {
    %c0_i32 = arith.constant 0 : i32
    return %arg0, %arg1 : i32, i32
  }
}

</mosaic_0001>

<llo_original>
// kernel: cvae_forward.6
$region0: #{cvae_forward.6}
  #allocation0 [shape = 'u32[]', space=smem, size = 0x4, offset = 0x4, fixed_abs, tag = 'smem constant byte address 0x4 - core index']
  #allocation1 [shape = 'u32[72,128]{1,0:T(1,128)}', space=vmem, size = 0x9000, scoped, tag = 'internal scratch']
  #allocation2 [shape = 'f32[128,128]{1,0:T(8,128)}', space=vmem, size = 0x10000, scoped, tag = 'scratch operand']
  %s0 = inlined_call_operand.vmem [shape: bf16[128,128], index: 0, kind: input, shape index: {}]
  %s1 = inlined_call_operand.vmem [shape: bf16[128,128], index: 1, kind: input, shape index: {}]
  %s2 = inlined_call_operand.vmem [shape: f32[1,128], index: 2, kind: input, shape index: {}]
  %s3 = inlined_call_operand.vmem [shape: f32[128,128], index: 3, kind: output, shape index: {}]
  %s4 = sld [smem:[#allocation0]]
  $region30: #{cvae_forward.6} parent=0
    _
  %s6 = ssub.s32 1, %s4
  %s7 = scalar_select 0, %s6, %s4
  // Predicated region
  $region2: #{cvae_forward.6} parent=0 // pred_check
    _
  $region3: #{cvae_forward.6} parent=0 // pred_check_branch
    %9 = sbr.rel (0) target = $region5
  $region4: #{cvae_forward.6} parent=0 // pred_region
    _
  $region5: #{cvae_forward.6} parent=0 // pred_fallthru
    _
  // Predicated region
  $region6: #{cvae_forward.6} parent=0 // pred_check
    _
  $region7: #{cvae_forward.6} parent=0 // pred_check_branch
    %11 = sbr.rel (0) target = $region9
  $region8: #{cvae_forward.6} parent=0 // pred_region
    _
  $region9: #{cvae_forward.6} parent=0 // pred_fallthru
    _
  // Predicated region
  $region10: #{cvae_forward.6} parent=0 // pred_check
    _
  $region11: #{cvae_forward.6} parent=0 // pred_check_branch
    %13 = sbr.rel (0) target = $region13
  $region12: #{cvae_forward.6} parent=0 // pred_region
    _
  $region13: #{cvae_forward.6} parent=0 // pred_fallthru
    _
  %p14 = scmp.eq.s32.totalorder 0, 0
  // Predicated region
  $region14: #{cvae_forward.6} parent=0 // pred_check
    %p15 = pneg %p14
  $region15: #{cvae_forward.6} parent=0 // pred_check_branch
    %17 = sbr.rel (%p15) target = $region17
  $region16: #{cvae_forward.6} parent=0 // pred_region
    %18 = vst [vmem:[#allocation2] sm:$0xff] 0.0
    %19 = vst [vmem:[#allocation2 + $0x8] sm:$0xff] 0.0
    %20 = vst [vmem:[#allocation2 + $0x10] sm:$0xff] 0.0
    %21 = vst [vmem:[#allocation2 + $0x18] sm:$0xff] 0.0
    %22 = vst [vmem:[#allocation2 + $0x20] sm:$0xff] 0.0
    %23 = vst [vmem:[#allocation2 + $0x28] sm:$0xff] 0.0
    %24 = vst [vmem:[#allocation2 + $0x30] sm:$0xff] 0.0
    %25 = vst [vmem:[#allocation2 + $0x38] sm:$0xff] 0.0
    %26 = vst [vmem:[#allocation2 + $0x40] sm:$0xff] 0.0
    %27 = vst [vmem:[#allocation2 + $0x48] sm:$0xff] 0.0
    %28 = vst [vmem:[#allocation2 + $0x50] sm:$0xff] 0.0
    %29 = vst [vmem:[#allocation2 + $0x58] sm:$0xff] 0.0
    %30 = vst [vmem:[#allocation2 + $0x60] sm:$0xff] 0.0
    %31 = vst [vmem:[#allocation2 + $0x68] sm:$0xff] 0.0
    %32 = vst [vmem:[#allocation2 + $0x70] sm:$0xff] 0.0
    %33 = vst [vmem:[#allocation2 + $0x78] sm:$0xff] 0.0
  $region17: #{cvae_forward.6} parent=0 // pred_fallthru
    _
  %v34 = vld [vmem:[#allocation2] sm:$0xff]
  %v35 = vld [vmem:[#allocation2 + $0x8] sm:$0xff]
  %v36 = vld [vmem:[#allocation2 + $0x10] sm:$0xff]
  %v37 = vld [vmem:[#allocation2 + $0x18] sm:$0xff]
  %v38 = vld [vmem:[#allocation2 + $0x20] sm:$0xff]
  %v39 = vld [vmem:[#allocation2 + $0x28] sm:$0xff]
  %v40 = vld [vmem:[#allocation2 + $0x30] sm:$0xff]
  %v41 = vld [vmem:[#allocation2 + $0x38] sm:$0xff]
  %v42 = vld [vmem:[#allocation2 + $0x40] sm:$0xff]
  %v43 = vld [vmem:[#allocation2 + $0x48] sm:$0xff]
  %v44 = vld [vmem:[#allocation2 + $0x50] sm:$0xff]
  %v45 = vld [vmem:[#allocation2 + $0x58] sm:$0xff]
  %v46 = vld [vmem:[#allocation2 + $0x60] sm:$0xff]
  %v47 = vld [vmem:[#allocation2 + $0x68] sm:$0xff]
  %v48 = vld [vmem:[#allocation2 + $0x70] sm:$0xff]
  %v49 = vld [vmem:[#allocation2 + $0x78] sm:$0xff]
  %v50 = vld [vmem:[%s0] sm:$0xf]
  %v51 = vld [vmem:[%s0 + $0x4] sm:$0xf]
  %v52 = vld [vmem:[%s0 + $0x8] sm:$0xf]
  %v53 = vld [vmem:[%s0 + $0xc] sm:$0xf]
  %v54 = vld [vmem:[%s0 + $0x10] sm:$0xf]
  %v55 = vld [vmem:[%s0 + $0x14] sm:$0xf]
  %v56 = vld [vmem:[%s0 + $0x18] sm:$0xf]
  %v57 = vld [vmem:[%s0 + $0x1c] sm:$0xf]
  %v58 = vld [vmem:[%s0 + $0x20] sm:$0xf]
  %v59 = vld [vmem:[%s0 + $0x24] sm:$0xf]
  %v60 = vld [vmem:[%s0 + $0x28] sm:$0xf]
  %v61 = vld [vmem:[%s0 + $0x2c] sm:$0xf]
  %v62 = vld [vmem:[%s0 + $0x30] sm:$0xf]
  %v63 = vld [vmem:[%s0 + $0x34] sm:$0xf]
  %v64 = vld [vmem:[%s0 + $0x38] sm:$0xf]
  %v65 = vld [vmem:[%s0 + $0x3c] sm:$0xf]
  %v66 = vld [vmem:[%s1] sm:$0xf]
  %v67 = vld [vmem:[%s1 + $0x4] sm:$0xf]
  %v68 = vld [vmem:[%s1 + $0x8] sm:$0xf]
  %v69 = vld [vmem:[%s1 + $0xc] sm:$0xf]
  %v70 = vld [vmem:[%s1 + $0x10] sm:$0xf]
  %v71 = vld [vmem:[%s1 + $0x14] sm:$0xf]
  %v72 = vld [vmem:[%s1 + $0x18] sm:$0xf]
  %v73 = vld [vmem:[%s1 + $0x1c] sm:$0xf]
  %v74 = vld [vmem:[%s1 + $0x20] sm:$0xf]
  %v75 = vld [vmem:[%s1 + $0x24] sm:$0xf]
  %v76 = vld [vmem:[%s1 + $0x28] sm:$0xf]
  %v77 = vld [vmem:[%s1 + $0x2c] sm:$0xf]
  %v78 = vld [vmem:[%s1 + $0x30] sm:$0xf]
  %v79 = vld [vmem:[%s1 + $0x34] sm:$0xf]
  %v80 = vld [vmem:[%s1 + $0x38] sm:$0xf]
  %v81 = vld [vmem:[%s1 + $0x3c] sm:$0xf]
  %v98 = vunpack.c.l.b16 %v50
  %v99 = vunpack.c.l.b16 %v51
  %v100 = vunpack.c.l.b16 %v52
  %v101 = vunpack.c.l.b16 %v53
  %v102 = vunpack.c.l.b16 %v54
  %v103 = vunpack.c.l.b16 %v55
  %v104 = vunpack.c.l.b16 %v56
  %v105 = vunpack.c.l.b16 %v57
  %v106 = vunpack.c.l.b16 %v58
  %v107 = vunpack.c.l.b16 %v59
  %v108 = vunpack.c.l.b16 %v60
  %v109 = vunpack.c.l.b16 %v61
  %v110 = vunpack.c.l.b16 %v62
  %v111 = vunpack.c.l.b16 %v63
  %v112 = vunpack.c.l.b16 %v64
  %v113 = vunpack.c.l.b16 %v65
  %v114 = vpack.c.b16 %v99, %v98
  %v115 = vpack.c.b16 %v101, %v100
  %v116 = vpack.c.b16 %v103, %v102
  %v117 = vpack.c.b16 %v105, %v104
  %v118 = vpack.c.b16 %v107, %v106
  %v119 = vpack.c.b16 %v109, %v108
  %v120 = vpack.c.b16 %v111, %v110
  %v121 = vpack.c.b16 %v113, %v112
  %v146 = vunpack.c.l.b16 %v66
  %v147 = vunpack.c.l.b16 %v67
  %v148 = vunpack.c.l.b16 %v68
  %v149 = vunpack.c.l.b16 %v69
  %v150 = vunpack.c.l.b16 %v70
  %v151 = vunpack.c.l.b16 %v71
  %v152 = vunpack.c.l.b16 %v72
  %v153 = vunpack.c.l.b16 %v73
  %v154 = vunpack.c.l.b16 %v74
  %v155 = vunpack.c.l.b16 %v75
  %v156 = vunpack.c.l.b16 %v76
  %v157 = vunpack.c.l.b16 %v77
  %v158 = vunpack.c.l.b16 %v78
  %v159 = vunpack.c.l.b16 %v79
  %v160 = vunpack.c.l.b16 %v80
  %v161 = vunpack.c.l.b16 %v81
  %v162 = vpack.c.b16 %v147, %v146
  %v163 = vpack.c.b16 %v149, %v148
  %v164 = vpack.c.b16 %v151, %v150
  %v165 = vpack.c.b16 %v153, %v152
  %v166 = vpack.c.b16 %v155, %v154
  %v167 = vpack.c.b16 %v157, %v156
  %v168 = vpack.c.b16 %v159, %v158
  %v169 = vpack.c.b16 %v161, %v160
  %178 = vmatpush.bf16.msra.mxu0 %v169
  %179 = vmatpush.bf16.msra.mxu0 %v168
  %180 = vmatpush.bf16.msra.mxu0 %v167
  %181 = vmatpush.bf16.msra.mxu0 %v166
  %182 = vmatpush.bf16.msra.mxu0 %v165
  %183 = vmatpush.bf16.msra.mxu0 %v164
  %184 = vmatpush.bf16.msra.mxu0 %v163
  %185 = vmatpush.bf16.msra.mxu0 %v162
  %186 = vmatmul.bf16.gmra.mxu0 %v114
  %v187 = vpop.f32.mrf.mxu0
  %v188 = vadd.f32 0.0, %v187
  %v189 = vpop.f32.mrf.mxu0
  %v190 = vadd.f32 0.0, %v189
  %191 = vmatmul.bf16.gmra.mxu0 %v115
  %v192 = vpop.f32.mrf.mxu0
  %v193 = vadd.f32 0.0, %v192
  %v194 = vpop.f32.mrf.mxu0
  %v195 = vadd.f32 0.0, %v194
  %196 = vmatmul.bf16.gmra.mxu0 %v116
  %v197 = vpop.f32.mrf.mxu0
  %v198 = vadd.f32 0.0, %v197
  %v199 = vpop.f32.mrf.mxu0
  %v200 = vadd.f32 0.0, %v199
  %201 = vmatmul.bf16.gmra.mxu0 %v117
  %v202 = vpop.f32.mrf.mxu0
  %v203 = vadd.f32 0.0, %v202
  %v204 = vpop.f32.mrf.mxu0
  %v205 = vadd.f32 0.0, %v204
  %206 = vmatmul.bf16.gmra.mxu0 %v118
  %v207 = vpop.f32.mrf.mxu0
  %v208 = vadd.f32 0.0, %v207
  %v209 = vpop.f32.mrf.mxu0
  %v210 = vadd.f32 0.0, %v209
  %211 = vmatmul.bf16.gmra.mxu0 %v119
  %v212 = vpop.f32.mrf.mxu0
  %v213 = vadd.f32 0.0, %v212
  %v214 = vpop.f32.mrf.mxu0
  %v215 = vadd.f32 0.0, %v214
  %216 = vmatmul.bf16.gmra.mxu0 %v120
  %v217 = vpop.f32.mrf.mxu0
  %v218 = vadd.f32 0.0, %v217
  %v219 = vpop.f32.mrf.mxu0
  %v220 = vadd.f32 0.0, %v219
  %221 = vmatmul.bf16.gmra.mxu0 %v121
  %v222 = vpop.f32.mrf.mxu0
  %v223 = vadd.f32 0.0, %v222
  %v224 = vpop.f32.mrf.mxu0
  %v225 = vadd.f32 0.0, %v224
  %226 = vdwg.mxu0
  %v227 = vadd.f32 %v34, %v188
  %v228 = vadd.f32 %v35, %v190
  %v229 = vadd.f32 %v36, %v193
  %v230 = vadd.f32 %v37, %v195
  %v231 = vadd.f32 %v38, %v198
  %v232 = vadd.f32 %v39, %v200
  %v233 = vadd.f32 %v40, %v203
  %v234 = vadd.f32 %v41, %v205
  %v235 = vadd.f32 %v42, %v208
  %v236 = vadd.f32 %v43, %v210
  %v237 = vadd.f32 %v44, %v213
  %v238 = vadd.f32 %v45, %v215
  %v239 = vadd.f32 %v46, %v218
  %v240 = vadd.f32 %v47, %v220
  %v241 = vadd.f32 %v48, %v223
  %v242 = vadd.f32 %v49, %v225
  %243 = vst [vmem:[#allocation2] sm:$0xff] %v227
  %244 = vst [vmem:[#allocation2 + $0x8] sm:$0xff] %v228
  %245 = vst [vmem:[#allocation2 + $0x10] sm:$0xff] %v229
  %246 = vst [vmem:[#allocation2 + $0x18] sm:$0xff] %v230
  %247 = vst [vmem:[#allocation2 + $0x20] sm:$0xff] %v231
  %248 = vst [vmem:[#allocation2 + $0x28] sm:$0xff] %v232
  %249 = vst [vmem:[#allocation2 + $0x30] sm:$0xff] %v233
  %250 = vst [vmem:[#allocation2 + $0x38] sm:$0xff] %v234
  %251 = vst [vmem:[#allocation2 + $0x40] sm:$0xff] %v235
  %252 = vst [vmem:[#allocation2 + $0x48] sm:$0xff] %v236
  %253 = vst [vmem:[#allocation2 + $0x50] sm:$0xff] %v237
  %254 = vst [vmem:[#allocation2 + $0x58] sm:$0xff] %v238
  %255 = vst [vmem:[#allocation2 + $0x60] sm:$0xff] %v239
  %256 = vst [vmem:[#allocation2 + $0x68] sm:$0xff] %v240
  %257 = vst [vmem:[#allocation2 + $0x70] sm:$0xff] %v241
  %258 = vst [vmem:[#allocation2 + $0x78] sm:$0xff] %v242
  // Predicated region
  $region18: #{cvae_forward.6} parent=0 // pred_check
    %p259 = pneg %p14
  $region19: #{cvae_forward.6} parent=0 // pred_check_branch
    %261 = sbr.rel (%p259) target = $region21
  $region20: #{cvae_forward.6} parent=0 // pred_region
    %v262 = vld [vmem:[#allocation2] sm:$0xff]
    %v263 = vld [vmem:[#allocation2 + $0x8] sm:$0xff]
    %v264 = vld [vmem:[#allocation2 + $0x10] sm:$0xff]
    %v265 = vld [vmem:[#allocation2 + $0x18] sm:$0xff]
    %v266 = vld [vmem:[#allocation2 + $0x20] sm:$0xff]
    %v267 = vld [vmem:[#allocation2 + $0x28] sm:$0xff]
    %v268 = vld [vmem:[#allocation2 + $0x30] sm:$0xff]
    %v269 = vld [vmem:[#allocation2 + $0x38] sm:$0xff]
    %v270 = vld [vmem:[#allocation2 + $0x40] sm:$0xff]
    %v271 = vld [vmem:[#allocation2 + $0x48] sm:$0xff]
    %v272 = vld [vmem:[#allocation2 + $0x50] sm:$0xff]
    %v273 = vld [vmem:[#allocation2 + $0x58] sm:$0xff]
    %v274 = vld [vmem:[#allocation2 + $0x60] sm:$0xff]
    %v275 = vld [vmem:[#allocation2 + $0x68] sm:$0xff]
    %v276 = vld [vmem:[#allocation2 + $0x70] sm:$0xff]
    %v277 = vld [vmem:[#allocation2 + $0x78] sm:$0xff]
    %v278 = vld [vmem:[%s2] sm:$0x1]
    %v280 = vperm.slane %v278, 0
    %v282 = vadd.f32 %v262, %v280
    %v283 = vadd.f32 %v263, %v280
    %v284 = vadd.f32 %v264, %v280
    %v285 = vadd.f32 %v265, %v280
    %v286 = vadd.f32 %v266, %v280
    %v287 = vadd.f32 %v267, %v280
    %v288 = vadd.f32 %v268, %v280
    %v289 = vadd.f32 %v269, %v280
    %v290 = vadd.f32 %v270, %v280
    %v291 = vadd.f32 %v271, %v280
    %v292 = vadd.f32 %v272, %v280
    %v293 = vadd.f32 %v273, %v280
    %v294 = vadd.f32 %v274, %v280
    %v295 = vadd.f32 %v275, %v280
    %v296 = vadd.f32 %v276, %v280
    %v297 = vadd.f32 %v277, %v280
    %v298 = vmax.f32 %v282, 0.0
    %v299 = vmax.f32 %v283, 0.0
    %v300 = vmax.f32 %v284, 0.0
    %v301 = vmax.f32 %v285, 0.0
    %v302 = vmax.f32 %v286, 0.0
    %v303 = vmax.f32 %v287, 0.0
    %v304 = vmax.f32 %v288, 0.0
    %v305 = vmax.f32 %v289, 0.0
    %v306 = vmax.f32 %v290, 0.0
    %v307 = vmax.f32 %v291, 0.0
    %v308 = vmax.f32 %v292, 0.0
    %v309 = vmax.f32 %v293, 0.0
    %v310 = vmax.f32 %v294, 0.0
    %v311 = vmax.f32 %v295, 0.0
    %v312 = vmax.f32 %v296, 0.0
    %v313 = vmax.f32 %v297, 0.0
    %314 = vst [vmem:[%s3] sm:$0xff] %v298
    %315 = vst [vmem:[%s3 + $0x8] sm:$0xff] %v299
    %316 = vst [vmem:[%s3 + $0x10] sm:$0xff] %v300
    %317 = vst [vmem:[%s3 + $0x18] sm:$0xff] %v301
    %318 = vst [vmem:[%s3 + $0x20] sm:$0xff] %v302
    %319 = vst [vmem:[%s3 + $0x28] sm:$0xff] %v303
    %320 = vst [vmem:[%s3 + $0x30] sm:$0xff] %v304
    %321 = vst [vmem:[%s3 + $0x38] sm:$0xff] %v305
    %322 = vst [vmem:[%s3 + $0x40] sm:$0xff] %v306
    %323 = vst [vmem:[%s3 + $0x48] sm:$0xff] %v307
    %324 = vst [vmem:[%s3 + $0x50] sm:$0xff] %v308
    %325 = vst [vmem:[%s3 + $0x58] sm:$0xff] %v309
    %326 = vst [vmem:[%s3 + $0x60] sm:$0xff] %v310
    %327 = vst [vmem:[%s3 + $0x68] sm:$0xff] %v311
    %328 = vst [vmem:[%s3 + $0x70] sm:$0xff] %v312
    %329 = vst [vmem:[%s3 + $0x78] sm:$0xff] %v313
  $region21: #{cvae_forward.6} parent=0 // pred_fallthru
    _
  // Predicated region
  $region22: #{cvae_forward.6} parent=0 // pred_check
    _
  $region23: #{cvae_forward.6} parent=0 // pred_check_branch
    %331 = sbr.rel (0) target = $region25
  $region24: #{cvae_forward.6} parent=0 // pred_region
    _
  $region25: #{cvae_forward.6} parent=0 // pred_fallthru
    _
  // Predicated region
  $region26: #{cvae_forward.6} parent=0 // pred_check
    _
  $region27: #{cvae_forward.6} parent=0 // pred_check_branch
    %333 = sbr.rel (0) target = $region29
  $region28: #{cvae_forward.6} parent=0 // pred_region
    _
  $region29: #{cvae_forward.6} parent=0 // pred_fallthru
    _

// kernel: cvae_forward.7
$region0: #{cvae_forward.7}
  #allocation0 [shape = 'u32[]', space=smem, size = 0x4, offset = 0x4, fixed_abs, tag = 'smem constant byte address 0x4 - core index']
  #allocation1 [shape = 'u32[72,128]{1,0:T(1,128)}', space=vmem, size = 0x9000, scoped, tag = 'internal scratch']
  #allocation2 [shape = 'f32[32,128]{1,0:T(8,128)}', space=vmem, size = 0x4000, scoped, tag = 'scratch operand']
  %s0 = inlined_call_operand.vmem [shape: bf16[32,1024], index: 0, kind: input, shape index: {}]
  %s1 = inlined_call_operand.vmem [shape: bf16[1024,128], index: 1, kind: input, shape index: {}]
  %s2 = inlined_call_operand.vmem [shape: f32[1,128], index: 2, kind: input, shape index: {}]
  %s3 = inlined_call_operand.vmem [shape: f32[32,128], index: 3, kind: output, shape index: {}]
  %s4 = sld [smem:[#allocation0]]
  $region76: #{cvae_forward.7} parent=0
    _
  %s6 = ssub.s32 1, %s4
  %s7 = scalar_select 0, %s6, %s4
  $region1: #{cvae_forward.7} parent=0
    #allocation3 [shape = 'u8[65536]{0}', space=vmem, size = 0x10000, scoped, tag = 'input window, operand 0']
    loop: start=0, step=1, limit=4
    $region2: #{cvae_forward.7} parent=1 // loop_pre_header
      _
    $region3: #{cvae_forward.7} parent=1 // loop_header
      %s9 = sphi 0, %s13
      %p10 = scmp.ge.s32.totalorder %s9, 4
      %s16 = sphi 0, %s35
      %s17 = sphi 0, %s31
      %s18 = sphi 0, %s27
      %s19 = sphi 0, %s16
      %s20 = sphi 0, %s17
      %s21 = sphi 0, %s18
      %s22 = sphi 0, %s19
      %s23 = sphi 0, %s20
      %s24 = sphi 0, %s21
      %s40 = sphi 0, %s42
      %s43 = sphi 0, %s40
      %s44 = sphi 0, %s43
      %s60 = sphi 0, %s44
      %s68 = sphi 0, %s70
      %s71 = sphi 0, %s68
      %s72 = sphi 0, %s71
      %s88 = sphi 0, %s72
      %s94 = sphi 0, %s96
      %s97 = sphi 0, %s94
      %s98 = sphi 0, %s97
      %s114 = sphi 0, %s98
      %s122 = sphi 0, %s124
      %s125 = sphi 0, %s122
      %s126 = sphi 0, %s125
      %s142 = sphi 0, %s126
    $region4: #{cvae_forward.7} parent=1 // loop_header_branch
      %12 = sbr.rel (%p10) target = $region8
    $region5: #{cvae_forward.7} parent=1 // loop_body
      %s14 = ssub.s32 %s9, 1
      %s15 = ssub.s32 %s9, 2
      %s25 = sadd.s32 1, %s18
      %p26 = scmp.ge.s32.totalorder %s25, 2
      %s27 = scalar_select %p26, 0, %s25
      %s28 = sadd.s32 1, %s17
      %s29 = scalar_select %p26, %s28, %s17
      %p30 = scmp.ge.s32.totalorder %s29, 1
      %s31 = scalar_select %p30, 0, %s29
      %s32 = sadd.s32 1, %s16
      %s33 = scalar_select %p30, %s32, %s16
      %p34 = scmp.ge.s32.totalorder %s33, 1
      %s35 = scalar_select %p34, 0, %s33
      %s36 = ssub.s32 %s16, %s35
      %s37 = ssub.s32 %s18, %s27
      %s38 = sor.u32 %s36, %s37
      %p39 = scmp.eq.s32.totalorder %s38, 0
      %s41 = sadd.s32 %s40, 1
      %s42 = scalar_select %p39, %s40, %s41
      %p45 = pneg %p39
      %p46 = scmp.eq.s32.totalorder %s9, 1
      %p47 = por %p45, %p46
      %p48 = scmp.ne.s32.totalorder %s40, %s43
      %p49 = scmp.eq.s32.totalorder %s9, 0
      %p50 = por %p48, %p49
      %p51 = scmp.ne.s32.totalorder %s40, %s43
      %p52 = scmp.eq.s32.totalorder %s14, 1
      %p53 = por %p51, %p52
      %p54 = scmp.ne.s32.totalorder %s43, %s44
      %p55 = scmp.eq.s32.totalorder %s14, 0
      %p56 = por %p54, %p55
      %p57 = scmp.ne.s32.totalorder %s43, %s44
      %p58 = scmp.eq.s32.totalorder %s15, 1
      %p59 = por %p57, %p58
      %p61 = scmp.ne.s32.totalorder %s44, %s60
      %p62 = scmp.eq.s32.totalorder %s15, 0
      %p63 = por %p61, %p62
      %s64 = ssub.s32 %s18, %s27
      %s65 = ssub.s32 %s17, %s31
      %s66 = sor.u32 %s64, %s65
      %p67 = scmp.eq.s32.totalorder %s66, 0
      %s69 = sadd.s32 %s68, 1
      %s70 = scalar_select %p67, %s68, %s69
      %p73 = pneg %p67
      %p74 = scmp.eq.s32.totalorder %s9, 1
      %p75 = por %p73, %p74
      %p76 = scmp.ne.s32.totalorder %s68, %s71
      %p77 = scmp.eq.s32.totalorder %s9, 0
      %p78 = por %p76, %p77
      %p79 = scmp.ne.s32.totalorder %s68, %s71
      %p80 = scmp.eq.s32.totalorder %s14, 1
      %p81 = por %p79, %p80
      %p82 = scmp.ne.s32.totalorder %s71, %s72
      %p83 = scmp.eq.s32.totalorder %s14, 0
      %p84 = por %p82, %p83
      %p85 = scmp.ne.s32.totalorder %s71, %s72
      %p86 = scmp.eq.s32.totalorder %s15, 1
      %p87 = por %p85, %p86
      %p89 = scmp.ne.s32.totalorder %s72, %s88
      %p90 = scmp.eq.s32.totalorder %s15, 0
      %p91 = por %p89, %p90
      %s92 = ssub.s32 %s17, %s31
      %p93 = scmp.eq.s32.totalorder %s92, 0
      %s95 = sadd.s32 %s94, 1
      %s96 = scalar_select %p93, %s94, %s95
      %p99 = pneg %p93
      %p100 = scmp.eq.s32.totalorder %s9, 1
      %p101 = por %p99, %p100
      %p102 = scmp.ne.s32.totalorder %s94, %s97
      %p103 = scmp.eq.s32.totalorder %s9, 0
      %p104 = por %p102, %p103
      %p105 = scmp.ne.s32.totalorder %s94, %s97
      %p106 = scmp.eq.s32.totalorder %s14, 1
      %p107 = por %p105, %p106
      %p108 = scmp.ne.s32.totalorder %s97, %s98
      %p109 = scmp.eq.s32.totalorder %s14, 0
      %p110 = por %p108, %p109
      %p111 = scmp.ne.s32.totalorder %s97, %s98
      %p112 = scmp.eq.s32.totalorder %s15, 1
      %p113 = por %p111, %p112
      %p115 = scmp.ne.s32.totalorder %s98, %s114
      %p116 = scmp.eq.s32.totalorder %s15, 0
      %p117 = por %p115, %p116
      %s118 = ssub.s32 %s16, %s35
      %s119 = ssub.s32 %s17, %s31
      %s120 = sor.u32 %s118, %s119
      %p121 = scmp.eq.s32.totalorder %s120, 0
      %s123 = sadd.s32 %s122, 1
      %s124 = scalar_select %p121, %s122, %s123
      %p127 = pneg %p121
      %p128 = scmp.eq.s32.totalorder %s9, 1
      %p129 = por %p127, %p128
      %p130 = scmp.ne.s32.totalorder %s122, %s125
      %p131 = scmp.eq.s32.totalorder %s9, 0
      %p132 = por %p130, %p131
      %p133 = scmp.ne.s32.totalorder %s122, %s125
      %p134 = scmp.eq.s32.totalorder %s14, 1
      %p135 = por %p133, %p134
      %p136 = scmp.ne.s32.totalorder %s125, %s126
      %p137 = scmp.eq.s32.totalorder %s14, 0
      %p138 = por %p136, %p137
      %p139 = scmp.ne.s32.totalorder %s125, %s126
      %p140 = scmp.eq.s32.totalorder %s15, 1
      %p141 = por %p139, %p140
      %p143 = scmp.ne.s32.totalorder %s126, %s142
      %p144 = scmp.eq.s32.totalorder %s15, 0
      %p145 = por %p143, %p144
      %p146 = scmp.le.s32.totalorder 1, %s9
      %p147 = scmp.lt.s32.totalorder %s9, 3
      %p148 = pnand %p146, %p147
      %p149 = pneg %p148
      // Predicated region
      $region9: #{cvae_forward.7} parent=5 // pred_check
        _
      $region10: #{cvae_forward.7} parent=5 // pred_check_branch
        %151 = sbr.rel (%p148) target = $region12
      $region11: #{cvae_forward.7} parent=5 // pred_region
        %s152 = ssub.s32 %s9, 1
        // Predicated region
        $region13: #{cvae_forward.7} parent=11 // pred_check
          %p153 = pneg %p110
        $region14: #{cvae_forward.7} parent=11 // pred_check_branch
          %155 = sbr.rel (%p153) target = $region16
        $region15: #{cvae_forward.7} parent=11 // pred_region
          %p156 = scmp.lt.s32.totalorder %s20, 0
          %s157 = scalar_select %p156, %s20, 0
          %s158 = scalar_lea.vmem %s2, %s157
        $region16: #{cvae_forward.7} parent=11 // pred_fallthru
          _
      $region12: #{cvae_forward.7} parent=5 // pred_fallthru
        _
      %p159 = scmp.lt.s32.totalorder %s9, 2
      // Predicated region
      $region17: #{cvae_forward.7} parent=5 // pred_check
        %p160 = pneg %p159
      $region18: #{cvae_forward.7} parent=5 // pred_check_branch
        %162 = sbr.rel (%p160) target = $region20
      $region19: #{cvae_forward.7} parent=5 // pred_region
        // Predicated region
        $region21: #{cvae_forward.7} parent=19 // pred_check
          %p163 = pneg %p50
        $region22: #{cvae_forward.7} parent=19 // pred_check_branch
          %165 = sbr.rel (%p163) target = $region24
        $region23: #{cvae_forward.7} parent=19 // pred_region
          %s166 = sand.u32 %s40, 1
          %s167 = sand.u32 %s40, 1
          %s168 = smul.addr %s167, 64
          %s169 = scalar_lea.vmem [#allocation3], %s168
          %s170 = smul.u32 4, %s16
          %s171 = smul.u32 4, %s18
          %s172 = smul.addr %s170, 8
          %s173 = sadd.s32 %s171, %s172
          %s174 = smul.addr %s173, 4
          %s175 = scalar_lea.vmem %s0, %s174
          // Predicated region
          $region25: #{cvae_forward.7} parent=23 // pred_check
            _
          $region26: #{cvae_forward.7} parent=23 // pred_check_branch
            %177 = sbr.rel (0) target = $region28
          $region27: #{cvae_forward.7} parent=23 // pred_region
            // Predicated region
            $region29: #{cvae_forward.7} parent=27 // pred_check
              _
            $region30: #{cvae_forward.7} parent=27 // pred_check_branch
              %179 = sbr.rel (0) target = $region32
            $region31: #{cvae_forward.7} parent=27 // pred_region
              loop: start=0, step=1, limit=1
              $region33: #{cvae_forward.7} parent=31 // loop_pre_header
                _
              $region34: #{cvae_forward.7} parent=31 // loop_header
                %s181 = sphi 0, %s185
                %p182 = scmp.ge.s32.totalorder %s181, 1
                %s186 = sphi %s175, %s175
                %s187 = sphi %s169, %s169
              $region35: #{cvae_forward.7} parent=31 // loop_header_branch
                %184 = sbr.rel (%p182) target = $region39
              $region36: #{cvae_forward.7} parent=31 // loop_body
                %v188 = vld [vmem:[%s186] sm:$0xff]
                %189 = vst [vmem:[%s187] sm:$0xff] %v188
                %v190 = vld [vmem:[%s186 + $0x8] sm:$0xff]
                %191 = vst [vmem:[%s187 + $0x8] sm:$0xff] %v190
                %v192 = vld [vmem:[%s186 + $0x20] sm:$0xff]
                %193 = vst [vmem:[%s187 + $0x10] sm:$0xff] %v192
                %v194 = vld [vmem:[%s186 + $0x28] sm:$0xff]
                %195 = vst [vmem:[%s187 + $0x18] sm:$0xff] %v194
                %v196 = vld [vmem:[%s186 + $0x40] sm:$0xff]
                %197 = vst [vmem:[%s187 + $0x20] sm:$0xff] %v196
                %v198 = vld [vmem:[%s186 + $0x48] sm:$0xff]
                %199 = vst [vmem:[%s187 + $0x28] sm:$0xff] %v198
                %v200 = vld [vmem:[%s186 + $0x60] sm:$0xff]
                %201 = vst [vmem:[%s187 + $0x30] sm:$0xff] %v200
                %v202 = vld [vmem:[%s186 + $0x68] sm:$0xff]
                %203 = vst [vmem:[%s187 + $0x38] sm:$0xff] %v202
              $region37: #{cvae_forward.7} parent=31 // loop_footer
                %s185 = sadd.s32 1, %s181
              $region38: #{cvae_forward.7} parent=31 // loop_footer_branch
                %180 = sbr.rel target = $region34
              $region39: #{cvae_forward.7} parent=31 // loop_exit
                _
            $region32: #{cvae_forward.7} parent=27 // pred_fallthru
              _
            // Predicated region
            $region40: #{cvae_forward.7} parent=27 // pred_check
              _
            $region41: #{cvae_forward.7} parent=27 // pred_check_branch
              %205 = sbr.rel target = $region43
            $region42: #{cvae_forward.7} parent=27 // pred_region
              _
            $region43: #{cvae_forward.7} parent=27 // pred_fallthru
              _
          $region28: #{cvae_forward.7} parent=23 // pred_fallthru
            _
          %206 = vnop
        $region24: #{cvae_forward.7} parent=19 // pred_fallthru
          _
        // Predicated region
        $region44: #{cvae_forward.7} parent=19 // pred_check
          %p207 = pneg %p78
        $region45: #{cvae_forward.7} parent=19 // pred_check_branch
          %209 = sbr.rel (%p207) target = $region47
        $region46: #{cvae_forward.7} parent=19 // pred_region
          %s210 = smul.u32 64, %s18
          %p211 = scmp.lt.s32.totalorder %s210, 127
          %s212 = scalar_select %p211, %s210, 127
          %p213 = scmp.lt.s32.totalorder %s17, 0
          %s214 = scalar_select %p213, %s17, 0
          %s215 = sadd.s32 %s214, %s212
          %s216 = smul.addr %s215, 4
          %s217 = scalar_lea.vmem %s1, %s216
          %s218 = smul.u32 64, %s18
        $region47: #{cvae_forward.7} parent=19 // pred_fallthru
          _
      $region20: #{cvae_forward.7} parent=5 // pred_fallthru
        _
      %p219 = scmp.le.s32.totalorder 1, %s9
      %p220 = scmp.lt.s32.totalorder %s9, 3
      %p221 = pnand %p219, %p220
      %p222 = pneg %p221
      // Predicated region
      $region48: #{cvae_forward.7} parent=5 // pred_check
        _
      $region49: #{cvae_forward.7} parent=5 // pred_check_branch
        %224 = sbr.rel (%p221) target = $region51
      $region50: #{cvae_forward.7} parent=5 // pred_region
        %s225 = ssub.s32 %s9, 1
        %s226 = sand.u32 %s43, 1
        %s227 = sand.u32 %s43, 1
        %s228 = smul.addr %s227, 64
        %s229 = scalar_lea.vmem [#allocation3], %s228
        // Predicated region
        $region52: #{cvae_forward.7} parent=50 // pred_check
          %p230 = pneg %p56
        $region53: #{cvae_forward.7} parent=50 // pred_check_branch
          %232 = sbr.rel (%p230) target = $region55
        $region54: #{cvae_forward.7} parent=50 // pred_region
          _
        $region55: #{cvae_forward.7} parent=50 // pred_fallthru
          _
        %s233 = sand.u32 %s43, 1
        %s234 = sand.u32 %s43, 1
        %s235 = smul.addr %s234, 64
        %s236 = scalar_lea.vmem [#allocation3], %s235
        %p237 = pneg %p56
        %p238 = pneg %p53
        %s239 = smul.u32 64, %s21
        %p240 = scmp.lt.s32.totalorder %s239, 127
        %s241 = scalar_select %p240, %s239, 127
        %p242 = scmp.lt.s32.totalorder %s20, 0
        %s243 = scalar_select %p242, %s20, 0
        %s244 = sadd.s32 %s243, %s241
        %s245 = smul.addr %s244, 4
        %s246 = scalar_lea.vmem %s1, %s245
        %p247 = pneg %p84
        %p248 = pneg %p81
        %p249 = scmp.lt.s32.totalorder %s20, 0
        %s250 = scalar_select %p249, %s20, 0
        %s251 = scalar_lea.vmem %s2, %s250
        %p252 = pneg %p110
        %p253 = pneg %p107
        %p254 = pneg %p138
        %p255 = pneg %p135
        %s256 = smul.u32 4, %s19
        %p257 = scmp.lt.s32.totalorder %s256, 3
        %s258 = scalar_select %p257, %s256, 3
        %p259 = scmp.lt.s32.totalorder %s20, 0
        %s260 = scalar_select %p259, %s20, 0
        %s261 = sadd.s32 %s260, %s258
        %s262 = smul.addr %s261, 8
        %s263 = scalar_lea.vmem %s3, %s262
        %s264 = smul.u32 4, %s19
        %s265 = smul.u32 4, %s21
        %s266 = smul.u32 64, %s21
        %p267 = scmp.lt.s32.totalorder %s266, 127
        %s268 = scalar_select %p267, %s266, 127
        %p269 = scmp.lt.s32.totalorder %s20, 0
        %s270 = scalar_select %p269, %s20, 0
        %s271 = sadd.s32 %s270, %s268
        %s272 = smul.addr %s271, 4
        %s273 = scalar_lea.vmem %s1, %s272
        %s274 = smul.u32 64, %s21
        %p275 = scmp.lt.s32.totalorder %s20, 0
        %s276 = scalar_select %p275, %s20, 0
        %s277 = scalar_lea.vmem %s2, %s276
        %s278 = smul.u32 4, %s19
        %p279 = scmp.lt.s32.totalorder %s278, 3
        %s280 = scalar_select %p279, %s278, 3
        %p281 = scmp.lt.s32.totalorder %s20, 0
        %s282 = scalar_select %p281, %s20, 0
        %s283 = sadd.s32 %s282, %s280
        %s284 = smul.addr %s283, 8
        %s285 = scalar_lea.vmem %s3, %s284
        %s286 = smul.u32 4, %s19
        %p287 = scmp.eq.s32.totalorder %s21, 0
        // Predicated region
        $region56: #{cvae_forward.7} parent=50 // pred_check
          %p288 = pneg %p287
        $region57: #{cvae_forward.7} parent=50 // pred_check_branch
          %290 = sbr.rel (%p288) target = $region59
        $region58: #{cvae_forward.7} parent=50 // pred_region
          %291 = vst [vmem:[#allocation2] sm:$0xff] 0.0
          %292 = vst [vmem:[#allocation2 + $0x8] sm:$0xff] 0.0
          %293 = vst [vmem:[#allocation2 + $0x10] sm:$0xff] 0.0
          %294 = vst [vmem:[#allocation2 + $0x18] sm:$0xff] 0.0
        $region59: #{cvae_forward.7} parent=50 // pred_fallthru
          _
        %v295 = vld [vmem:[#allocation2] sm:$0xff]
        %v296 = vld [vmem:[#allocation2 + $0x8] sm:$0xff]
        %v297 = vld [vmem:[#allocation2 + $0x10] sm:$0xff]
        %v298 = vld [vmem:[#allocation2 + $0x18] sm:$0xff]
        %v299 = vld [vmem:[%s229] sm:$0xff]
        %v300 = vld [vmem:[%s229 + $0x8] sm:$0xff]
        %v301 = vld [vmem:[%s229 + $0x10] sm:$0xff]
        %v302 = vld [vmem:[%s229 + $0x18] sm:$0xff]
        %v303 = vld [vmem:[%s229 + $0x20] sm:$0xff]
        %v304 = vld [vmem:[%s229 + $0x28] sm:$0xff]
        %v305 = vld [vmem:[%s229 + $0x30] sm:$0xff]
        %v306 = vld [vmem:[%s229 + $0x38] sm:$0xff]
        %v307 = vld [vmem:[%s273] sm:$0xf]
        %v308 = vld [vmem:[%s273 + $0x4] sm:$0xf]
        %v309 = vld [vmem:[%s273 + $0x8] sm:$0xf]
        %v310 = vld [vmem:[%s273 + $0xc] sm:$0xf]
        %v311 = vld [vmem:[%s273 + $0x10] sm:$0xf]
        %v312 = vld [vmem:[%s273 + $0x14] sm:$0xf]
        %v313 = vld [vmem:[%s273 + $0x18] sm:$0xf]
        %v314 = vld [vmem:[%s273 + $0x1c] sm:$0xf]
        %v315 = vld [vmem:[%s273 + $0x20] sm:$0xf]
        %v316 = vld [vmem:[%s273 + $0x24] sm:$0xf]
        %v317 = vld [vmem:[%s273 + $0x28] sm:$0xf]
        %v318 = vld [vmem:[%s273 + $0x2c] sm:$0xf]
        %v319 = vld [vmem:[%s273 + $0x30] sm:$0xf]
        %v320 = vld [vmem:[%s273 + $0x34] sm:$0xf]
        %v321 = vld [vmem:[%s273 + $0x38] sm:$0xf]
        %v322 = vld [vmem:[%s273 + $0x3c] sm:$0xf]
        %v323 = vld [vmem:[%s273 + $0x40] sm:$0xf]
        %v324 = vld [vmem:[%s273 + $0x44] sm:$0xf]
        %v325 = vld [vmem:[%s273 + $0x48] sm:$0xf]
        %v326 = vld [vmem:[%s273 + $0x4c] sm:$0xf]
        %v327 = vld [vmem:[%s273 + $0x50] sm:$0xf]
        %v328 = vld [vmem:[%s273 + $0x54] sm:$0xf]
        %v329 = vld [vmem:[%s273 + $0x58] sm:$0xf]
        %v330 = vld [vmem:[%s273 + $0x5c] sm:$0xf]
        %v331 = vld [vmem:[%s273 + $0x60] sm:$0xf]
        %v332 = vld [vmem:[%s273 + $0x64] sm:$0xf]
        %v333 = vld [vmem:[%s273 + $0x68] sm:$0xf]
        %v334 = vld [vmem:[%s273 + $0x6c] sm:$0xf]
        %v335 = vld [vmem:[%s273 + $0x70] sm:$0xf]
        %v336 = vld [vmem:[%s273 + $0x74] sm:$0xf]
        %v337 = vld [vmem:[%s273 + $0x78] sm:$0xf]
        %v338 = vld [vmem:[%s273 + $0x7c] sm:$0xf]
        %v339 = vld [vmem:[%s273 + $0x80] sm:$0xf]
        %v340 = vld [vmem:[%s273 + $0x84] sm:$0xf]
        %v341 = vld [vmem:[%s273 + $0x88] sm:$0xf]
        %v342 = vld [vmem:[%s273 + $0x8c] sm:$0xf]
        %v343 = vld [vmem:[%s273 + $0x90] sm:$0xf]
        %v344 = vld [vmem:[%s273 + $0x94] sm:$0xf]
        %v345 = vld [vmem:[%s273 + $0x98] sm:$0xf]
        %v346 = vld [vmem:[%s273 + $0x9c] sm:$0xf]
        %v347 = vld [vmem:[%s273 + $0xa0] sm:$0xf]
        %v348 = vld [vmem:[%s273 + $0xa4] sm:$0xf]
        %v349 = vld [vmem:[%s273 + $0xa8] sm:$0xf]
        %v350 = vld [vmem:[%s273 + $0xac] sm:$0xf]
        %v351 = vld [vmem:[%s273 + $0xb0] sm:$0xf]
        %v352 = vld [vmem:[%s273 + $0xb4] sm:$0xf]
        %v353 = vld [vmem:[%s273 + $0xb8] sm:$0xf]
        %v354 = vld [vmem:[%s273 + $0xbc] sm:$0xf]
        %v355 = vld [vmem:[%s273 + $0xc0] sm:$0xf]
        %v356 = vld [vmem:[%s273 + $0xc4] sm:$0xf]
        %v357 = vld [vmem:[%s273 + $0xc8] sm:$0xf]
        %v358 = vld [vmem:[%s273 + $0xcc] sm:$0xf]
        %v359 = vld [vmem:[%s273 + $0xd0] sm:$0xf]
        %v360 = vld [vmem:[%s273 + $0xd4] sm:$0xf]
        %v361 = vld [vmem:[%s273 + $0xd8] sm:$0xf]
        %v362 = vld [vmem:[%s273 + $0xdc] sm:$0xf]
        %v363 = vld [vmem:[%s273 + $0xe0] sm:$0xf]
        %v364 = vld [vmem:[%s273 + $0xe4] sm:$0xf]
        %v365 = vld [vmem:[%s273 + $0xe8] sm:$0xf]
        %v366 = vld [vmem:[%s273 + $0xec] sm:$0xf]
        %v367 = vld [vmem:[%s273 + $0xf0] sm:$0xf]
        %v368 = vld [vmem:[%s273 + $0xf4] sm:$0xf]
        %v369 = vld [vmem:[%s273 + $0xf8] sm:$0xf]
        %v370 = vld [vmem:[%s273 + $0xfc] sm:$0xf]
        %v379 = vunpack.c.l.b16 %v299
        %v380 = vunpack.c.h.b16 %v299
        %v381 = vunpack.c.l.b16 %v300
        %v382 = vunpack.c.h.b16 %v300
        %v383 = vunpack.c.l.b16 %v301
        %v384 = vunpack.c.h.b16 %v301
        %v385 = vunpack.c.l.b16 %v302
        %v386 = vunpack.c.h.b16 %v302
        %v387 = vunpack.c.l.b16 %v303
        %v388 = vunpack.c.h.b16 %v303
        %v389 = vunpack.c.l.b16 %v304
        %v390 = vunpack.c.h.b16 %v304
        %v391 = vunpack.c.l.b16 %v305
        %v392 = vunpack.c.h.b16 %v305
        %v393 = vunpack.c.l.b16 %v306
        %v394 = vunpack.c.h.b16 %v306
        %v395 = vpack.c.b16 %v383, %v379
        %v396 = vpack.c.b16 %v384, %v380
        %v397 = vpack.c.b16 %v385, %v381
        %v398 = vpack.c.b16 %v386, %v382
        %v399 = vpack.c.b16 %v391, %v387
        %v400 = vpack.c.b16 %v392, %v388
        %v401 = vpack.c.b16 %v393, %v389
        %v402 = vpack.c.b16 %v394, %v390
        %v475 = vunpack.c.l.b16 %v307
        %v476 = vunpack.c.l.b16 %v308
        %v477 = vunpack.c.l.b16 %v309
        %v478 = vunpack.c.l.b16 %v310
        %v479 = vunpack.c.l.b16 %v311
        %v480 = vunpack.c.l.b16 %v312
        %v481 = vunpack.c.l.b16 %v313
        %v482 = vunpack.c.l.b16 %v314
        %v483 = vunpack.c.l.b16 %v315
        %v484 = vunpack.c.l.b16 %v316
        %v485 = vunpack.c.l.b16 %v317
        %v486 = vunpack.c.l.b16 %v318
        %v487 = vunpack.c.l.b16 %v319
        %v488 = vunpack.c.l.b16 %v320
        %v489 = vunpack.c.l.b16 %v321
        %v490 = vunpack.c.l.b16 %v322
        %v491 = vunpack.c.l.b16 %v323
        %v492 = vunpack.c.l.b16 %v324
        %v493 = vunpack.c.l.b16 %v325
        %v494 = vunpack.c.l.b16 %v326
        %v495 = vunpack.c.l.b16 %v327
        %v496 = vunpack.c.l.b16 %v328
        %v497 = vunpack.c.l.b16 %v329
        %v498 = vunpack.c.l.b16 %v330
        %v499 = vunpack.c.l.b16 %v331
        %v500 = vunpack.c.l.b16 %v332
        %v501 = vunpack.c.l.b16 %v333
        %v502 = vunpack.c.l.b16 %v334
        %v503 = vunpack.c.l.b16 %v335
        %v504 = vunpack.c.l.b16 %v336
        %v505 = vunpack.c.l.b16 %v337
        %v506 = vunpack.c.l.b16 %v338
        %v507 = vunpack.c.l.b16 %v339
        %v508 = vunpack.c.l.b16 %v340
        %v509 = vunpack.c.l.b16 %v341
        %v510 = vunpack.c.l.b16 %v342
        %v511 = vunpack.c.l.b16 %v343
        %v512 = vunpack.c.l.b16 %v344
        %v513 = vunpack.c.l.b16 %v345
        %v514 = vunpack.c.l.b16 %v346
        %v515 = vunpack.c.l.b16 %v347
        %v516 = vunpack.c.l.b16 %v348
        %v517 = vunpack.c.l.b16 %v349
        %v518 = vunpack.c.l.b16 %v350
        %v519 = vunpack.c.l.b16 %v351
        %v520 = vunpack.c.l.b16 %v352
        %v521 = vunpack.c.l.b16 %v353
        %v522 = vunpack.c.l.b16 %v354
        %v523 = vunpack.c.l.b16 %v355
        %v524 = vunpack.c.l.b16 %v356
        %v525 = vunpack.c.l.b16 %v357
        %v526 = vunpack.c.l.b16 %v358
        %v527 = vunpack.c.l.b16 %v359
        %v528 = vunpack.c.l.b16 %v360
        %v529 = vunpack.c.l.b16 %v361
        %v530 = vunpack.c.l.b16 %v362
        %v531 = vunpack.c.l.b16 %v363
        %v532 = vunpack.c.l.b16 %v364
        %v533 = vunpack.c.l.b16 %v365
        %v534 = vunpack.c.l.b16 %v366
        %v535 = vunpack.c.l.b16 %v367
        %v536 = vunpack.c.l.b16 %v368
        %v537 = vunpack.c.l.b16 %v369
        %v538 = vunpack.c.l.b16 %v370
        %v539 = vpack.c.b16 %v476, %v475
        %v540 = vpack.c.b16 %v478, %v477
        %v541 = vpack.c.b16 %v480, %v479
        %v542 = vpack.c.b16 %v482, %v481
        %v543 = vpack.c.b16 %v484, %v483
        %v544 = vpack.c.b16 %v486, %v485
        %v545 = vpack.c.b16 %v488, %v487
        %v546 = vpack.c.b16 %v490, %v489
        %v547 = vpack.c.b16 %v492, %v491
        %v548 = vpack.c.b16 %v494, %v493
        %v549 = vpack.c.b16 %v496, %v495
        %v550 = vpack.c.b16 %v498, %v497
        %v551 = vpack.c.b16 %v500, %v499
        %v552 = vpack.c.b16 %v502, %v501
        %v553 = vpack.c.b16 %v504, %v503
        %v554 = vpack.c.b16 %v506, %v505
        %v555 = vpack.c.b16 %v508, %v507
        %v556 = vpack.c.b16 %v510, %v509
        %v557 = vpack.c.b16 %v512, %v511
        %v558 = vpack.c.b16 %v514, %v513
        %v559 = vpack.c.b16 %v516, %v515
        %v560 = vpack.c.b16 %v518, %v517
        %v561 = vpack.c.b16 %v520, %v519
        %v562 = vpack.c.b16 %v522, %v521
        %v563 = vpack.c.b16 %v524, %v523
        %v564 = vpack.c.b16 %v526, %v525
        %v565 = vpack.c.b16 %v528, %v527
        %v566 = vpack.c.b16 %v530, %v529
        %v567 = vpack.c.b16 %v532, %v531
        %v568 = vpack.c.b16 %v534, %v533
        %v569 = vpack.c.b16 %v536, %v535
        %v570 = vpack.c.b16 %v538, %v537
        %603 = vmatpush.bf16.msra.mxu0 %v546
        %604 = vmatpush.bf16.msra.mxu0 %v545
        %605 = vmatpush.bf16.msra.mxu0 %v544
        %606 = vmatpush.bf16.msra.mxu0 %v543
        %607 = vmatpush.bf16.msra.mxu0 %v542
        %608 = vmatpush.bf16.msra.mxu0 %v541
        %609 = vmatpush.bf16.msra.mxu0 %v540
        %610 = vmatpush.bf16.msra.mxu0 %v539
        %611 = vmatmul.bf16.gmra.mxu0 %v395
        %v612 = vpop.f32.mrf.mxu0
        %v613 = vadd.f32 0.0, %v612
        %v614 = vpop.f32.mrf.mxu0
        %v615 = vadd.f32 0.0, %v614
        %616 = vmatmul.bf16.gmra.mxu0 %v399
        %v617 = vpop.f32.mrf.mxu0
        %v618 = vadd.f32 0.0, %v617
        %v619 = vpop.f32.mrf.mxu0
        %v620 = vadd.f32 0.0, %v619
        %621 = vdwg.mxu0
        %622 = vmatpush.bf16.msra.mxu0 %v554
        %623 = vmatpush.bf16.msra.mxu0 %v553
        %624 = vmatpush.bf16.msra.mxu0 %v552
        %625 = vmatpush.bf16.msra.mxu0 %v551
        %626 = vmatpush.bf16.msra.mxu0 %v550
        %627 = vmatpush.bf16.msra.mxu0 %v549
        %628 = vmatpush.bf16.msra.mxu0 %v548
        %629 = vmatpush.bf16.msra.mxu0 %v547
        %630 = vmatmul.bf16.gmra.mxu0 %v396
        %v631 = vpop.f32.mrf.mxu0
        %v632 = vadd.f32 %v613, %v631
        %v633 = vpop.f32.mrf.mxu0
        %v634 = vadd.f32 %v615, %v633
        %635 = vmatmul.bf16.gmra.mxu0 %v400
        %v636 = vpop.f32.mrf.mxu0
        %v637 = vadd.f32 %v618, %v636
        %v638 = vpop.f32.mrf.mxu0
        %v639 = vadd.f32 %v620, %v638
        %640 = vdwg.mxu0
        %641 = vmatpush.bf16.msra.mxu0 %v562
        %642 = vmatpush.bf16.msra.mxu0 %v561
        %643 = vmatpush.bf16.msra.mxu0 %v560
        %644 = vmatpush.bf16.msra.mxu0 %v559
        %645 = vmatpush.bf16.msra.mxu0 %v558
        %646 = vmatpush.bf16.msra.mxu0 %v557
        %647 = vmatpush.bf16.msra.mxu0 %v556
        %648 = vmatpush.bf16.msra.mxu0 %v555
        %649 = vmatmul.bf16.gmra.mxu0 %v397
        %v650 = vpop.f32.mrf.mxu0
        %v651 = vadd.f32 %v632, %v650
        %v652 = vpop.f32.mrf.mxu0
        %v653 = vadd.f32 %v634, %v652
        %654 = vmatmul.bf16.gmra.mxu0 %v401
        %v655 = vpop.f32.mrf.mxu0
        %v656 = vadd.f32 %v637, %v655
        %v657 = vpop.f32.mrf.mxu0
        %v658 = vadd.f32 %v639, %v657
        %659 = vdwg.mxu0
        %660 = vmatpush.bf16.msra.mxu0 %v570
        %661 = vmatpush.bf16.msra.mxu0 %v569
        %662 = vmatpush.bf16.msra.mxu0 %v568
        %663 = vmatpush.bf16.msra.mxu0 %v567
        %664 = vmatpush.bf16.msra.mxu0 %v566
        %665 = vmatpush.bf16.msra.mxu0 %v565
        %666 = vmatpush.bf16.msra.mxu0 %v564
        %667 = vmatpush.bf16.msra.mxu0 %v563
        %668 = vmatmul.bf16.gmra.mxu0 %v398
        %v669 = vpop.f32.mrf.mxu0
        %v670 = vadd.f32 %v651, %v669
        %v671 = vpop.f32.mrf.mxu0
        %v672 = vadd.f32 %v653, %v671
        %673 = vmatmul.bf16.gmra.mxu0 %v402
        %v674 = vpop.f32.mrf.mxu0
        %v675 = vadd.f32 %v656, %v674
        %v676 = vpop.f32.mrf.mxu0
        %v677 = vadd.f32 %v658, %v676
        %678 = vdwg.mxu0
        %v679 = vadd.f32 %v295, %v670
        %v680 = vadd.f32 %v296, %v672
        %v681 = vadd.f32 %v297, %v675
        %v682 = vadd.f32 %v298, %v677
        %683 = vst [vmem:[#allocation2] sm:$0xff] %v679
        %684 = vst [vmem:[#allocation2 + $0x8] sm:$0xff] %v680
        %685 = vst [vmem:[#allocation2 + $0x10] sm:$0xff] %v681
        %686 = vst [vmem:[#allocation2 + $0x18] sm:$0xff] %v682
        %p687 = scmp.eq.s32.totalorder %s21, 1
        // Predicated region
        $region60: #{cvae_forward.7} parent=50 // pred_check
          %p688 = pneg %p687
        $region61: #{cvae_forward.7} parent=50 // pred_check_branch
          %690 = sbr.rel (%p688) target = $region63
        $region62: #{cvae_forward.7} parent=50 // pred_region
          %v691 = vld [vmem:[#allocation2] sm:$0xff]
          %v692 = vld [vmem:[#allocation2 + $0x8] sm:$0xff]
          %v693 = vld [vmem:[#allocation2 + $0x10] sm:$0xff]
          %v694 = vld [vmem:[#allocation2 + $0x18] sm:$0xff]
          %v695 = vld [vmem:[%s277] sm:$0x1]
          %v697 = vperm.slane %v695, 0
          %v699 = vadd.f32 %v691, %v697
          %v700 = vadd.f32 %v692, %v697
          %v701 = vadd.f32 %v693, %v697
          %v702 = vadd.f32 %v694, %v697
          %v703 = vmax.f32 %v699, 0.0
          %v704 = vmax.f32 %v700, 0.0
          %v705 = vmax.f32 %v701, 0.0
          %v706 = vmax.f32 %v702, 0.0
          %707 = vst [vmem:[%s285] sm:$0xff] %v703
          %708 = vst [vmem:[%s285 + $0x8] sm:$0xff] %v704
          %709 = vst [vmem:[%s285 + $0x10] sm:$0xff] %v705
          %710 = vst [vmem:[%s285 + $0x18] sm:$0xff] %v706
        $region63: #{cvae_forward.7} parent=50 // pred_fallthru
          _
        %s711 = smul.u32 4, %s19
        %p712 = scmp.lt.s32.totalorder %s711, 3
        %s713 = scalar_select %p712, %s711, 3
        %p714 = scmp.lt.s32.totalorder %s20, 0
        %s715 = scalar_select %p714, %s20, 0
        %s716 = sadd.s32 %s715, %s713
        %s717 = smul.addr %s716, 8
        %s718 = scalar_lea.vmem %s3, %s717
        // Predicated region
        $region64: #{cvae_forward.7} parent=50 // pred_check
          %p719 = pneg %p135
        $region65: #{cvae_forward.7} parent=50 // pred_check_branch
          %721 = sbr.rel (%p719) target = $region67
        $region66: #{cvae_forward.7} parent=50 // pred_region
          %s722 = smul.u32 4, %s19
        $region67: #{cvae_forward.7} parent=50 // pred_fallthru
          _
        // Predicated region
        $region68: #{cvae_forward.7} parent=50 // pred_check
          %p723 = pneg %p135
        $region69: #{cvae_forward.7} parent=50 // pred_check_branch
          %725 = sbr.rel (%p723) target = $region71
        $region70: #{cvae_forward.7} parent=50 // pred_region
          %s726 = smul.u32 4, %s19
          %p727 = scmp.lt.s32.totalorder %s726, 3
          %s728 = scalar_select %p727, %s726, 3
          %p729 = scmp.lt.s32.totalorder %s20, 0
          %s730 = scalar_select %p729, %s20, 0
          %s731 = sadd.s32 %s730, %s728
          %s732 = smul.addr %s731, 8
          %s733 = scalar_lea.vmem %s3, %s732
        $region71: #{cvae_forward.7} parent=50 // pred_fallthru
          _
      $region51: #{cvae_forward.7} parent=5 // pred_fallthru
        _
      %p734 = scmp.le.s32.totalorder 2, %s9
      // Predicated region
      $region72: #{cvae_forward.7} parent=5 // pred_check
        %p735 = pneg %p734
      $region73: #{cvae_forward.7} parent=5 // pred_check_branch
        %737 = sbr.rel (%p735) target = $region75
      $region74: #{cvae_forward.7} parent=5 // pred_region
        %s738 = ssub.s32 %s9, 2
      $region75: #{cvae_forward.7} parent=5 // pred_fallthru
        _
    $region6: #{cvae_forward.7} parent=1 // loop_footer
      %s13 = sadd.s32 1, %s9
    $region7: #{cvae_forward.7} parent=1 // loop_footer_branch
      %8 = sbr.rel target = $region3
    $region8: #{cvae_forward.7} parent=1 // loop_exit
      _

// kernel: cvae_forward.8
$region0: #{cvae_forward.8}
  #allocation0 [shape = 'u32[]', space=smem, size = 0x4, offset = 0x4, fixed_abs, tag = 'smem constant byte address 0x4 - core index']
  #allocation1 [shape = 'u32[72,128]{1,0:T(1,128)}', space=vmem, size = 0x9000, scoped, tag = 'internal scratch']
  #allocation2 [shape = 'f32[8,256]{1,0:T(8,128)}', space=vmem, size = 0x2000, scoped, tag = 'scratch operand']
  %s0 = inlined_call_operand.vmem [shape: bf16[8,2048], index: 0, kind: input, shape index: {}]
  %s1 = inlined_call_operand.hbm [shape: bf16[2048,256], index: 1, kind: input, shape index: {}]
  %s2 = inlined_call_operand.vmem [shape: f32[1,256], index: 2, kind: input, shape index: {}]
  %s3 = inlined_call_operand.vmem [shape: f32[8,128], index: 3, kind: input, shape index: {}]
  %s4 = inlined_call_operand.vmem [shape: f32[8,128], index: 4, kind: output, shape index: {0}]
  %s5 = inlined_call_operand.vmem [shape: f32[8,128], index: 5, kind: output, shape index: {1}]
  %s6 = inlined_call_operand.vmem [shape: f32[8,128], index: 6, kind: output, shape index: {2}]
  %7 = xla_tuple %s4, %s5, %s6
  %s8 = sld [smem:[#allocation0]]
  $region77: #{cvae_forward.8} parent=0
    _
  %s10 = ssub.s32 1, %s8
  %s11 = scalar_select 0, %s10, %s8
  $region1: #{cvae_forward.8} parent=0
    #allocation3 [shape = 'u8[524288]{0}', space=vmem, size = 0x80000, scoped, tag = 'input window, operand 1']
    #allocation4 [shape = 's32[2]{0}', space=sflag, size = 0x8, scoped, tag = 'scoped memory for cvae_forward.8']
    %12 = vsyncpa [#allocation4], 0
    %s13 = scalar_lea.sflag [#allocation4], 1
    %14 = vsyncpa %s13, 0
    loop: start=0, step=1, limit=6
    $region2: #{cvae_forward.8} parent=1 // loop_pre_header
      _
    $region3: #{cvae_forward.8} parent=1 // loop_header
      %s16 = sphi 0, %s20
      %p17 = scmp.ge.s32.totalorder %s16, 6
      %s26 = sphi 0, %s28
      %s29 = sphi 0, %s26
      %s30 = sphi 0, %s29
      %s46 = sphi 0, %s30
      %s52 = sphi 0, %s54
      %s55 = sphi 0, %s52
      %s56 = sphi 0, %s55
      %s72 = sphi 0, %s56
      %s76 = sphi 0, %s76
      %s78 = sphi 0, %s76
      %s79 = sphi 0, %s78
      %s93 = sphi 0, %s79
      %s97 = sphi 0, %s97
      %s99 = sphi 0, %s97
      %s100 = sphi 0, %s99
      %s114 = sphi 0, %s100
      %s118 = sphi 0, %s118
      %s120 = sphi 0, %s118
      %s121 = sphi 0, %s120
      %s135 = sphi 0, %s121
      %s139 = sphi 0, %s139
      %s141 = sphi 0, %s139
      %s142 = sphi 0, %s141
      %s156 = sphi 0, %s142
      %s160 = sphi 0, %s160
      %s162 = sphi 0, %s160
      %s163 = sphi 0, %s162
      %s177 = sphi 0, %s163
    $region4: #{cvae_forward.8} parent=1 // loop_header_branch
      %19 = sbr.rel (%p17) target = $region8
    $region5: #{cvae_forward.8} parent=1 // loop_body
      %s21 = ssub.s32 %s16, 1
      %s22 = ssub.s32 %s16, 2
      %s23 = sadd.s32 %s16, 1
      %s24 = ssub.s32 %s16, %s23
      %p25 = scmp.eq.s32.totalorder %s24, 0
      %s27 = sadd.s32 %s26, 1
      %s28 = scalar_select %p25, %s26, %s27
      %p31 = pneg %p25
      %p32 = scmp.eq.s32.totalorder %s16, 3
      %p33 = por %p31, %p32
      %p34 = scmp.ne.s32.totalorder %s26, %s29
      %p35 = scmp.eq.s32.totalorder %s16, 0
      %p36 = por %p34, %p35
      %p37 = scmp.ne.s32.totalorder %s26, %s29
      %p38 = scmp.eq.s32.totalorder %s21, 3
      %p39 = por %p37, %p38
      %p40 = scmp.ne.s32.totalorder %s29, %s30
      %p41 = scmp.eq.s32.totalorder %s21, 0
      %p42 = por %p40, %p41
      %p43 = scmp.ne.s32.totalorder %s29, %s30
      %p44 = scmp.eq.s32.totalorder %s22, 3
      %p45 = por %p43, %p44
      %p47 = scmp.ne.s32.totalorder %s30, %s46
      %p48 = scmp.eq.s32.totalorder %s22, 0
      %p49 = por %p47, %p48
      %s50 = ssub.s32 %s16, %s23
      %p51 = scmp.eq.s32.totalorder %s50, 0
      %s53 = sadd.s32 %s52, 1
      %s54 = scalar_select %p51, %s52, %s53
      %p57 = pneg %p51
      %p58 = scmp.eq.s32.totalorder %s16, 3
      %p59 = por %p57, %p58
      %p60 = scmp.ne.s32.totalorder %s52, %s55
      %p61 = scmp.eq.s32.totalorder %s16, 0
      %p62 = por %p60, %p61
      %p63 = scmp.ne.s32.totalorder %s52, %s55
      %p64 = scmp.eq.s32.totalorder %s21, 3
      %p65 = por %p63, %p64
      %p66 = scmp.ne.s32.totalorder %s55, %s56
      %p67 = scmp.eq.s32.totalorder %s21, 0
      %p68 = por %p66, %p67
      %p69 = scmp.ne.s32.totalorder %s55, %s56
      %p70 = scmp.eq.s32.totalorder %s22, 3
      %p71 = por %p69, %p70
      %p73 = scmp.ne.s32.totalorder %s56, %s72
      %p74 = scmp.eq.s32.totalorder %s22, 0
      %p75 = por %p73, %p74
      %s77 = sadd.s32 %s76, 1
      %p80 = scmp.eq.s32.totalorder %s16, 3
      %p81 = scmp.ne.s32.totalorder %s76, %s78
      %p82 = scmp.eq.s32.totalorder %s16, 0
      %p83 = por %p81, %p82
      %p84 = scmp.ne.s32.totalorder %s76, %s78
      %p85 = scmp.eq.s32.totalorder %s21, 3
      %p86 = por %p84, %p85
      %p87 = scmp.ne.s32.totalorder %s78, %s79
      %p88 = scmp.eq.s32.totalorder %s21, 0
      %p89 = por %p87, %p88
      %p90 = scmp.ne.s32.totalorder %s78, %s79
      %p91 = scmp.eq.s32.totalorder %s22, 3
      %p92 = por %p90, %p91
      %p94 = scmp.ne.s32.totalorder %s79, %s93
      %p95 = scmp.eq.s32.totalorder %s22, 0
      %p96 = por %p94, %p95
      %s98 = sadd.s32 %s97, 1
      %p101 = scmp.eq.s32.totalorder %s16, 3
      %p102 = scmp.ne.s32.totalorder %s97, %s99
      %p103 = scmp.eq.s32.totalorder %s16, 0
      %p104 = por %p102, %p103
      %p105 = scmp.ne.s32.totalorder %s97, %s99
      %p106 = scmp.eq.s32.totalorder %s21, 3
      %p107 = por %p105, %p106
      %p108 = scmp.ne.s32.totalorder %s99, %s100
      %p109 = scmp.eq.s32.totalorder %s21, 0
      %p110 = por %p108, %p109
      %p111 = scmp.ne.s32.totalorder %s99, %s100
      %p112 = scmp.eq.s32.totalorder %s22, 3
      %p113 = por %p111, %p112
      %p115 = scmp.ne.s32.totalorder %s100, %s114
      %p116 = scmp.eq.s32.totalorder %s22, 0
      %p117 = por %p115, %p116
      %s119 = sadd.s32 %s118, 1
      %p122 = scmp.eq.s32.totalorder %s16, 3
      %p123 = scmp.ne.s32.totalorder %s118, %s120
      %p124 = scmp.eq.s32.totalorder %s16, 0
      %p125 = por %p123, %p124
      %p126 = scmp.ne.s32.totalorder %s118, %s120
      %p127 = scmp.eq.s32.totalorder %s21, 3
      %p128 = por %p126, %p127
      %p129 = scmp.ne.s32.totalorder %s120, %s121
      %p130 = scmp.eq.s32.totalorder %s21, 0
      %p131 = por %p129, %p130
      %p132 = scmp.ne.s32.totalorder %s120, %s121
      %p133 = scmp.eq.s32.totalorder %s22, 3
      %p134 = por %p132, %p133
      %p136 = scmp.ne.s32.totalorder %s121, %s135
      %p137 = scmp.eq.s32.totalorder %s22, 0
      %p138 = por %p136, %p137
      %s140 = sadd.s32 %s139, 1
      %p143 = scmp.eq.s32.totalorder %s16, 3
      %p144 = scmp.ne.s32.totalorder %s139, %s141
      %p145 = scmp.eq.s32.totalorder %s16, 0
      %p146 = por %p144, %p145
      %p147 = scmp.ne.s32.totalorder %s139, %s141
      %p148 = scmp.eq.s32.totalorder %s21, 3
      %p149 = por %p147, %p148
      %p150 = scmp.ne.s32.totalorder %s141, %s142
      %p151 = scmp.eq.s32.totalorder %s21, 0
      %p152 = por %p150, %p151
      %p153 = scmp.ne.s32.totalorder %s141, %s142
      %p154 = scmp.eq.s32.totalorder %s22, 3
      %p155 = por %p153, %p154
      %p157 = scmp.ne.s32.totalorder %s142, %s156
      %p158 = scmp.eq.s32.totalorder %s22, 0
      %p159 = por %p157, %p158
      %s161 = sadd.s32 %s160, 1
      %p164 = scmp.eq.s32.totalorder %s16, 3
      %p165 = scmp.ne.s32.totalorder %s160, %s162
      %p166 = scmp.eq.s32.totalorder %s16, 0
      %p167 = por %p165, %p166
      %p168 = scmp.ne.s32.totalorder %s160, %s162
      %p169 = scmp.eq.s32.totalorder %s21, 3
      %p170 = por %p168, %p169
      %p171 = scmp.ne.s32.totalorder %s162, %s163
      %p172 = scmp.eq.s32.totalorder %s21, 0
      %p173 = por %p171, %p172
      %p174 = scmp.ne.s32.totalorder %s162, %s163
      %p175 = scmp.eq.s32.totalorder %s22, 3
      %p176 = por %p174, %p175
      %p178 = scmp.ne.s32.totalorder %s163, %s177
      %p179 = scmp.eq.s32.totalorder %s22, 0
      %p180 = por %p178, %p179
      %p181 = scmp.le.s32.totalorder 1, %s16
      %p182 = scmp.lt.s32.totalorder %s16, 5
      %p183 = pnand %p181, %p182
      %p184 = pneg %p183
      // Predicated region
      $region9: #{cvae_forward.8} parent=5 // pred_check
        _
      $region10: #{cvae_forward.8} parent=5 // pred_check_branch
        %186 = sbr.rel (%p183) target = $region12
      $region11: #{cvae_forward.8} parent=5 // pred_region
        %s187 = ssub.s32 %s16, 1
        // Predicated region
        $region13: #{cvae_forward.8} parent=11 // pred_check
          %p188 = pneg %p89
        $region14: #{cvae_forward.8} parent=11 // pred_check_branch
          %190 = sbr.rel (%p188) target = $region16
        $region15: #{cvae_forward.8} parent=11 // pred_region
          _
        $region16: #{cvae_forward.8} parent=11 // pred_fallthru
          _
        // Predicated region
        $region17: #{cvae_forward.8} parent=11 // pred_check
          %p191 = pneg %p110
        $region18: #{cvae_forward.8} parent=11 // pred_check_branch
          %193 = sbr.rel (%p191) target = $region20
        $region19: #{cvae_forward.8} parent=11 // pred_region
          _
        $region20: #{cvae_forward.8} parent=11 // pred_fallthru
          _
      $region12: #{cvae_forward.8} parent=5 // pred_fallthru
        _
      %p194 = scmp.lt.s32.totalorder %s16, 4
      // Predicated region
      $region21: #{cvae_forward.8} parent=5 // pred_check
        %p195 = pneg %p194
      $region22: #{cvae_forward.8} parent=5 // pred_check_branch
        %197 = sbr.rel (%p195) target = $region24
      $region23: #{cvae_forward.8} parent=5 // pred_region
        // Predicated region
        $region25: #{cvae_forward.8} parent=23 // pred_check
          %p198 = pneg %p36
        $region26: #{cvae_forward.8} parent=23 // pred_check_branch
          %200 = sbr.rel (%p198) target = $region28
        $region27: #{cvae_forward.8} parent=23 // pred_region
          %s201 = smul.u32 4, %s16
          %p202 = scmp.lt.s32.totalorder %s201, 15
          %s203 = scalar_select %p202, %s201, 15
          %s204 = smul.addr %s203, 4
          %s205 = scalar_lea.vmem %s0, %s204
          %s206 = smul.u32 4, %s16
        $region28: #{cvae_forward.8} parent=23 // pred_fallthru
          _
        // Predicated region
        $region29: #{cvae_forward.8} parent=23 // pred_check
          %p207 = pneg %p62
        $region30: #{cvae_forward.8} parent=23 // pred_check_branch
          %209 = sbr.rel (%p207) target = $region32
        $region31: #{cvae_forward.8} parent=23 // pred_region
          %s210 = sand.u32 %s52, 1
          %s211 = scalar_lea.sflag [#allocation4], %s210
          %s212 = sand.u32 %s52, 1
          %s213 = smul.addr %s212, 512
          %s214 = scalar_lea.vmem [#allocation3], %s213
          %s215 = smul.u32 64, %s16
          %217 = vsyncadd %s211, 0
          %s218 = smul.addr %s215, 2
          %s219 = smul.addr %s218, 4
          %s220 = scalar_lea.hbm %s1, %s219
          %s221 = sshll.u32 %s220, 4
          %s222 = int_to_ptr.hbm [resolvable:$true] %s221
          %s223 = sshll.u32 %s214, 4
          %s224 = int_to_ptr.vmem [resolvable:$true] %s223
          %229 = dma.hbm_to_vmem [thread:$0]  %s222, 8192, %s224, %s211, 128, 128, 8
        $region32: #{cvae_forward.8} parent=23 // pred_fallthru
          _
      $region24: #{cvae_forward.8} parent=5 // pred_fallthru
        _
      %p230 = scmp.le.s32.totalorder 1, %s16
      %p231 = scmp.lt.s32.totalorder %s16, 5
      %p232 = pnand %p230, %p231
      %p233 = pneg %p232
      // Predicated region
      $region33: #{cvae_forward.8} parent=5 // pred_check
        _
      $region34: #{cvae_forward.8} parent=5 // pred_check_branch
        %235 = sbr.rel (%p232) target = $region36
      $region35: #{cvae_forward.8} parent=5 // pred_region
        %s236 = ssub.s32 %s16, 1
        %s237 = sand.u32 %s55, 1
        %s238 = scalar_lea.sflag [#allocation4], %s237
        %s239 = sand.u32 %s55, 1
        %s240 = smul.addr %s239, 512
        %s241 = scalar_lea.vmem [#allocation3], %s240
        // Predicated region
        $region37: #{cvae_forward.8} parent=35 // pred_check
          %p242 = pneg %p68
        $region38: #{cvae_forward.8} parent=35 // pred_check_branch
          %244 = sbr.rel (%p242) target = $region40
        $region39: #{cvae_forward.8} parent=35 // pred_region
          %246 = dma.done %s238, 8192
        $region40: #{cvae_forward.8} parent=35 // pred_fallthru
          _
        %s247 = smul.u32 4, %s21
        %p248 = scmp.lt.s32.totalorder %s247, 15
        %s249 = scalar_select %p248, %s247, 15
        %s250 = smul.addr %s249, 4
        %s251 = scalar_lea.vmem %s0, %s250
        %p252 = pneg %p42
        %p253 = pneg %p39
        %s254 = sand.u32 %s55, 1
        %s255 = scalar_lea.sflag [#allocation4], %s254
        %s256 = sand.u32 %s55, 1
        %s257 = smul.addr %s256, 512
        %s258 = scalar_lea.vmem [#allocation3], %s257
        %p259 = pneg %p68
        %p260 = pneg %p65
        %p261 = pneg %p89
        %p262 = pneg %p86
        %p263 = pneg %p110
        %p264 = pneg %p107
        %p265 = pneg %p131
        %p266 = pneg %p128
        %p267 = pneg %p152
        %p268 = pneg %p149
        %p269 = pneg %p173
        %p270 = pneg %p170
        %s271 = smul.u32 4, %s21
        %p272 = scmp.lt.s32.totalorder %s271, 15
        %s273 = scalar_select %p272, %s271, 15
        %s274 = smul.addr %s273, 4
        %s275 = scalar_lea.vmem %s0, %s274
        %s276 = smul.u32 4, %s21
        %s277 = smul.u32 64, %s21
        %p278 = scmp.eq.s32.totalorder %s21, 0
        // Predicated region
        $region41: #{cvae_forward.8} parent=35 // pred_check
          %p279 = pneg %p278
        $region42: #{cvae_forward.8} parent=35 // pred_check_branch
          %281 = sbr.rel (%p279) target = $region44
        $region43: #{cvae_forward.8} parent=35 // pred_region
          %282 = vst [vmem:[#allocation2] sm:$0xff] 0.0
          %283 = vst [vmem:[#allocation2 + $0x8] sm:$0xff] 0.0
        $region44: #{cvae_forward.8} parent=35 // pred_fallthru
          _
        %v284 = vld [vmem:[#allocation2] sm:$0xff]
        %v285 = vld [vmem:[#allocation2 + $0x8] sm:$0xff]
        %v286 = vld [vmem:[%s275] sm:$0xff]
        %v287 = vld [vmem:[%s275 + $0x8] sm:$0xff]
        %v288 = vld [vmem:[%s241] sm:$0xff]
        %v289 = vld [vmem:[%s241 + $0x8] sm:$0xff]
        %v290 = vld [vmem:[%s241 + $0x10] sm:$0xff]
        %v291 = vld [vmem:[%s241 + $0x18] sm:$0xff]
        %v292 = vld [vmem:[%s241 + $0x20] sm:$0xff]
        %v293 = vld [vmem:[%s241 + $0x28] sm:$0xff]
        %v294 = vld [vmem:[%s241 + $0x30] sm:$0xff]
        %v295 = vld [vmem:[%s241 + $0x38] sm:$0xff]
        %v296 = vld [vmem:[%s241 + $0x40] sm:$0xff]
        %v297 = vld [vmem:[%s241 + $0x48] sm:$0xff]
        %v298 = vld [vmem:[%s241 + $0x50] sm:$0xff]
        %v299 = vld [vmem:[%s241 + $0x58] sm:$0xff]
        %v300 = vld [vmem:[%s241 + $0x60] sm:$0xff]
        %v301 = vld [vmem:[%s241 + $0x68] sm:$0xff]
        %v302 = vld [vmem:[%s241 + $0x70] sm:$0xff]
        %v303 = vld [vmem:[%s241 + $0x78] sm:$0xff]
        %v304 = vld [vmem:[%s241 + $0x80] sm:$0xff]
        %v305 = vld [vmem:[%s241 + $0x88] sm:$0xff]
        %v306 = vld [vmem:[%s241 + $0x90] sm:$0xff]
        %v307 = vld [vmem:[%s241 + $0x98] sm:$0xff]
        %v308 = vld [vmem:[%s241 + $0xa0] sm:$0xff]
        %v309 = vld [vmem:[%s241 + $0xa8] sm:$0xff]
        %v310 = vld [vmem:[%s241 + $0xb0] sm:$0xff]
        %v311 = vld [vmem:[%s241 + $0xb8] sm:$0xff]
        %v312 = vld [vmem:[%s241 + $0xc0] sm:$0xff]
        %v313 = vld [vmem:[%s241 + $0xc8] sm:$0xff]
        %v314 = vld [vmem:[%s241 + $0xd0] sm:$0xff]
        %v315 = vld [vmem:[%s241 + $0xd8] sm:$0xff]
        %v316 = vld [vmem:[%s241 + $0xe0] sm:$0xff]
        %v317 = vld [vmem:[%s241 + $0xe8] sm:$0xff]
        %v318 = vld [vmem:[%s241 + $0xf0] sm:$0xff]
        %v319 = vld [vmem:[%s241 + $0xf8] sm:$0xff]
        %v320 = vld [vmem:[%s241 + $0x100] sm:$0xff]
        %v321 = vld [vmem:[%s241 + $0x108] sm:$0xff]
        %v322 = vld [vmem:[%s241 + $0x110] sm:$0xff]
        %v323 = vld [vmem:[%s241 + $0x118] sm:$0xff]
        %v324 = vld [vmem:[%s241 + $0x120] sm:$0xff]
        %v325 = vld [vmem:[%s241 + $0x128] sm:$0xff]
        %v326 = vld [vmem:[%s241 + $0x130] sm:$0xff]
        %v327 = vld [vmem:[%s241 + $0x138] sm:$0xff]
        %v328 = vld [vmem:[%s241 + $0x140] sm:$0xff]
        %v329 = vld [vmem:[%s241 + $0x148] sm:$0xff]
        %v330 = vld [vmem:[%s241 + $0x150] sm:$0xff]
        %v331 = vld [vmem:[%s241 + $0x158] sm:$0xff]
        %v332 = vld [vmem:[%s241 + $0x160] sm:$0xff]
        %v333 = vld [vmem:[%s241 + $0x168] sm:$0xff]
        %v334 = vld [vmem:[%s241 + $0x170] sm:$0xff]
        %v335 = vld [vmem:[%s241 + $0x178] sm:$0xff]
        %v336 = vld [vmem:[%s241 + $0x180] sm:$0xff]
        %v337 = vld [vmem:[%s241 + $0x188] sm:$0xff]
        %v338 = vld [vmem:[%s241 + $0x190] sm:$0xff]
        %v339 = vld [vmem:[%s241 + $0x198] sm:$0xff]
        %v340 = vld [vmem:[%s241 + $0x1a0] sm:$0xff]
        %v341 = vld [vmem:[%s241 + $0x1a8] sm:$0xff]
        %v342 = vld [vmem:[%s241 + $0x1b0] sm:$0xff]
        %v343 = vld [vmem:[%s241 + $0x1b8] sm:$0xff]
        %v344 = vld [vmem:[%s241 + $0x1c0] sm:$0xff]
        %v345 = vld [vmem:[%s241 + $0x1c8] sm:$0xff]
        %v346 = vld [vmem:[%s241 + $0x1d0] sm:$0xff]
        %v347 = vld [vmem:[%s241 + $0x1d8] sm:$0xff]
        %v348 = vld [vmem:[%s241 + $0x1e0] sm:$0xff]
        %v349 = vld [vmem:[%s241 + $0x1e8] sm:$0xff]
        %v350 = vld [vmem:[%s241 + $0x1f0] sm:$0xff]
        %v351 = vld [vmem:[%s241 + $0x1f8] sm:$0xff]
        %v354 = vunpack.c.l.b16 %v286
        %v355 = vunpack.c.h.b16 %v286
        %v356 = vunpack.c.l.b16 %v287
        %v357 = vunpack.c.h.b16 %v287
        %v358 = vpack.c.b16 %v354, %v354
        %v359 = vpack.c.b16 %v355, %v355
        %v360 = vpack.c.b16 %v356, %v356
        %v361 = vpack.c.b16 %v357, %v357
        %v430 = vunpack.c.l.b16 %v288
        %v431 = vunpack.c.h.b16 %v288
        %v432 = vunpack.c.l.b16 %v289
        %v433 = vunpack.c.h.b16 %v289
        %v434 = vunpack.c.l.b16 %v290
        %v435 = vunpack.c.h.b16 %v290
        %v436 = vunpack.c.l.b16 %v291
        %v437 = vunpack.c.h.b16 %v291
        %v438 = vunpack.c.l.b16 %v292
        %v439 = vunpack.c.h.b16 %v292
        %v440 = vunpack.c.l.b16 %v293
        %v441 = vunpack.c.h.b16 %v293
        %v442 = vunpack.c.l.b16 %v294
        %v443 = vunpack.c.h.b16 %v294
        %v444 = vunpack.c.l.b16 %v295
        %v445 = vunpack.c.h.b16 %v295
        %v446 = vunpack.c.l.b16 %v296
        %v447 = vunpack.c.h.b16 %v296
        %v448 = vunpack.c.l.b16 %v297
        %v449 = vunpack.c.h.b16 %v297
        %v450 = vunpack.c.l.b16 %v298
        %v451 = vunpack.c.h.b16 %v298
        %v452 = vunpack.c.l.b16 %v299
        %v453 = vunpack.c.h.b16 %v299
        %v454 = vunpack.c.l.b16 %v300
        %v455 = vunpack.c.h.b16 %v300
        %v456 = vunpack.c.l.b16 %v301
        %v457 = vunpack.c.h.b16 %v301
        %v458 = vunpack.c.l.b16 %v302
        %v459 = vunpack.c.h.b16 %v302
        %v460 = vunpack.c.l.b16 %v303
        %v461 = vunpack.c.h.b16 %v303
        %v462 = vunpack.c.l.b16 %v304
        %v463 = vunpack.c.h.b16 %v304
        %v464 = vunpack.c.l.b16 %v305
        %v465 = vunpack.c.h.b16 %v305
        %v466 = vunpack.c.l.b16 %v306
        %v467 = vunpack.c.h.b16 %v306
        %v468 = vunpack.c.l.b16 %v307
        %v469 = vunpack.c.h.b16 %v307
        %v470 = vunpack.c.l.b16 %v308
        %v471 = vunpack.c.h.b16 %v308
        %v472 = vunpack.c.l.b16 %v309
        %v473 = vunpack.c.h.b16 %v309
        %v474 = vunpack.c.l.b16 %v310
        %v475 = vunpack.c.h.b16 %v310
        %v476 = vunpack.c.l.b16 %v311
        %v477 = vunpack.c.h.b16 %v311
        %v478 = vunpack.c.l.b16 %v312
        %v479 = vunpack.c.h.b16 %v312
        %v480 = vunpack.c.l.b16 %v313
        %v481 = vunpack.c.h.b16 %v313
        %v482 = vunpack.c.l.b16 %v314
        %v483 = vunpack.c.h.b16 %v314
        %v484 = vunpack.c.l.b16 %v315
        %v485 = vunpack.c.h.b16 %v315
        %v486 = vunpack.c.l.b16 %v316
        %v487 = vunpack.c.h.b16 %v316
        %v488 = vunpack.c.l.b16 %v317
        %v489 = vunpack.c.h.b16 %v317
        %v490 = vunpack.c.l.b16 %v318
        %v491 = vunpack.c.h.b16 %v318
        %v492 = vunpack.c.l.b16 %v319
        %v493 = vunpack.c.h.b16 %v319
        %v494 = vunpack.c.l.b16 %v320
        %v495 = vunpack.c.h.b16 %v320
        %v496 = vunpack.c.l.b16 %v321
        %v497 = vunpack.c.h.b16 %v321
        %v498 = vunpack.c.l.b16 %v322
        %v499 = vunpack.c.h.b16 %v322
        %v500 = vunpack.c.l.b16 %v323
        %v501 = vunpack.c.h.b16 %v323
        %v502 = vunpack.c.l.b16 %v324
        %v503 = vunpack.c.h.b16 %v324
        %v504 = vunpack.c.l.b16 %v325
        %v505 = vunpack.c.h.b16 %v325
        %v506 = vunpack.c.l.b16 %v326
        %v507 = vunpack.c.h.b16 %v326
        %v508 = vunpack.c.l.b16 %v327
        %v509 = vunpack.c.h.b16 %v327
        %v510 = vunpack.c.l.b16 %v328
        %v511 = vunpack.c.h.b16 %v328
        %v512 = vunpack.c.l.b16 %v329
        %v513 = vunpack.c.h.b16 %v329
        %v514 = vunpack.c.l.b16 %v330
        %v515 = vunpack.c.h.b16 %v330
        %v516 = vunpack.c.l.b16 %v331
        %v517 = vunpack.c.h.b16 %v331
        %v518 = vunpack.c.l.b16 %v332
        %v519 = vunpack.c.h.b16 %v332
        %v520 = vunpack.c.l.b16 %v333
        %v521 = vunpack.c.h.b16 %v333
        %v522 = vunpack.c.l.b16 %v334
        %v523 = vunpack.c.h.b16 %v334
        %v524 = vunpack.c.l.b16 %v335
        %v525 = vunpack.c.h.b16 %v335
        %v526 = vunpack.c.l.b16 %v336
        %v527 = vunpack.c.h.b16 %v336
        %v528 = vunpack.c.l.b16 %v337
        %v529 = vunpack.c.h.b16 %v337
        %v530 = vunpack.c.l.b16 %v338
        %v531 = vunpack.c.h.b16 %v338
        %v532 = vunpack.c.l.b16 %v339
        %v533 = vunpack.c.h.b16 %v339
        %v534 = vunpack.c.l.b16 %v340
        %v535 = vunpack.c.h.b16 %v340
        %v536 = vunpack.c.l.b16 %v341
        %v537 = vunpack.c.h.b16 %v341
        %v538 = vunpack.c.l.b16 %v342
        %v539 = vunpack.c.h.b16 %v342
        %v540 = vunpack.c.l.b16 %v343
        %v541 = vunpack.c.h.b16 %v343
        %v542 = vunpack.c.l.b16 %v344
        %v543 = vunpack.c.h.b16 %v344
        %v544 = vunpack.c.l.b16 %v345
        %v545 = vunpack.c.h.b16 %v345
        %v546 = vunpack.c.l.b16 %v346
        %v547 = vunpack.c.h.b16 %v346
        %v548 = vunpack.c.l.b16 %v347
        %v549 = vunpack.c.h.b16 %v347
        %v550 = vunpack.c.l.b16 %v348
        %v551 = vunpack.c.h.b16 %v348
        %v552 = vunpack.c.l.b16 %v349
        %v553 = vunpack.c.h.b16 %v349
        %v554 = vunpack.c.l.b16 %v350
        %v555 = vunpack.c.h.b16 %v350
        %v556 = vunpack.c.l.b16 %v351
        %v557 = vunpack.c.h.b16 %v351
        %v558 = vpack.c.b16 %v432, %v430
        %v559 = vpack.c.b16 %v433, %v431
        %v560 = vpack.c.b16 %v436, %v434
        %v561 = vpack.c.b16 %v437, %v435
        %v562 = vpack.c.b16 %v440, %v438
        %v563 = vpack.c.b16 %v441, %v439
        %v564 = vpack.c.b16 %v444, %v442
        %v565 = vpack.c.b16 %v445, %v443
        %v566 = vpack.c.b16 %v448, %v446
        %v567 = vpack.c.b16 %v449, %v447
        %v568 = vpack.c.b16 %v452, %v450
        %v569 = vpack.c.b16 %v453, %v451
        %v570 = vpack.c.b16 %v456, %v454
        %v571 = vpack.c.b16 %v457, %v455
        %v572 = vpack.c.b16 %v460, %v458
        %v573 = vpack.c.b16 %v461, %v459
        %v574 = vpack.c.b16 %v464, %v462
        %v575 = vpack.c.b16 %v465, %v463
        %v576 = vpack.c.b16 %v468, %v466
        %v577 = vpack.c.b16 %v469, %v467
        %v578 = vpack.c.b16 %v472, %v470
        %v579 = vpack.c.b16 %v473, %v471
        %v580 = vpack.c.b16 %v476, %v474
        %v581 = vpack.c.b16 %v477, %v475
        %v582 = vpack.c.b16 %v480, %v478
        %v583 = vpack.c.b16 %v481, %v479
        %v584 = vpack.c.b16 %v484, %v482
        %v585 = vpack.c.b16 %v485, %v483
        %v586 = vpack.c.b16 %v488, %v486
        %v587 = vpack.c.b16 %v489, %v487
        %v588 = vpack.c.b16 %v492, %v490
        %v589 = vpack.c.b16 %v493, %v491
        %v590 = vpack.c.b16 %v496, %v494
        %v591 = vpack.c.b16 %v497, %v495
        %v592 = vpack.c.b16 %v500, %v498
        %v593 = vpack.c.b16 %v501, %v499
        %v594 = vpack.c.b16 %v504, %v502
        %v595 = vpack.c.b16 %v505, %v503
        %v596 = vpack.c.b16 %v508, %v506
        %v597 = vpack.c.b16 %v509, %v507
        %v598 = vpack.c.b16 %v512, %v510
        %v599 = vpack.c.b16 %v513, %v511
        %v600 = vpack.c.b16 %v516, %v514
        %v601 = vpack.c.b16 %v517, %v515
        %v602 = vpack.c.b16 %v520, %v518
        %v603 = vpack.c.b16 %v521, %v519
        %v604 = vpack.c.b16 %v524, %v522
        %v605 = vpack.c.b16 %v525, %v523
        %v606 = vpack.c.b16 %v528, %v526
        %v607 = vpack.c.b16 %v529, %v527
        %v608 = vpack.c.b16 %v532, %v530
        %v609 = vpack.c.b16 %v533, %v531
        %v610 = vpack.c.b16 %v536, %v534
        %v611 = vpack.c.b16 %v537, %v535
        %v612 = vpack.c.b16 %v540, %v538
        %v613 = vpack.c.b16 %v541, %v539
        %v614 = vpack.c.b16 %v544, %v542
        %v615 = vpack.c.b16 %v545, %v543
        %v616 = vpack.c.b16 %v548, %v546
        %v617 = vpack.c.b16 %v549, %v547
        %v618 = vpack.c.b16 %v552, %v550
        %v619 = vpack.c.b16 %v553, %v551
        %v620 = vpack.c.b16 %v556, %v554
        %v621 = vpack.c.b16 %v557, %v555
        %686 = vmatpush.bf16.msra.mxu0 %v572
        %687 = vmatpush.bf16.msra.mxu0 %v570
        %688 = vmatpush.bf16.msra.mxu0 %v568
        %689 = vmatpush.bf16.msra.mxu0 %v566
        %690 = vmatpush.bf16.msra.mxu0 %v564
        %691 = vmatpush.bf16.msra.mxu0 %v562
        %692 = vmatpush.bf16.msra.mxu0 %v560
        %693 = vmatpush.bf16.msra.mxu0 %v558
        %694 = vmatmul.bf16.gmra.mxu0 %v358
        %v695 = vpop.f32.mrf.mxu0
        %v696 = vadd.f32 0.0, %v695
        %v697 = vpop.f32.mrf.mxu0
        %698 = vdwg.mxu0
        %699 = vmatpush.bf16.msra.mxu0 %v588
        %700 = vmatpush.bf16.msra.mxu0 %v586
        %701 = vmatpush.bf16.msra.mxu0 %v584
        %702 = vmatpush.bf16.msra.mxu0 %v582
        %703 = vmatpush.bf16.msra.mxu0 %v580
        %704 = vmatpush.bf16.msra.mxu0 %v578
        %705 = vmatpush.bf16.msra.mxu0 %v576
        %706 = vmatpush.bf16.msra.mxu0 %v574
        %707 = vmatmul.bf16.gmra.mxu0 %v359
        %v708 = vpop.f32.mrf.mxu0
        %v709 = vadd.f32 %v696, %v708
        %v710 = vpop.f32.mrf.mxu0
        %711 = vdwg.mxu0
        %712 = vmatpush.bf16.msra.mxu0 %v604
        %713 = vmatpush.bf16.msra.mxu0 %v602
        %714 = vmatpush.bf16.msra.mxu0 %v600
        %715 = vmatpush.bf16.msra.mxu0 %v598
        %716 = vmatpush.bf16.msra.mxu0 %v596
        %717 = vmatpush.bf16.msra.mxu0 %v594
        %718 = vmatpush.bf16.msra.mxu0 %v592
        %719 = vmatpush.bf16.msra.mxu0 %v590
        %720 = vmatmul.bf16.gmra.mxu0 %v360
        %v721 = vpop.f32.mrf.mxu0
        %v722 = vadd.f32 %v709, %v721
        %v723 = vpop.f32.mrf.mxu0
        %724 = vdwg.mxu0
        %725 = vmatpush.bf16.msra.mxu0 %v620
        %726 = vmatpush.bf16.msra.mxu0 %v618
        %727 = vmatpush.bf16.msra.mxu0 %v616
        %728 = vmatpush.bf16.msra.mxu0 %v614
        %729 = vmatpush.bf16.msra.mxu0 %v612
        %730 = vmatpush.bf16.msra.mxu0 %v610
        %731 = vmatpush.bf16.msra.mxu0 %v608
        %732 = vmatpush.bf16.msra.mxu0 %v606
        %733 = vmatmul.bf16.gmra.mxu0 %v361
        %v734 = vpop.f32.mrf.mxu0
        %v735 = vadd.f32 %v722, %v734
        %v736 = vpop.f32.mrf.mxu0
        %737 = vdwg.mxu0
        %738 = vmatpush.bf16.msra.mxu0 %v573
        %739 = vmatpush.bf16.msra.mxu0 %v571
        %740 = vmatpush.bf16.msra.mxu0 %v569
        %741 = vmatpush.bf16.msra.mxu0 %v567
        %742 = vmatpush.bf16.msra.mxu0 %v565
        %743 = vmatpush.bf16.msra.mxu0 %v563
        %744 = vmatpush.bf16.msra.mxu0 %v561
        %745 = vmatpush.bf16.msra.mxu0 %v559
        %746 = vmatmul.bf16.gmra.mxu0 %v358
        %v747 = vpop.f32.mrf.mxu0
        %v748 = vadd.f32 0.0, %v747
        %v749 = vpop.f32.mrf.mxu0
        %750 = vdwg.mxu0
        %751 = vmatpush.bf16.msra.mxu0 %v589
        %752 = vmatpush.bf16.msra.mxu0 %v587
        %753 = vmatpush.bf16.msra.mxu0 %v585
        %754 = vmatpush.bf16.msra.mxu0 %v583
        %755 = vmatpush.bf16.msra.mxu0 %v581
        %756 = vmatpush.bf16.msra.mxu0 %v579
        %757 = vmatpush.bf16.msra.mxu0 %v577
        %758 = vmatpush.bf16.msra.mxu0 %v575
        %759 = vmatmul.bf16.gmra.mxu0 %v359
        %v760 = vpop.f32.mrf.mxu0
        %v761 = vadd.f32 %v748, %v760
        %v762 = vpop.f32.mrf.mxu0
        %763 = vdwg.mxu0
        %764 = vmatpush.bf16.msra.mxu0 %v605
        %765 = vmatpush.bf16.msra.mxu0 %v603
        %766 = vmatpush.bf16.msra.mxu0 %v601
        %767 = vmatpush.bf16.msra.mxu0 %v599
        %768 = vmatpush.bf16.msra.mxu0 %v597
        %769 = vmatpush.bf16.msra.mxu0 %v595
        %770 = vmatpush.bf16.msra.mxu0 %v593
        %771 = vmatpush.bf16.msra.mxu0 %v591
        %772 = vmatmul.bf16.gmra.mxu0 %v360
        %v773 = vpop.f32.mrf.mxu0
        %v774 = vadd.f32 %v761, %v773
        %v775 = vpop.f32.mrf.mxu0
        %776 = vdwg.mxu0
        %777 = vmatpush.bf16.msra.mxu0 %v621
        %778 = vmatpush.bf16.msra.mxu0 %v619
        %779 = vmatpush.bf16.msra.mxu0 %v617
        %780 = vmatpush.bf16.msra.mxu0 %v615
        %781 = vmatpush.bf16.msra.mxu0 %v613
        %782 = vmatpush.bf16.msra.mxu0 %v611
        %783 = vmatpush.bf16.msra.mxu0 %v609
        %784 = vmatpush.bf16.msra.mxu0 %v607
        %785 = vmatmul.bf16.gmra.mxu0 %v361
        %v786 = vpop.f32.mrf.mxu0
        %v787 = vadd.f32 %v774, %v786
        %v788 = vpop.f32.mrf.mxu0
        %789 = vdwg.mxu0
        %v790 = vadd.f32 %v284, %v735
        %v791 = vadd.f32 %v285, %v787
        %792 = vst [vmem:[#allocation2] sm:$0xff] %v790
        %793 = vst [vmem:[#allocation2 + $0x8] sm:$0xff] %v791
        %p794 = scmp.eq.s32.totalorder %s21, 3
        // Predicated region
        $region45: #{cvae_forward.8} parent=35 // pred_check
          %p795 = pneg %p794
        $region46: #{cvae_forward.8} parent=35 // pred_check_branch
          %797 = sbr.rel (%p795) target = $region48
        $region47: #{cvae_forward.8} parent=35 // pred_region
          %v798 = vld [vmem:[#allocation2] sm:$0xff]
          %v799 = vld [vmem:[#allocation2 + $0x8] sm:$0xff]
          %v800 = vld [vmem:[%s2] sm:$0x3]
          %v802 = vperm.slane %v800, 0
          %v803 = vperm.slane %v800, 1
          %v806 = vadd.f32 %v798, %v802
          %v807 = vadd.f32 %v799, %v803
          %808 = vst [vmem:[%s4] sm:$0xff] %v806
          %809 = vst [vmem:[%s5] sm:$0xff] %v807
          %v810 = vld [vmem:[%s3] sm:$0xff]
          %v811 = vmul.f32 %v807, 0.5
          %v812 = vmul.f32 %v811, 1.442695
          %v813 = vpow.pop %v812
          %v814 = vmul.f32 %v810, %v813
          %v815 = vadd.f32 %v806, %v814
          %816 = vst [vmem:[%s6] sm:$0xff] %v815
        $region48: #{cvae_forward.8} parent=35 // pred_fallthru
          _
        // Predicated region
        $region49: #{cvae_forward.8} parent=35 // pred_check
          %p817 = pneg %p128
        $region50: #{cvae_forward.8} parent=35 // pred_check_branch
          %819 = sbr.rel (%p817) target = $region52
        $region51: #{cvae_forward.8} parent=35 // pred_region
          _
        $region52: #{cvae_forward.8} parent=35 // pred_fallthru
          _
        // Predicated region
        $region53: #{cvae_forward.8} parent=35 // pred_check
          %p820 = pneg %p149
        $region54: #{cvae_forward.8} parent=35 // pred_check_branch
          %822 = sbr.rel (%p820) target = $region56
        $region55: #{cvae_forward.8} parent=35 // pred_region
          _
        $region56: #{cvae_forward.8} parent=35 // pred_fallthru
          _
        // Predicated region
        $region57: #{cvae_forward.8} parent=35 // pred_check
          %p823 = pneg %p170
        $region58: #{cvae_forward.8} parent=35 // pred_check_branch
          %825 = sbr.rel (%p823) target = $region60
        $region59: #{cvae_forward.8} parent=35 // pred_region
          _
        $region60: #{cvae_forward.8} parent=35 // pred_fallthru
          _
        // Predicated region
        $region61: #{cvae_forward.8} parent=35 // pred_check
          %p826 = pneg %p128
        $region62: #{cvae_forward.8} parent=35 // pred_check_branch
          %828 = sbr.rel (%p826) target = $region64
        $region63: #{cvae_forward.8} parent=35 // pred_region
          _
        $region64: #{cvae_forward.8} parent=35 // pred_fallthru
          _
        // Predicated region
        $region65: #{cvae_forward.8} parent=35 // pred_check
          %p829 = pneg %p149
        $region66: #{cvae_forward.8} parent=35 // pred_check_branch
          %831 = sbr.rel (%p829) target = $region68
        $region67: #{cvae_forward.8} parent=35 // pred_region
          _
        $region68: #{cvae_forward.8} parent=35 // pred_fallthru
          _
        // Predicated region
        $region69: #{cvae_forward.8} parent=35 // pred_check
          %p832 = pneg %p170
        $region70: #{cvae_forward.8} parent=35 // pred_check_branch
          %834 = sbr.rel (%p832) target = $region72
        $region71: #{cvae_forward.8} parent=35 // pred_region
          _
        $region72: #{cvae_forward.8} parent=35 // pred_fallthru
          _
      $region36: #{cvae_forward.8} parent=5 // pred_fallthru
        _
      %p835 = scmp.le.s32.totalorder 2, %s16
      // Predicated region
      $region73: #{cvae_forward.8} parent=5 // pred_check
        %p836 = pneg %p835
      $region74: #{cvae_forward.8} parent=5 // pred_check_branch
        %838 = sbr.rel (%p836) target = $region76
      $region75: #{cvae_forward.8} parent=5 // pred_region
        %s839 = ssub.s32 %s16, 2
      $region76: #{cvae_forward.8} parent=5 // pred_fallthru
        _
    $region6: #{cvae_forward.8} parent=1 // loop_footer
      %s20 = sadd.s32 1, %s16
    $region7: #{cvae_forward.8} parent=1 // loop_footer_branch
      %15 = sbr.rel target = $region3
    $region8: #{cvae_forward.8} parent=1 // loop_exit
      _
    %840 = vsyncpa [#allocation4], 1
    %s841 = scalar_lea.sflag [#allocation4], 1
    %842 = vsyncpa %s841, 1

// kernel: cvae_forward.9
$region0: #{cvae_forward.9}
  #allocation0 [shape = 'u32[]', space=smem, size = 0x4, offset = 0x4, fixed_abs, tag = 'smem constant byte address 0x4 - core index']
  #allocation1 [shape = 'u32[72,128]{1,0:T(1,128)}', space=vmem, size = 0x9000, scoped, tag = 'internal scratch']
  #allocation2 [shape = 'f32[8,256]{1,0:T(8,128)}', space=vmem, size = 0x2000, scoped, tag = 'scratch operand']
  %s0 = inlined_call_operand.vmem [shape: bf16[8,1024], index: 0, kind: input, shape index: {}]
  %s1 = inlined_call_operand.vmem [shape: bf16[1024,2048], index: 1, kind: input, shape index: {}]
  %s2 = inlined_call_operand.vmem [shape: f32[1,2048], index: 2, kind: input, shape index: {}]
  %s3 = inlined_call_operand.vmem [shape: f32[8,2048], index: 3, kind: output, shape index: {}]
  %s4 = sld [smem:[#allocation0]]
  $region91: #{cvae_forward.9} parent=0
    _
  %s6 = ssub.s32 1, %s4
  %s7 = scalar_select 0, %s6, %s4
  $region1: #{cvae_forward.9} parent=0
    #allocation3 [shape = 'u8[524288]{0}', space=vmem, size = 0x80000, scoped, tag = 'input window, operand 1']
    loop: start=0, step=1, limit=18
    $region2: #{cvae_forward.9} parent=1 // loop_pre_header
      _
    $region3: #{cvae_forward.9} parent=1 // loop_header
      %s9 = sphi 0, %s13
      %p10 = scmp.ge.s32.totalorder %s9, 18
      %s16 = sphi 0, %s35
      %s17 = sphi 0, %s31
      %s18 = sphi 0, %s27
      %s19 = sphi 0, %s16
      %s20 = sphi 0, %s17
      %s21 = sphi 0, %s18
      %s22 = sphi 0, %s19
      %s23 = sphi 0, %s20
      %s24 = sphi 0, %s21
      %s40 = sphi 0, %s42
      %s43 = sphi 0, %s40
      %s44 = sphi 0, %s43
      %s60 = sphi 0, %s44
      %s68 = sphi 0, %s70
      %s71 = sphi 0, %s68
      %s72 = sphi 0, %s71
      %s88 = sphi 0, %s72
      %s94 = sphi 0, %s96
      %s97 = sphi 0, %s94
      %s98 = sphi 0, %s97
      %s114 = sphi 0, %s98
      %s122 = sphi 0, %s124
      %s125 = sphi 0, %s122
      %s126 = sphi 0, %s125
      %s142 = sphi 0, %s126
    $region4: #{cvae_forward.9} parent=1 // loop_header_branch
      %12 = sbr.rel (%p10) target = $region8
    $region5: #{cvae_forward.9} parent=1 // loop_body
      %s14 = ssub.s32 %s9, 1
      %s15 = ssub.s32 %s9, 2
      %s25 = sadd.s32 1, %s18
      %p26 = scmp.ge.s32.totalorder %s25, 2
      %s27 = scalar_select %p26, 0, %s25
      %s28 = sadd.s32 1, %s17
      %s29 = scalar_select %p26, %s28, %s17
      %p30 = scmp.ge.s32.totalorder %s29, 8
      %s31 = scalar_select %p30, 0, %s29
      %s32 = sadd.s32 1, %s16
      %s33 = scalar_select %p30, %s32, %s16
      %p34 = scmp.ge.s32.totalorder %s33, 1
      %s35 = scalar_select %p34, 0, %s33
      %s36 = ssub.s32 %s16, %s35
      %s37 = ssub.s32 %s18, %s27
      %s38 = sor.u32 %s36, %s37
      %p39 = scmp.eq.s32.totalorder %s38, 0
      %s41 = sadd.s32 %s40, 1
      %s42 = scalar_select %p39, %s40, %s41
      %p45 = pneg %p39
      %p46 = scmp.eq.s32.totalorder %s9, 15
      %p47 = por %p45, %p46
      %p48 = scmp.ne.s32.totalorder %s40, %s43
      %p49 = scmp.eq.s32.totalorder %s9, 0
      %p50 = por %p48, %p49
      %p51 = scmp.ne.s32.totalorder %s40, %s43
      %p52 = scmp.eq.s32.totalorder %s14, 15
      %p53 = por %p51, %p52
      %p54 = scmp.ne.s32.totalorder %s43, %s44
      %p55 = scmp.eq.s32.totalorder %s14, 0
      %p56 = por %p54, %p55
      %p57 = scmp.ne.s32.totalorder %s43, %s44
      %p58 = scmp.eq.s32.totalorder %s15, 15
      %p59 = por %p57, %p58
      %p61 = scmp.ne.s32.totalorder %s44, %s60
      %p62 = scmp.eq.s32.totalorder %s15, 0
      %p63 = por %p61, %p62
      %s64 = ssub.s32 %s18, %s27
      %s65 = ssub.s32 %s17, %s31
      %s66 = sor.u32 %s64, %s65
      %p67 = scmp.eq.s32.totalorder %s66, 0
      %s69 = sadd.s32 %s68, 1
      %s70 = scalar_select %p67, %s68, %s69
      %p73 = pneg %p67
      %p74 = scmp.eq.s32.totalorder %s9, 15
      %p75 = por %p73, %p74
      %p76 = scmp.ne.s32.totalorder %s68, %s71
      %p77 = scmp.eq.s32.totalorder %s9, 0
      %p78 = por %p76, %p77
      %p79 = scmp.ne.s32.totalorder %s68, %s71
      %p80 = scmp.eq.s32.totalorder %s14, 15
      %p81 = por %p79, %p80
      %p82 = scmp.ne.s32.totalorder %s71, %s72
      %p83 = scmp.eq.s32.totalorder %s14, 0
      %p84 = por %p82, %p83
      %p85 = scmp.ne.s32.totalorder %s71, %s72
      %p86 = scmp.eq.s32.totalorder %s15, 15
      %p87 = por %p85, %p86
      %p89 = scmp.ne.s32.totalorder %s72, %s88
      %p90 = scmp.eq.s32.totalorder %s15, 0
      %p91 = por %p89, %p90
      %s92 = ssub.s32 %s17, %s31
      %p93 = scmp.eq.s32.totalorder %s92, 0
      %s95 = sadd.s32 %s94, 1
      %s96 = scalar_select %p93, %s94, %s95
      %p99 = pneg %p93
      %p100 = scmp.eq.s32.totalorder %s9, 15
      %p101 = por %p99, %p100
      %p102 = scmp.ne.s32.totalorder %s94, %s97
      %p103 = scmp.eq.s32.totalorder %s9, 0
      %p104 = por %p102, %p103
      %p105 = scmp.ne.s32.totalorder %s94, %s97
      %p106 = scmp.eq.s32.totalorder %s14, 15
      %p107 = por %p105, %p106
      %p108 = scmp.ne.s32.totalorder %s97, %s98
      %p109 = scmp.eq.s32.totalorder %s14, 0
      %p110 = por %p108, %p109
      %p111 = scmp.ne.s32.totalorder %s97, %s98
      %p112 = scmp.eq.s32.totalorder %s15, 15
      %p113 = por %p111, %p112
      %p115 = scmp.ne.s32.totalorder %s98, %s114
      %p116 = scmp.eq.s32.totalorder %s15, 0
      %p117 = por %p115, %p116
      %s118 = ssub.s32 %s16, %s35
      %s119 = ssub.s32 %s17, %s31
      %s120 = sor.u32 %s118, %s119
      %p121 = scmp.eq.s32.totalorder %s120, 0
      %s123 = sadd.s32 %s122, 1
      %s124 = scalar_select %p121, %s122, %s123
      %p127 = pneg %p121
      %p128 = scmp.eq.s32.totalorder %s9, 15
      %p129 = por %p127, %p128
      %p130 = scmp.ne.s32.totalorder %s122, %s125
      %p131 = scmp.eq.s32.totalorder %s9, 0
      %p132 = por %p130, %p131
      %p133 = scmp.ne.s32.totalorder %s122, %s125
      %p134 = scmp.eq.s32.totalorder %s14, 15
      %p135 = por %p133, %p134
      %p136 = scmp.ne.s32.totalorder %s125, %s126
      %p137 = scmp.eq.s32.totalorder %s14, 0
      %p138 = por %p136, %p137
      %p139 = scmp.ne.s32.totalorder %s125, %s126
      %p140 = scmp.eq.s32.totalorder %s15, 15
      %p141 = por %p139, %p140
      %p143 = scmp.ne.s32.totalorder %s126, %s142
      %p144 = scmp.eq.s32.totalorder %s15, 0
      %p145 = por %p143, %p144
      %p146 = scmp.le.s32.totalorder 1, %s9
      %p147 = scmp.lt.s32.totalorder %s9, 17
      %p148 = pnand %p146, %p147
      %p149 = pneg %p148
      // Predicated region
      $region9: #{cvae_forward.9} parent=5 // pred_check
        _
      $region10: #{cvae_forward.9} parent=5 // pred_check_branch
        %151 = sbr.rel (%p148) target = $region12
      $region11: #{cvae_forward.9} parent=5 // pred_region
        %s152 = ssub.s32 %s9, 1
      $region12: #{cvae_forward.9} parent=5 // pred_fallthru
        _
      %p153 = scmp.lt.s32.totalorder %s9, 16
      // Predicated region
      $region13: #{cvae_forward.9} parent=5 // pred_check
        %p154 = pneg %p153
      $region14: #{cvae_forward.9} parent=5 // pred_check_branch
        %156 = sbr.rel (%p154) target = $region16
      $region15: #{cvae_forward.9} parent=5 // pred_region
        // Predicated region
        $region17: #{cvae_forward.9} parent=15 // pred_check
          %p157 = pneg %p50
        $region18: #{cvae_forward.9} parent=15 // pred_check_branch
          %159 = sbr.rel (%p157) target = $region20
        $region19: #{cvae_forward.9} parent=15 // pred_region
          %s160 = smul.u32 4, %s18
          %p161 = scmp.lt.s32.totalorder %s16, 0
          %s162 = scalar_select %p161, %s16, 0
          %p163 = scmp.lt.s32.totalorder %s160, 7
          %s164 = scalar_select %p163, %s160, 7
          %s165 = smul.addr %s162, 8
          %s166 = sadd.s32 %s164, %s165
          %s167 = smul.addr %s166, 4
          %s168 = scalar_lea.vmem %s0, %s167
          %s169 = smul.u32 4, %s18
        $region20: #{cvae_forward.9} parent=15 // pred_fallthru
          _
        // Predicated region
        $region21: #{cvae_forward.9} parent=15 // pred_check
          %p170 = pneg %p78
        $region22: #{cvae_forward.9} parent=15 // pred_check_branch
          %172 = sbr.rel (%p170) target = $region24
        $region23: #{cvae_forward.9} parent=15 // pred_region
          %s173 = sand.u32 %s68, 1
          %s174 = sand.u32 %s68, 1
          %s175 = smul.addr %s174, 512
          %s176 = scalar_lea.vmem [#allocation3], %s175
          %s177 = smul.u32 64, %s18
          %s178 = smul.u32 2, %s17
          %s179 = smul.addr %s177, 16
          %s180 = sadd.s32 %s178, %s179
          %s181 = smul.addr %s180, 4
          %s182 = scalar_lea.vmem %s1, %s181
          // Predicated region
          $region25: #{cvae_forward.9} parent=23 // pred_check
            _
          $region26: #{cvae_forward.9} parent=23 // pred_check_branch
            %184 = sbr.rel (0) target = $region28
          $region27: #{cvae_forward.9} parent=23 // pred_region
            // Predicated region
            $region29: #{cvae_forward.9} parent=27 // pred_check
              _
            $region30: #{cvae_forward.9} parent=27 // pred_check_branch
              %186 = sbr.rel (0) target = $region32
            $region31: #{cvae_forward.9} parent=27 // pred_region
              // Predicated region
              $region44: #{cvae_forward.9} parent=31 // pred_check
                _
              $region45: #{cvae_forward.9} parent=31 // pred_check_branch
                %328 = sbr.rel (0) target = $region47
              $region46: #{cvae_forward.9} parent=31 // pred_region
                loop: start=0, step=1, limit=1
                $region48: #{cvae_forward.9} parent=46 // loop_pre_header
                  _
                $region49: #{cvae_forward.9} parent=46 // loop_header
                  %s330 = sphi 0, %s334
                  %p331 = scmp.ge.s32.totalorder %s330, 1
                  %s335 = sphi %s182, %s182
                  %s336 = sphi %s176, %s176
                $region50: #{cvae_forward.9} parent=46 // loop_header_branch
                  %333 = sbr.rel (%p331) target = $region54
                $region51: #{cvae_forward.9} parent=46 // loop_body
                  %v337 = vld [vmem:[%s335] sm:$0xff]
                  %338 = vst [vmem:[%s336] sm:$0xff] %v337
                  %v339 = vld [vmem:[%s335 + $0x40] sm:$0xff]
                  %340 = vst [vmem:[%s336 + $0x8] sm:$0xff] %v339
                  %v341 = vld [vmem:[%s335 + $0x80] sm:$0xff]
                  %342 = vst [vmem:[%s336 + $0x10] sm:$0xff] %v341
                  %v343 = vld [vmem:[%s335 + $0xc0] sm:$0xff]
                  %344 = vst [vmem:[%s336 + $0x18] sm:$0xff] %v343
                  %v345 = vld [vmem:[%s335 + $0x100] sm:$0xff]
                  %346 = vst [vmem:[%s336 + $0x20] sm:$0xff] %v345
                  %v347 = vld [vmem:[%s335 + $0x140] sm:$0xff]
                  %348 = vst [vmem:[%s336 + $0x28] sm:$0xff] %v347
                  %v349 = vld [vmem:[%s335 + $0x180] sm:$0xff]
                  %350 = vst [vmem:[%s336 + $0x30] sm:$0xff] %v349
                  %v351 = vld [vmem:[%s335 + $0x1c0] sm:$0xff]
                  %352 = vst [vmem:[%s336 + $0x38] sm:$0xff] %v351
                  %v353 = vld [vmem:[%s335 + $0x200] sm:$0xff]
                  %354 = vst [vmem:[%s336 + $0x40] sm:$0xff] %v353
                  %v355 = vld [vmem:[%s335 + $0x240] sm:$0xff]
                  %356 = vst [vmem:[%s336 + $0x48] sm:$0xff] %v355
                  %v357 = vld [vmem:[%s335 + $0x280] sm:$0xff]
                  %358 = vst [vmem:[%s336 + $0x50] sm:$0xff] %v357
                  %v359 = vld [vmem:[%s335 + $0x2c0] sm:$0xff]
                  %360 = vst [vmem:[%s336 + $0x58] sm:$0xff] %v359
                  %v361 = vld [vmem:[%s335 + $0x300] sm:$0xff]
                  %362 = vst [vmem:[%s336 + $0x60] sm:$0xff] %v361
                  %v363 = vld [vmem:[%s335 + $0x340] sm:$0xff]
                  %364 = vst [vmem:[%s336 + $0x68] sm:$0xff] %v363
                  %v365 = vld [vmem:[%s335 + $0x380] sm:$0xff]
                  %366 = vst [vmem:[%s336 + $0x70] sm:$0xff] %v365
                  %v367 = vld [vmem:[%s335 + $0x3c0] sm:$0xff]
                  %368 = vst [vmem:[%s336 + $0x78] sm:$0xff] %v367
                  %v369 = vld [vmem:[%s335 + $0x400] sm:$0xff]
                  %370 = vst [vmem:[%s336 + $0x80] sm:$0xff] %v369
                  %v371 = vld [vmem:[%s335 + $0x440] sm:$0xff]
                  %372 = vst [vmem:[%s336 + $0x88] sm:$0xff] %v371
                  %v373 = vld [vmem:[%s335 + $0x480] sm:$0xff]
                  %374 = vst [vmem:[%s336 + $0x90] sm:$0xff] %v373
                  %v375 = vld [vmem:[%s335 + $0x4c0] sm:$0xff]
                  %376 = vst [vmem:[%s336 + $0x98] sm:$0xff] %v375
                  %v377 = vld [vmem:[%s335 + $0x500] sm:$0xff]
                  %378 = vst [vmem:[%s336 + $0xa0] sm:$0xff] %v377
                  %v379 = vld [vmem:[%s335 + $0x540] sm:$0xff]
                  %380 = vst [vmem:[%s336 + $0xa8] sm:$0xff] %v379
                  %v381 = vld [vmem:[%s335 + $0x580] sm:$0xff]
                  %382 = vst [vmem:[%s336 + $0xb0] sm:$0xff] %v381
                  %v383 = vld [vmem:[%s335 + $0x5c0] sm:$0xff]
                  %384 = vst [vmem:[%s336 + $0xb8] sm:$0xff] %v383
                  %v385 = vld [vmem:[%s335 + $0x600] sm:$0xff]
                  %386 = vst [vmem:[%s336 + $0xc0] sm:$0xff] %v385
                  %v387 = vld [vmem:[%s335 + $0x640] sm:$0xff]
                  %388 = vst [vmem:[%s336 + $0xc8] sm:$0xff] %v387
                  %v389 = vld [vmem:[%s335 + $0x680] sm:$0xff]
                  %390 = vst [vmem:[%s336 + $0xd0] sm:$0xff] %v389
                  %v391 = vld [vmem:[%s335 + $0x6c0] sm:$0xff]
                  %392 = vst [vmem:[%s336 + $0xd8] sm:$0xff] %v391
                  %v393 = vld [vmem:[%s335 + $0x700] sm:$0xff]
                  %394 = vst [vmem:[%s336 + $0xe0] sm:$0xff] %v393
                  %v395 = vld [vmem:[%s335 + $0x740] sm:$0xff]
                  %396 = vst [vmem:[%s336 + $0xe8] sm:$0xff] %v395
                  %v397 = vld [vmem:[%s335 + $0x780] sm:$0xff]
                  %398 = vst [vmem:[%s336 + $0xf0] sm:$0xff] %v397
                  %v399 = vld [vmem:[%s335 + $0x7c0] sm:$0xff]
                  %400 = vst [vmem:[%s336 + $0xf8] sm:$0xff] %v399
                  %v401 = vld [vmem:[%s335 + $0x800] sm:$0xff]
                  %402 = vst [vmem:[%s336 + $0x100] sm:$0xff] %v401
                  %v403 = vld [vmem:[%s335 + $0x840] sm:$0xff]
                  %404 = vst [vmem:[%s336 + $0x108] sm:$0xff] %v403
                  %v405 = vld [vmem:[%s335 + $0x880] sm:$0xff]
                  %406 = vst [vmem:[%s336 + $0x110] sm:$0xff] %v405
                  %v407 = vld [vmem:[%s335 + $0x8c0] sm:$0xff]
                  %408 = vst [vmem:[%s336 + $0x118] sm:$0xff] %v407
                  %v409 = vld [vmem:[%s335 + $0x900] sm:$0xff]
                  %410 = vst [vmem:[%s336 + $0x120] sm:$0xff] %v409
                  %v411 = vld [vmem:[%s335 + $0x940] sm:$0xff]
                  %412 = vst [vmem:[%s336 + $0x128] sm:$0xff] %v411
                  %v413 = vld [vmem:[%s335 + $0x980] sm:$0xff]
                  %414 = vst [vmem:[%s336 + $0x130] sm:$0xff] %v413
                  %v415 = vld [vmem:[%s335 + $0x9c0] sm:$0xff]
                  %416 = vst [vmem:[%s336 + $0x138] sm:$0xff] %v415
                  %v417 = vld [vmem:[%s335 + $0xa00] sm:$0xff]
                  %418 = vst [vmem:[%s336 + $0x140] sm:$0xff] %v417
                  %v419 = vld [vmem:[%s335 + $0xa40] sm:$0xff]
                  %420 = vst [vmem:[%s336 + $0x148] sm:$0xff] %v419
                  %v421 = vld [vmem:[%s335 + $0xa80] sm:$0xff]
                  %422 = vst [vmem:[%s336 + $0x150] sm:$0xff] %v421
                  %v423 = vld [vmem:[%s335 + $0xac0] sm:$0xff]
                  %424 = vst [vmem:[%s336 + $0x158] sm:$0xff] %v423
                  %v425 = vld [vmem:[%s335 + $0xb00] sm:$0xff]
                  %426 = vst [vmem:[%s336 + $0x160] sm:$0xff] %v425
                  %v427 = vld [vmem:[%s335 + $0xb40] sm:$0xff]
                  %428 = vst [vmem:[%s336 + $0x168] sm:$0xff] %v427
                  %v429 = vld [vmem:[%s335 + $0xb80] sm:$0xff]
                  %430 = vst [vmem:[%s336 + $0x170] sm:$0xff] %v429
                  %v431 = vld [vmem:[%s335 + $0xbc0] sm:$0xff]
                  %432 = vst [vmem:[%s336 + $0x178] sm:$0xff] %v431
                  %v433 = vld [vmem:[%s335 + $0xc00] sm:$0xff]
                  %434 = vst [vmem:[%s336 + $0x180] sm:$0xff] %v433
                  %v435 = vld [vmem:[%s335 + $0xc40] sm:$0xff]
                  %436 = vst [vmem:[%s336 + $0x188] sm:$0xff] %v435
                  %v437 = vld [vmem:[%s335 + $0xc80] sm:$0xff]
                  %438 = vst [vmem:[%s336 + $0x190] sm:$0xff] %v437
                  %v439 = vld [vmem:[%s335 + $0xcc0] sm:$0xff]
                  %440 = vst [vmem:[%s336 + $0x198] sm:$0xff] %v439
                  %v441 = vld [vmem:[%s335 + $0xd00] sm:$0xff]
                  %442 = vst [vmem:[%s336 + $0x1a0] sm:$0xff] %v441
                  %v443 = vld [vmem:[%s335 + $0xd40] sm:$0xff]
                  %444 = vst [vmem:[%s336 + $0x1a8] sm:$0xff] %v443
                  %v445 = vld [vmem:[%s335 + $0xd80] sm:$0xff]
                  %446 = vst [vmem:[%s336 + $0x1b0] sm:$0xff] %v445
                  %v447 = vld [vmem:[%s335 + $0xdc0] sm:$0xff]
                  %448 = vst [vmem:[%s336 + $0x1b8] sm:$0xff] %v447
                  %v449 = vld [vmem:[%s335 + $0xe00] sm:$0xff]
                  %450 = vst [vmem:[%s336 + $0x1c0] sm:$0xff] %v449
                  %v451 = vld [vmem:[%s335 + $0xe40] sm:$0xff]
                  %452 = vst [vmem:[%s336 + $0x1c8] sm:$0xff] %v451
                  %v453 = vld [vmem:[%s335 + $0xe80] sm:$0xff]
                  %454 = vst [vmem:[%s336 + $0x1d0] sm:$0xff] %v453
                  %v455 = vld [vmem:[%s335 + $0xec0] sm:$0xff]
                  %456 = vst [vmem:[%s336 + $0x1d8] sm:$0xff] %v455
                  %v457 = vld [vmem:[%s335 + $0xf00] sm:$0xff]
                  %458 = vst [vmem:[%s336 + $0x1e0] sm:$0xff] %v457
                  %v459 = vld [vmem:[%s335 + $0xf40] sm:$0xff]
                  %460 = vst [vmem:[%s336 + $0x1e8] sm:$0xff] %v459
                  %v461 = vld [vmem:[%s335 + $0xf80] sm:$0xff]
                  %462 = vst [vmem:[%s336 + $0x1f0] sm:$0xff] %v461
                  %v463 = vld [vmem:[%s335 + $0xfc0] sm:$0xff]
                  %464 = vst [vmem:[%s336 + $0x1f8] sm:$0xff] %v463
                $region52: #{cvae_forward.9} parent=46 // loop_footer
                  %s334 = sadd.s32 1, %s330
                $region53: #{cvae_forward.9} parent=46 // loop_footer_branch
                  %329 = sbr.rel target = $region49
                $region54: #{cvae_forward.9} parent=46 // loop_exit
                  _
              $region47: #{cvae_forward.9} parent=31 // pred_fallthru
                _
              // Predicated region
              $region55: #{cvae_forward.9} parent=31 // pred_check
                _
              $region56: #{cvae_forward.9} parent=31 // pred_check_branch
                %466 = sbr.rel target = $region58
              $region57: #{cvae_forward.9} parent=31 // pred_region
                _
              $region58: #{cvae_forward.9} parent=31 // pred_fallthru
                _
            $region32: #{cvae_forward.9} parent=27 // pred_fallthru
              _
            // Predicated region
            $region33: #{cvae_forward.9} parent=27 // pred_check
              _
            $region34: #{cvae_forward.9} parent=27 // pred_check_branch
              %188 = sbr.rel target = $region36
            $region35: #{cvae_forward.9} parent=27 // pred_region
              %s190 = ssub.s32 256, 1
              loop: start=0, step=1, limit=1
              $region37: #{cvae_forward.9} parent=35 // loop_pre_header
                _
              $region38: #{cvae_forward.9} parent=35 // loop_header
                %s192 = sphi 0, %s196
                %p193 = scmp.ge.s32.totalorder %s192, 1
                %s197 = sphi %s182, %s182
                %s198 = sphi %s176, %s176
              $region39: #{cvae_forward.9} parent=35 // loop_header_branch
                %195 = sbr.rel (%p193) target = $region43
              $region40: #{cvae_forward.9} parent=35 // loop_body
                %v199 = vld [vmem:[%s197] sm:%s190]
                %200 = vst [vmem:[%s198] sm:%s190] %v199
                %v201 = vld [vmem:[%s197 + $0x40] sm:%s190]
                %202 = vst [vmem:[%s198 + $0x8] sm:%s190] %v201
                %v203 = vld [vmem:[%s197 + $0x80] sm:%s190]
                %204 = vst [vmem:[%s198 + $0x10] sm:%s190] %v203
                %v205 = vld [vmem:[%s197 + $0xc0] sm:%s190]
                %206 = vst [vmem:[%s198 + $0x18] sm:%s190] %v205
                %v207 = vld [vmem:[%s197 + $0x100] sm:%s190]
                %208 = vst [vmem:[%s198 + $0x20] sm:%s190] %v207
                %v209 = vld [vmem:[%s197 + $0x140] sm:%s190]
                %210 = vst [vmem:[%s198 + $0x28] sm:%s190] %v209
                %v211 = vld [vmem:[%s197 + $0x180] sm:%s190]
                %212 = vst [vmem:[%s198 + $0x30] sm:%s190] %v211
                %v213 = vld [vmem:[%s197 + $0x1c0] sm:%s190]
                %214 = vst [vmem:[%s198 + $0x38] sm:%s190] %v213
                %v215 = vld [vmem:[%s197 + $0x200] sm:%s190]
                %216 = vst [vmem:[%s198 + $0x40] sm:%s190] %v215
                %v217 = vld [vmem:[%s197 + $0x240] sm:%s190]
                %218 = vst [vmem:[%s198 + $0x48] sm:%s190] %v217
                %v219 = vld [vmem:[%s197 + $0x280] sm:%s190]
                %220 = vst [vmem:[%s198 + $0x50] sm:%s190] %v219
                %v221 = vld [vmem:[%s197 + $0x2c0] sm:%s190]
                %222 = vst [vmem:[%s198 + $0x58] sm:%s190] %v221
                %v223 = vld [vmem:[%s197 + $0x300] sm:%s190]
                %224 = vst [vmem:[%s198 + $0x60] sm:%s190] %v223
                %v225 = vld [vmem:[%s197 + $0x340] sm:%s190]
                %226 = vst [vmem:[%s198 + $0x68] sm:%s190] %v225
                %v227 = vld [vmem:[%s197 + $0x380] sm:%s190]
                %228 = vst [vmem:[%s198 + $0x70] sm:%s190] %v227
                %v229 = vld [vmem:[%s197 + $0x3c0] sm:%s190]
                %230 = vst [vmem:[%s198 + $0x78] sm:%s190] %v229
                %v231 = vld [vmem:[%s197 + $0x400] sm:%s190]
                %232 = vst [vmem:[%s198 + $0x80] sm:%s190] %v231
                %v233 = vld [vmem:[%s197 + $0x440] sm:%s190]
                %234 = vst [vmem:[%s198 + $0x88] sm:%s190] %v233
                %v235 = vld [vmem:[%s197 + $0x480] sm:%s190]
                %236 = vst [vmem:[%s198 + $0x90] sm:%s190] %v235
                %v237 = vld [vmem:[%s197 + $0x4c0] sm:%s190]
                %238 = vst [vmem:[%s198 + $0x98] sm:%s190] %v237
                %v239 = vld [vmem:[%s197 + $0x500] sm:%s190]
                %240 = vst [vmem:[%s198 + $0xa0] sm:%s190] %v239
                %v241 = vld [vmem:[%s197 + $0x540] sm:%s190]
                %242 = vst [vmem:[%s198 + $0xa8] sm:%s190] %v241
                %v243 = vld [vmem:[%s197 + $0x580] sm:%s190]
                %244 = vst [vmem:[%s198 + $0xb0] sm:%s190] %v243
                %v245 = vld [vmem:[%s197 + $0x5c0] sm:%s190]
                %246 = vst [vmem:[%s198 + $0xb8] sm:%s190] %v245
                %v247 = vld [vmem:[%s197 + $0x600] sm:%s190]
                %248 = vst [vmem:[%s198 + $0xc0] sm:%s190] %v247
                %v249 = vld [vmem:[%s197 + $0x640] sm:%s190]
                %250 = vst [vmem:[%s198 + $0xc8] sm:%s190] %v249
                %v251 = vld [vmem:[%s197 + $0x680] sm:%s190]
                %252 = vst [vmem:[%s198 + $0xd0] sm:%s190] %v251
                %v253 = vld [vmem:[%s197 + $0x6c0] sm:%s190]
                %254 = vst [vmem:[%s198 + $0xd8] sm:%s190] %v253
                %v255 = vld [vmem:[%s197 + $0x700] sm:%s190]
                %256 = vst [vmem:[%s198 + $0xe0] sm:%s190] %v255
                %v257 = vld [vmem:[%s197 + $0x740] sm:%s190]
                %258 = vst [vmem:[%s198 + $0xe8] sm:%s190] %v257
                %v259 = vld [vmem:[%s197 + $0x780] sm:%s190]
                %260 = vst [vmem:[%s198 + $0xf0] sm:%s190] %v259
                %v261 = vld [vmem:[%s197 + $0x7c0] sm:%s190]
                %262 = vst [vmem:[%s198 + $0xf8] sm:%s190] %v261
                %v263 = vld [vmem:[%s197 + $0x800] sm:%s190]
                %264 = vst [vmem:[%s198 + $0x100] sm:%s190] %v263
                %v265 = vld [vmem:[%s197 + $0x840] sm:%s190]
                %266 = vst [vmem:[%s198 + $0x108] sm:%s190] %v265
                %v267 = vld [vmem:[%s197 + $0x880] sm:%s190]
                %268 = vst [vmem:[%s198 + $0x110] sm:%s190] %v267
                %v269 = vld [vmem:[%s197 + $0x8c0] sm:%s190]
                %270 = vst [vmem:[%s198 + $0x118] sm:%s190] %v269
                %v271 = vld [vmem:[%s197 + $0x900] sm:%s190]
                %272 = vst [vmem:[%s198 + $0x120] sm:%s190] %v271
                %v273 = vld [vmem:[%s197 + $0x940] sm:%s190]
                %274 = vst [vmem:[%s198 + $0x128] sm:%s190] %v273
                %v275 = vld [vmem:[%s197 + $0x980] sm:%s190]
                %276 = vst [vmem:[%s198 + $0x130] sm:%s190] %v275
                %v277 = vld [vmem:[%s197 + $0x9c0] sm:%s190]
                %278 = vst [vmem:[%s198 + $0x138] sm:%s190] %v277
                %v279 = vld [vmem:[%s197 + $0xa00] sm:%s190]
                %280 = vst [vmem:[%s198 + $0x140] sm:%s190] %v279
                %v281 = vld [vmem:[%s197 + $0xa40] sm:%s190]
                %282 = vst [vmem:[%s198 + $0x148] sm:%s190] %v281
                %v283 = vld [vmem:[%s197 + $0xa80] sm:%s190]
                %284 = vst [vmem:[%s198 + $0x150] sm:%s190] %v283
                %v285 = vld [vmem:[%s197 + $0xac0] sm:%s190]
                %286 = vst [vmem:[%s198 + $0x158] sm:%s190] %v285
                %v287 = vld [vmem:[%s197 + $0xb00] sm:%s190]
                %288 = vst [vmem:[%s198 + $0x160] sm:%s190] %v287
                %v289 = vld [vmem:[%s197 + $0xb40] sm:%s190]
                %290 = vst [vmem:[%s198 + $0x168] sm:%s190] %v289
                %v291 = vld [vmem:[%s197 + $0xb80] sm:%s190]
                %292 = vst [vmem:[%s198 + $0x170] sm:%s190] %v291
                %v293 = vld [vmem:[%s197 + $0xbc0] sm:%s190]
                %294 = vst [vmem:[%s198 + $0x178] sm:%s190] %v293
                %v295 = vld [vmem:[%s197 + $0xc00] sm:%s190]
                %296 = vst [vmem:[%s198 + $0x180] sm:%s190] %v295
                %v297 = vld [vmem:[%s197 + $0xc40] sm:%s190]
                %298 = vst [vmem:[%s198 + $0x188] sm:%s190] %v297
                %v299 = vld [vmem:[%s197 + $0xc80] sm:%s190]
                %300 = vst [vmem:[%s198 + $0x190] sm:%s190] %v299
                %v301 = vld [vmem:[%s197 + $0xcc0] sm:%s190]
                %302 = vst [vmem:[%s198 + $0x198] sm:%s190] %v301
                %v303 = vld [vmem:[%s197 + $0xd00] sm:%s190]
                %304 = vst [vmem:[%s198 + $0x1a0] sm:%s190] %v303
                %v305 = vld [vmem:[%s197 + $0xd40] sm:%s190]
                %306 = vst [vmem:[%s198 + $0x1a8] sm:%s190] %v305
                %v307 = vld [vmem:[%s197 + $0xd80] sm:%s190]
                %308 = vst [vmem:[%s198 + $0x1b0] sm:%s190] %v307
                %v309 = vld [vmem:[%s197 + $0xdc0] sm:%s190]
                %310 = vst [vmem:[%s198 + $0x1b8] sm:%s190] %v309
                %v311 = vld [vmem:[%s197 + $0xe00] sm:%s190]
                %312 = vst [vmem:[%s198 + $0x1c0] sm:%s190] %v311
                %v313 = vld [vmem:[%s197 + $0xe40] sm:%s190]
                %314 = vst [vmem:[%s198 + $0x1c8] sm:%s190] %v313
                %v315 = vld [vmem:[%s197 + $0xe80] sm:%s190]
                %316 = vst [vmem:[%s198 + $0x1d0] sm:%s190] %v315
                %v317 = vld [vmem:[%s197 + $0xec0] sm:%s190]
                %318 = vst [vmem:[%s198 + $0x1d8] sm:%s190] %v317
                %v319 = vld [vmem:[%s197 + $0xf00] sm:%s190]
                %320 = vst [vmem:[%s198 + $0x1e0] sm:%s190] %v319
                %v321 = vld [vmem:[%s197 + $0xf40] sm:%s190]
                %322 = vst [vmem:[%s198 + $0x1e8] sm:%s190] %v321
                %v323 = vld [vmem:[%s197 + $0xf80] sm:%s190]
                %324 = vst [vmem:[%s198 + $0x1f0] sm:%s190] %v323
                %v325 = vld [vmem:[%s197 + $0xfc0] sm:%s190]
                %326 = vst [vmem:[%s198 + $0x1f8] sm:%s190] %v325
              $region41: #{cvae_forward.9} parent=35 // loop_footer
                %s196 = sadd.s32 1, %s192
              $region42: #{cvae_forward.9} parent=35 // loop_footer_branch
                %191 = sbr.rel target = $region38
              $region43: #{cvae_forward.9} parent=35 // loop_exit
                _
            $region36: #{cvae_forward.9} parent=27 // pred_fallthru
              _
          $region28: #{cvae_forward.9} parent=23 // pred_fallthru
            _
          %467 = vnop
        $region24: #{cvae_forward.9} parent=15 // pred_fallthru
          _
        // Predicated region
        $region59: #{cvae_forward.9} parent=15 // pred_check
          %p468 = pneg %p104
        $region60: #{cvae_forward.9} parent=15 // pred_check_branch
          %470 = sbr.rel (%p468) target = $region62
        $region61: #{cvae_forward.9} parent=15 // pred_region
          %s471 = smul.u32 2, %s17
          %p472 = scmp.lt.s32.totalorder %s471, 15
          %s473 = scalar_select %p472, %s471, 15
          %s474 = scalar_lea.vmem %s2, %s473
          %s475 = smul.u32 2, %s17
        $region62: #{cvae_forward.9} parent=15 // pred_fallthru
          _
      $region16: #{cvae_forward.9} parent=5 // pred_fallthru
        _
      %p476 = scmp.le.s32.totalorder 1, %s9
      %p477 = scmp.lt.s32.totalorder %s9, 17
      %p478 = pnand %p476, %p477
      %p479 = pneg %p478
      // Predicated region
      $region63: #{cvae_forward.9} parent=5 // pred_check
        _
      $region64: #{cvae_forward.9} parent=5 // pred_check_branch
        %481 = sbr.rel (%p478) target = $region66
      $region65: #{cvae_forward.9} parent=5 // pred_region
        %s482 = ssub.s32 %s9, 1
        %s483 = sand.u32 %s71, 1
        %s484 = sand.u32 %s71, 1
        %s485 = smul.addr %s484, 512
        %s486 = scalar_lea.vmem [#allocation3], %s485
        // Predicated region
        $region67: #{cvae_forward.9} parent=65 // pred_check
          %p487 = pneg %p84
        $region68: #{cvae_forward.9} parent=65 // pred_check_branch
          %489 = sbr.rel (%p487) target = $region70
        $region69: #{cvae_forward.9} parent=65 // pred_region
          _
        $region70: #{cvae_forward.9} parent=65 // pred_fallthru
          _
        %s490 = smul.u32 4, %s21
        %p491 = scmp.lt.s32.totalorder %s19, 0
        %s492 = scalar_select %p491, %s19, 0
        %p493 = scmp.lt.s32.totalorder %s490, 7
        %s494 = scalar_select %p493, %s490, 7
        %s495 = smul.addr %s492, 8
        %s496 = sadd.s32 %s494, %s495
        %s497 = smul.addr %s496, 4
        %s498 = scalar_lea.vmem %s0, %s497
        %p499 = pneg %p56
        %p500 = pneg %p53
        %s501 = sand.u32 %s71, 1
        %s502 = sand.u32 %s71, 1
        %s503 = smul.addr %s502, 512
        %s504 = scalar_lea.vmem [#allocation3], %s503
        %p505 = pneg %p84
        %p506 = pneg %p81
        %s507 = smul.u32 2, %s20
        %p508 = scmp.lt.s32.totalorder %s507, 15
        %s509 = scalar_select %p508, %s507, 15
        %s510 = scalar_lea.vmem %s2, %s509
        %p511 = pneg %p110
        %p512 = pneg %p107
        %p513 = pneg %p138
        %p514 = pneg %p135
        %s515 = smul.u32 2, %s20
        %p516 = scmp.lt.s32.totalorder %s19, 0
        %s517 = scalar_select %p516, %s19, 0
        %p518 = scmp.lt.s32.totalorder %s515, 15
        %s519 = scalar_select %p518, %s515, 15
        %s520 = smul.addr %s517, 16
        %s521 = sadd.s32 %s519, %s520
        %s522 = smul.addr %s521, 8
        %s523 = scalar_lea.vmem %s3, %s522
        %s524 = smul.u32 4, %s21
        %p525 = scmp.lt.s32.totalorder %s19, 0
        %s526 = scalar_select %p525, %s19, 0
        %p527 = scmp.lt.s32.totalorder %s524, 7
        %s528 = scalar_select %p527, %s524, 7
        %s529 = smul.addr %s526, 8
        %s530 = sadd.s32 %s528, %s529
        %s531 = smul.addr %s530, 4
        %s532 = scalar_lea.vmem %s0, %s531
        %s533 = smul.u32 4, %s21
        %s534 = smul.u32 64, %s21
        %s535 = smul.u32 2, %s20
        %s536 = smul.u32 2, %s20
        %p537 = scmp.lt.s32.totalorder %s536, 15
        %s538 = scalar_select %p537, %s536, 15
        %s539 = scalar_lea.vmem %s2, %s538
        %s540 = smul.u32 2, %s20
        %s541 = smul.u32 2, %s20
        %p542 = scmp.lt.s32.totalorder %s19, 0
        %s543 = scalar_select %p542, %s19, 0
        %p544 = scmp.lt.s32.totalorder %s541, 15
        %s545 = scalar_select %p544, %s541, 15
        %s546 = smul.addr %s543, 16
        %s547 = sadd.s32 %s545, %s546
        %s548 = smul.addr %s547, 8
        %s549 = scalar_lea.vmem %s3, %s548
        %s550 = smul.u32 2, %s20
        %p551 = scmp.eq.s32.totalorder %s21, 0
        // Predicated region
        $region71: #{cvae_forward.9} parent=65 // pred_check
          %p552 = pneg %p551
        $region72: #{cvae_forward.9} parent=65 // pred_check_branch
          %554 = sbr.rel (%p552) target = $region74
        $region73: #{cvae_forward.9} parent=65 // pred_region
          %555 = vst [vmem:[#allocation2] sm:$0xff] 0.0
          %556 = vst [vmem:[#allocation2 + $0x8] sm:$0xff] 0.0
        $region74: #{cvae_forward.9} parent=65 // pred_fallthru
          _
        %v557 = vld [vmem:[#allocation2] sm:$0xff]
        %v558 = vld [vmem:[#allocation2 + $0x8] sm:$0xff]
        %v559 = vld [vmem:[%s532] sm:$0xff]
        %v560 = vld [vmem:[%s532 + $0x8] sm:$0xff]
        %v561 = vld [vmem:[%s486] sm:$0xff]
        %v562 = vld [vmem:[%s486 + $0x8] sm:$0xff]
        %v563 = vld [vmem:[%s486 + $0x10] sm:$0xff]
        %v564 = vld [vmem:[%s486 + $0x18] sm:$0xff]
        %v565 = vld [vmem:[%s486 + $0x20] sm:$0xff]
        %v566 = vld [vmem:[%s486 + $0x28] sm:$0xff]
        %v567 = vld [vmem:[%s486 + $0x30] sm:$0xff]
        %v568 = vld [vmem:[%s486 + $0x38] sm:$0xff]
        %v569 = vld [vmem:[%s486 + $0x40] sm:$0xff]
        %v570 = vld [vmem:[%s486 + $0x48] sm:$0xff]
        %v571 = vld [vmem:[%s486 + $0x50] sm:$0xff]
        %v572 = vld [vmem:[%s486 + $0x58] sm:$0xff]
        %v573 = vld [vmem:[%s486 + $0x60] sm:$0xff]
        %v574 = vld [vmem:[%s486 + $0x68] sm:$0xff]
        %v575 = vld [vmem:[%s486 + $0x70] sm:$0xff]
        %v576 = vld [vmem:[%s486 + $0x78] sm:$0xff]
        %v577 = vld [vmem:[%s486 + $0x80] sm:$0xff]
        %v578 = vld [vmem:[%s486 + $0x88] sm:$0xff]
        %v579 = vld [vmem:[%s486 + $0x90] sm:$0xff]
        %v580 = vld [vmem:[%s486 + $0x98] sm:$0xff]
        %v581 = vld [vmem:[%s486 + $0xa0] sm:$0xff]
        %v582 = vld [vmem:[%s486 + $0xa8] sm:$0xff]
        %v583 = vld [vmem:[%s486 + $0xb0] sm:$0xff]
        %v584 = vld [vmem:[%s486 + $0xb8] sm:$0xff]
        %v585 = vld [vmem:[%s486 + $0xc0] sm:$0xff]
        %v586 = vld [vmem:[%s486 + $0xc8] sm:$0xff]
        %v587 = vld [vmem:[%s486 + $0xd0] sm:$0xff]
        %v588 = vld [vmem:[%s486 + $0xd8] sm:$0xff]
        %v589 = vld [vmem:[%s486 + $0xe0] sm:$0xff]
        %v590 = vld [vmem:[%s486 + $0xe8] sm:$0xff]
        %v591 = vld [vmem:[%s486 + $0xf0] sm:$0xff]
        %v592 = vld [vmem:[%s486 + $0xf8] sm:$0xff]
        %v593 = vld [vmem:[%s486 + $0x100] sm:$0xff]
        %v594 = vld [vmem:[%s486 + $0x108] sm:$0xff]
        %v595 = vld [vmem:[%s486 + $0x110] sm:$0xff]
        %v596 = vld [vmem:[%s486 + $0x118] sm:$0xff]
        %v597 = vld [vmem:[%s486 + $0x120] sm:$0xff]
        %v598 = vld [vmem:[%s486 + $0x128] sm:$0xff]
        %v599 = vld [vmem:[%s486 + $0x130] sm:$0xff]
        %v600 = vld [vmem:[%s486 + $0x138] sm:$0xff]
        %v601 = vld [vmem:[%s486 + $0x140] sm:$0xff]
        %v602 = vld [vmem:[%s486 + $0x148] sm:$0xff]
        %v603 = vld [vmem:[%s486 + $0x150] sm:$0xff]
        %v604 = vld [vmem:[%s486 + $0x158] sm:$0xff]
        %v605 = vld [vmem:[%s486 + $0x160] sm:$0xff]
        %v606 = vld [vmem:[%s486 + $0x168] sm:$0xff]
        %v607 = vld [vmem:[%s486 + $0x170] sm:$0xff]
        %v608 = vld [vmem:[%s486 + $0x178] sm:$0xff]
        %v609 = vld [vmem:[%s486 + $0x180] sm:$0xff]
        %v610 = vld [vmem:[%s486 + $0x188] sm:$0xff]
        %v611 = vld [vmem:[%s486 + $0x190] sm:$0xff]
        %v612 = vld [vmem:[%s486 + $0x198] sm:$0xff]
        %v613 = vld [vmem:[%s486 + $0x1a0] sm:$0xff]
        %v614 = vld [vmem:[%s486 + $0x1a8] sm:$0xff]
        %v615 = vld [vmem:[%s486 + $0x1b0] sm:$0xff]
        %v616 = vld [vmem:[%s486 + $0x1b8] sm:$0xff]
        %v617 = vld [vmem:[%s486 + $0x1c0] sm:$0xff]
        %v618 = vld [vmem:[%s486 + $0x1c8] sm:$0xff]
        %v619 = vld [vmem:[%s486 + $0x1d0] sm:$0xff]
        %v620 = vld [vmem:[%s486 + $0x1d8] sm:$0xff]
        %v621 = vld [vmem:[%s486 + $0x1e0] sm:$0xff]
        %v622 = vld [vmem:[%s486 + $0x1e8] sm:$0xff]
        %v623 = vld [vmem:[%s486 + $0x1f0] sm:$0xff]
        %v624 = vld [vmem:[%s486 + $0x1f8] sm:$0xff]
        %v627 = vunpack.c.l.b16 %v559
        %v628 = vunpack.c.h.b16 %v559
        %v629 = vunpack.c.l.b16 %v560
        %v630 = vunpack.c.h.b16 %v560
        %v631 = vpack.c.b16 %v627, %v627
        %v632 = vpack.c.b16 %v628, %v628
        %v633 = vpack.c.b16 %v629, %v629
        %v634 = vpack.c.b16 %v630, %v630
        %v703 = vunpack.c.l.b16 %v561
        %v704 = vunpack.c.h.b16 %v561
        %v705 = vunpack.c.l.b16 %v562
        %v706 = vunpack.c.h.b16 %v562
        %v707 = vunpack.c.l.b16 %v563
        %v708 = vunpack.c.h.b16 %v563
        %v709 = vunpack.c.l.b16 %v564
        %v710 = vunpack.c.h.b16 %v564
        %v711 = vunpack.c.l.b16 %v565
        %v712 = vunpack.c.h.b16 %v565
        %v713 = vunpack.c.l.b16 %v566
        %v714 = vunpack.c.h.b16 %v566
        %v715 = vunpack.c.l.b16 %v567
        %v716 = vunpack.c.h.b16 %v567
        %v717 = vunpack.c.l.b16 %v568
        %v718 = vunpack.c.h.b16 %v568
        %v719 = vunpack.c.l.b16 %v569
        %v720 = vunpack.c.h.b16 %v569
        %v721 = vunpack.c.l.b16 %v570
        %v722 = vunpack.c.h.b16 %v570
        %v723 = vunpack.c.l.b16 %v571
        %v724 = vunpack.c.h.b16 %v571
        %v725 = vunpack.c.l.b16 %v572
        %v726 = vunpack.c.h.b16 %v572
        %v727 = vunpack.c.l.b16 %v573
        %v728 = vunpack.c.h.b16 %v573
        %v729 = vunpack.c.l.b16 %v574
        %v730 = vunpack.c.h.b16 %v574
        %v731 = vunpack.c.l.b16 %v575
        %v732 = vunpack.c.h.b16 %v575
        %v733 = vunpack.c.l.b16 %v576
        %v734 = vunpack.c.h.b16 %v576
        %v735 = vunpack.c.l.b16 %v577
        %v736 = vunpack.c.h.b16 %v577
        %v737 = vunpack.c.l.b16 %v578
        %v738 = vunpack.c.h.b16 %v578
        %v739 = vunpack.c.l.b16 %v579
        %v740 = vunpack.c.h.b16 %v579
        %v741 = vunpack.c.l.b16 %v580
        %v742 = vunpack.c.h.b16 %v580
        %v743 = vunpack.c.l.b16 %v581
        %v744 = vunpack.c.h.b16 %v581
        %v745 = vunpack.c.l.b16 %v582
        %v746 = vunpack.c.h.b16 %v582
        %v747 = vunpack.c.l.b16 %v583
        %v748 = vunpack.c.h.b16 %v583
        %v749 = vunpack.c.l.b16 %v584
        %v750 = vunpack.c.h.b16 %v584
        %v751 = vunpack.c.l.b16 %v585
        %v752 = vunpack.c.h.b16 %v585
        %v753 = vunpack.c.l.b16 %v586
        %v754 = vunpack.c.h.b16 %v586
        %v755 = vunpack.c.l.b16 %v587
        %v756 = vunpack.c.h.b16 %v587
        %v757 = vunpack.c.l.b16 %v588
        %v758 = vunpack.c.h.b16 %v588
        %v759 = vunpack.c.l.b16 %v589
        %v760 = vunpack.c.h.b16 %v589
        %v761 = vunpack.c.l.b16 %v590
        %v762 = vunpack.c.h.b16 %v590
        %v763 = vunpack.c.l.b16 %v591
        %v764 = vunpack.c.h.b16 %v591
        %v765 = vunpack.c.l.b16 %v592
        %v766 = vunpack.c.h.b16 %v592
        %v767 = vunpack.c.l.b16 %v593
        %v768 = vunpack.c.h.b16 %v593
        %v769 = vunpack.c.l.b16 %v594
        %v770 = vunpack.c.h.b16 %v594
        %v771 = vunpack.c.l.b16 %v595
        %v772 = vunpack.c.h.b16 %v595
        %v773 = vunpack.c.l.b16 %v596
        %v774 = vunpack.c.h.b16 %v596
        %v775 = vunpack.c.l.b16 %v597
        %v776 = vunpack.c.h.b16 %v597
        %v777 = vunpack.c.l.b16 %v598
        %v778 = vunpack.c.h.b16 %v598
        %v779 = vunpack.c.l.b16 %v599
        %v780 = vunpack.c.h.b16 %v599
        %v781 = vunpack.c.l.b16 %v600
        %v782 = vunpack.c.h.b16 %v600
        %v783 = vunpack.c.l.b16 %v601
        %v784 = vunpack.c.h.b16 %v601
        %v785 = vunpack.c.l.b16 %v602
        %v786 = vunpack.c.h.b16 %v602
        %v787 = vunpack.c.l.b16 %v603
        %v788 = vunpack.c.h.b16 %v603
        %v789 = vunpack.c.l.b16 %v604
        %v790 = vunpack.c.h.b16 %v604
        %v791 = vunpack.c.l.b16 %v605
        %v792 = vunpack.c.h.b16 %v605
        %v793 = vunpack.c.l.b16 %v606
        %v794 = vunpack.c.h.b16 %v606
        %v795 = vunpack.c.l.b16 %v607
        %v796 = vunpack.c.h.b16 %v607
        %v797 = vunpack.c.l.b16 %v608
        %v798 = vunpack.c.h.b16 %v608
        %v799 = vunpack.c.l.b16 %v609
        %v800 = vunpack.c.h.b16 %v609
        %v801 = vunpack.c.l.b16 %v610
        %v802 = vunpack.c.h.b16 %v610
        %v803 = vunpack.c.l.b16 %v611
        %v804 = vunpack.c.h.b16 %v611
        %v805 = vunpack.c.l.b16 %v612
        %v806 = vunpack.c.h.b16 %v612
        %v807 = vunpack.c.l.b16 %v613
        %v808 = vunpack.c.h.b16 %v613
        %v809 = vunpack.c.l.b16 %v614
        %v810 = vunpack.c.h.b16 %v614
        %v811 = vunpack.c.l.b16 %v615
        %v812 = vunpack.c.h.b16 %v615
        %v813 = vunpack.c.l.b16 %v616
        %v814 = vunpack.c.h.b16 %v616
        %v815 = vunpack.c.l.b16 %v617
        %v816 = vunpack.c.h.b16 %v617
        %v817 = vunpack.c.l.b16 %v618
        %v818 = vunpack.c.h.b16 %v618
        %v819 = vunpack.c.l.b16 %v619
        %v820 = vunpack.c.h.b16 %v619
        %v821 = vunpack.c.l.b16 %v620
        %v822 = vunpack.c.h.b16 %v620
        %v823 = vunpack.c.l.b16 %v621
        %v824 = vunpack.c.h.b16 %v621
        %v825 = vunpack.c.l.b16 %v622
        %v826 = vunpack.c.h.b16 %v622
        %v827 = vunpack.c.l.b16 %v623
        %v828 = vunpack.c.h.b16 %v623
        %v829 = vunpack.c.l.b16 %v624
        %v830 = vunpack.c.h.b16 %v624
        %v831 = vpack.c.b16 %v705, %v703
        %v832 = vpack.c.b16 %v706, %v704
        %v833 = vpack.c.b16 %v709, %v707
        %v834 = vpack.c.b16 %v710, %v708
        %v835 = vpack.c.b16 %v713, %v711
        %v836 = vpack.c.b16 %v714, %v712
        %v837 = vpack.c.b16 %v717, %v715
        %v838 = vpack.c.b16 %v718, %v716
        %v839 = vpack.c.b16 %v721, %v719
        %v840 = vpack.c.b16 %v722, %v720
        %v841 = vpack.c.b16 %v725, %v723
        %v842 = vpack.c.b16 %v726, %v724
        %v843 = vpack.c.b16 %v729, %v727
        %v844 = vpack.c.b16 %v730, %v728
        %v845 = vpack.c.b16 %v733, %v731
        %v846 = vpack.c.b16 %v734, %v732
        %v847 = vpack.c.b16 %v737, %v735
        %v848 = vpack.c.b16 %v738, %v736
        %v849 = vpack.c.b16 %v741, %v739
        %v850 = vpack.c.b16 %v742, %v740
        %v851 = vpack.c.b16 %v745, %v743
        %v852 = vpack.c.b16 %v746, %v744
        %v853 = vpack.c.b16 %v749, %v747
        %v854 = vpack.c.b16 %v750, %v748
        %v855 = vpack.c.b16 %v753, %v751
        %v856 = vpack.c.b16 %v754, %v752
        %v857 = vpack.c.b16 %v757, %v755
        %v858 = vpack.c.b16 %v758, %v756
        %v859 = vpack.c.b16 %v761, %v759
        %v860 = vpack.c.b16 %v762, %v760
        %v861 = vpack.c.b16 %v765, %v763
        %v862 = vpack.c.b16 %v766, %v764
        %v863 = vpack.c.b16 %v769, %v767
        %v864 = vpack.c.b16 %v770, %v768
        %v865 = vpack.c.b16 %v773, %v771
        %v866 = vpack.c.b16 %v774, %v772
        %v867 = vpack.c.b16 %v777, %v775
        %v868 = vpack.c.b16 %v778, %v776
        %v869 = vpack.c.b16 %v781, %v779
        %v870 = vpack.c.b16 %v782, %v780
        %v871 = vpack.c.b16 %v785, %v783
        %v872 = vpack.c.b16 %v786, %v784
        %v873 = vpack.c.b16 %v789, %v787
        %v874 = vpack.c.b16 %v790, %v788
        %v875 = vpack.c.b16 %v793, %v791
        %v876 = vpack.c.b16 %v794, %v792
        %v877 = vpack.c.b16 %v797, %v795
        %v878 = vpack.c.b16 %v798, %v796
        %v879 = vpack.c.b16 %v801, %v799
        %v880 = vpack.c.b16 %v802, %v800
        %v881 = vpack.c.b16 %v805, %v803
        %v882 = vpack.c.b16 %v806, %v804
        %v883 = vpack.c.b16 %v809, %v807
        %v884 = vpack.c.b16 %v810, %v808
        %v885 = vpack.c.b16 %v813, %v811
        %v886 = vpack.c.b16 %v814, %v812
        %v887 = vpack.c.b16 %v817, %v815
        %v888 = vpack.c.b16 %v818, %v816
        %v889 = vpack.c.b16 %v821, %v819
        %v890 = vpack.c.b16 %v822, %v820
        %v891 = vpack.c.b16 %v825, %v823
        %v892 = vpack.c.b16 %v826, %v824
        %v893 = vpack.c.b16 %v829, %v827
        %v894 = vpack.c.b16 %v830, %v828
        %959 = vmatpush.bf16.msra.mxu0 %v845
        %960 = vmatpush.bf16.msra.mxu0 %v843
        %961 = vmatpush.bf16.msra.mxu0 %v841
        %962 = vmatpush.bf16.msra.mxu0 %v839
        %963 = vmatpush.bf16.msra.mxu0 %v837
        %964 = vmatpush.bf16.msra.mxu0 %v835
        %965 = vmatpush.bf16.msra.mxu0 %v833
        %966 = vmatpush.bf16.msra.mxu0 %v831
        %967 = vmatmul.bf16.gmra.mxu0 %v631
        %v968 = vpop.f32.mrf.mxu0
        %v969 = vadd.f32 0.0, %v968
        %v970 = vpop.f32.mrf.mxu0
        %971 = vdwg.mxu0
        %972 = vmatpush.bf16.msra.mxu0 %v861
        %973 = vmatpush.bf16.msra.mxu0 %v859
        %974 = vmatpush.bf16.msra.mxu0 %v857
        %975 = vmatpush.bf16.msra.mxu0 %v855
        %976 = vmatpush.bf16.msra.mxu0 %v853
        %977 = vmatpush.bf16.msra.mxu0 %v851
        %978 = vmatpush.bf16.msra.mxu0 %v849
        %979 = vmatpush.bf16.msra.mxu0 %v847
        %980 = vmatmul.bf16.gmra.mxu0 %v632
        %v981 = vpop.f32.mrf.mxu0
        %v982 = vadd.f32 %v969, %v981
        %v983 = vpop.f32.mrf.mxu0
        %984 = vdwg.mxu0
        %985 = vmatpush.bf16.msra.mxu0 %v877
        %986 = vmatpush.bf16.msra.mxu0 %v875
        %987 = vmatpush.bf16.msra.mxu0 %v873
        %988 = vmatpush.bf16.msra.mxu0 %v871
        %989 = vmatpush.bf16.msra.mxu0 %v869
        %990 = vmatpush.bf16.msra.mxu0 %v867
        %991 = vmatpush.bf16.msra.mxu0 %v865
        %992 = vmatpush.bf16.msra.mxu0 %v863
        %993 = vmatmul.bf16.gmra.mxu0 %v633
        %v994 = vpop.f32.mrf.mxu0
        %v995 = vadd.f32 %v982, %v994
        %v996 = vpop.f32.mrf.mxu0
        %997 = vdwg.mxu0
        %998 = vmatpush.bf16.msra.mxu0 %v893
        %999 = vmatpush.bf16.msra.mxu0 %v891
        %1000 = vmatpush.bf16.msra.mxu0 %v889
        %1001 = vmatpush.bf16.msra.mxu0 %v887
        %1002 = vmatpush.bf16.msra.mxu0 %v885
        %1003 = vmatpush.bf16.msra.mxu0 %v883
        %1004 = vmatpush.bf16.msra.mxu0 %v881
        %1005 = vmatpush.bf16.msra.mxu0 %v879
        %1006 = vmatmul.bf16.gmra.mxu0 %v634
        %v1007 = vpop.f32.mrf.mxu0
        %v1008 = vadd.f32 %v995, %v1007
        %v1009 = vpop.f32.mrf.mxu0
        %1010 = vdwg.mxu0
        %1011 = vmatpush.bf16.msra.mxu0 %v846
        %1012 = vmatpush.bf16.msra.mxu0 %v844
        %1013 = vmatpush.bf16.msra.mxu0 %v842
        %1014 = vmatpush.bf16.msra.mxu0 %v840
        %1015 = vmatpush.bf16.msra.mxu0 %v838
        %1016 = vmatpush.bf16.msra.mxu0 %v836
        %1017 = vmatpush.bf16.msra.mxu0 %v834
        %1018 = vmatpush.bf16.msra.mxu0 %v832
        %1019 = vmatmul.bf16.gmra.mxu0 %v631
        %v1020 = vpop.f32.mrf.mxu0
        %v1021 = vadd.f32 0.0, %v1020
        %v1022 = vpop.f32.mrf.mxu0
        %1023 = vdwg.mxu0
        %1024 = vmatpush.bf16.msra.mxu0 %v862
        %1025 = vmatpush.bf16.msra.mxu0 %v860
        %1026 = vmatpush.bf16.msra.mxu0 %v858
        %1027 = vmatpush.bf16.msra.mxu0 %v856
        %1028 = vmatpush.bf16.msra.mxu0 %v854
        %1029 = vmatpush.bf16.msra.mxu0 %v852
        %1030 = vmatpush.bf16.msra.mxu0 %v850
        %1031 = vmatpush.bf16.msra.mxu0 %v848
        %1032 = vmatmul.bf16.gmra.mxu0 %v632
        %v1033 = vpop.f32.mrf.mxu0
        %v1034 = vadd.f32 %v1021, %v1033
        %v1035 = vpop.f32.mrf.mxu0
        %1036 = vdwg.mxu0
        %1037 = vmatpush.bf16.msra.mxu0 %v878
        %1038 = vmatpush.bf16.msra.mxu0 %v876
        %1039 = vmatpush.bf16.msra.mxu0 %v874
        %1040 = vmatpush.bf16.msra.mxu0 %v872
        %1041 = vmatpush.bf16.msra.mxu0 %v870
        %1042 = vmatpush.bf16.msra.mxu0 %v868
        %1043 = vmatpush.bf16.msra.mxu0 %v866
        %1044 = vmatpush.bf16.msra.mxu0 %v864
        %1045 = vmatmul.bf16.gmra.mxu0 %v633
        %v1046 = vpop.f32.mrf.mxu0
        %v1047 = vadd.f32 %v1034, %v1046
        %v1048 = vpop.f32.mrf.mxu0
        %1049 = vdwg.mxu0
        %1050 = vmatpush.bf16.msra.mxu0 %v894
        %1051 = vmatpush.bf16.msra.mxu0 %v892
        %1052 = vmatpush.bf16.msra.mxu0 %v890
        %1053 = vmatpush.bf16.msra.mxu0 %v888
        %1054 = vmatpush.bf16.msra.mxu0 %v886
        %1055 = vmatpush.bf16.msra.mxu0 %v884
        %1056 = vmatpush.bf16.msra.mxu0 %v882
        %1057 = vmatpush.bf16.msra.mxu0 %v880
        %1058 = vmatmul.bf16.gmra.mxu0 %v634
        %v1059 = vpop.f32.mrf.mxu0
        %v1060 = vadd.f32 %v1047, %v1059
        %v1061 = vpop.f32.mrf.mxu0
        %1062 = vdwg.mxu0
        %v1063 = vadd.f32 %v557, %v1008
        %v1064 = vadd.f32 %v558, %v1060
        %1065 = vst [vmem:[#allocation2] sm:$0xff] %v1063
        %1066 = vst [vmem:[#allocation2 + $0x8] sm:$0xff] %v1064
        %p1067 = scmp.eq.s32.totalorder %s21, 1
        // Predicated region
        $region75: #{cvae_forward.9} parent=65 // pred_check
          %p1068 = pneg %p1067
        $region76: #{cvae_forward.9} parent=65 // pred_check_branch
          %1070 = sbr.rel (%p1068) target = $region78
        $region77: #{cvae_forward.9} parent=65 // pred_region
          %v1071 = vld [vmem:[#allocation2] sm:$0xff]
          %v1072 = vld [vmem:[#allocation2 + $0x8] sm:$0xff]
          %v1073 = vld [vmem:[%s539] sm:$0x3]
          %v1075 = vperm.slane %v1073, 0
          %v1076 = vperm.slane %v1073, 1
          %v1079 = vadd.f32 %v1071, %v1075
          %v1080 = vadd.f32 %v1072, %v1076
          %1081 = vst [vmem:[%s549] sm:$0xff] %v1079
          %1082 = vst [vmem:[%s549 + $0x8] sm:$0xff] %v1080
        $region78: #{cvae_forward.9} parent=65 // pred_fallthru
          _
        %s1083 = smul.u32 2, %s20
        %p1084 = scmp.lt.s32.totalorder %s19, 0
        %s1085 = scalar_select %p1084, %s19, 0
        %p1086 = scmp.lt.s32.totalorder %s1083, 15
        %s1087 = scalar_select %p1086, %s1083, 15
        %s1088 = smul.addr %s1085, 16
        %s1089 = sadd.s32 %s1087, %s1088
        %s1090 = smul.addr %s1089, 8
        %s1091 = scalar_lea.vmem %s3, %s1090
        // Predicated region
        $region79: #{cvae_forward.9} parent=65 // pred_check
          %p1092 = pneg %p135
        $region80: #{cvae_forward.9} parent=65 // pred_check_branch
          %1094 = sbr.rel (%p1092) target = $region82
        $region81: #{cvae_forward.9} parent=65 // pred_region
          %s1095 = smul.u32 2, %s20
        $region82: #{cvae_forward.9} parent=65 // pred_fallthru
          _
      $region66: #{cvae_forward.9} parent=5 // pred_fallthru
        _
      %p1096 = scmp.le.s32.totalorder 2, %s9
      // Predicated region
      $region83: #{cvae_forward.9} parent=5 // pred_check
        %p1097 = pneg %p1096
      $region84: #{cvae_forward.9} parent=5 // pred_check_branch
        %1099 = sbr.rel (%p1097) target = $region86
      $region85: #{cvae_forward.9} parent=5 // pred_region
        %s1100 = ssub.s32 %s9, 2
        // Predicated region
        $region87: #{cvae_forward.9} parent=85 // pred_check
          %p1101 = pneg %p141
        $region88: #{cvae_forward.9} parent=85 // pred_check_branch
          %1103 = sbr.rel (%p1101) target = $region90
        $region89: #{cvae_forward.9} parent=85 // pred_region
          %s1104 = smul.u32 2, %s23
          %p1105 = scmp.lt.s32.totalorder %s22, 0
          %s1106 = scalar_select %p1105, %s22, 0
          %p1107 = scmp.lt.s32.totalorder %s1104, 15
          %s1108 = scalar_select %p1107, %s1104, 15
          %s1109 = smul.addr %s1106, 16
          %s1110 = sadd.s32 %s1108, %s1109
          %s1111 = smul.addr %s1110, 8
          %s1112 = scalar_lea.vmem %s3, %s1111
        $region90: #{cvae_forward.9} parent=85 // pred_fallthru
          _
      $region86: #{cvae_forward.9} parent=5 // pred_fallthru
        _
    $region6: #{cvae_forward.9} parent=1 // loop_footer
      %s13 = sadd.s32 1, %s9
    $region7: #{cvae_forward.9} parent=1 // loop_footer_branch
      %8 = sbr.rel target = $region3
    $region8: #{cvae_forward.9} parent=1 // loop_exit
      _

// kernel: cvae_forward.10
$region0: #{cvae_forward.10}
  #allocation0 [shape = 'u32[]', space=smem, size = 0x4, offset = 0x4, fixed_abs, tag = 'smem constant byte address 0x4 - core index']
  #allocation1 [shape = 'u32[72,128]{1,0:T(1,128)}', space=vmem, size = 0x9000, scoped, tag = 'internal scratch']
  #allocation2 [shape = 'f32[56,256]{1,0:T(8,128)}', space=vmem, size = 0xe000, scoped, tag = 'scratch operand']
  %s0 = inlined_call_operand.vmem [shape: bf16[56,512], index: 0, kind: input, shape index: {}]
  %s1 = inlined_call_operand.vmem [shape: bf16[512,256], index: 1, kind: input, shape index: {}]
  %s2 = inlined_call_operand.vmem [shape: f32[1,256], index: 2, kind: input, shape index: {}]
  %s3 = inlined_call_operand.vmem [shape: f32[56,256], index: 3, kind: output, shape index: {}]
  %s4 = sld [smem:[#allocation0]]
  $region30: #{cvae_forward.10} parent=0
    _
  %s6 = ssub.s32 1, %s4
  %s7 = scalar_select 0, %s6, %s4
  // Predicated region
  $region2: #{cvae_forward.10} parent=0 // pred_check
    _
  $region3: #{cvae_forward.10} parent=0 // pred_check_branch
    %9 = sbr.rel (0) target = $region5
  $region4: #{cvae_forward.10} parent=0 // pred_region
    _
  $region5: #{cvae_forward.10} parent=0 // pred_fallthru
    _
  // Predicated region
  $region6: #{cvae_forward.10} parent=0 // pred_check
    _
  $region7: #{cvae_forward.10} parent=0 // pred_check_branch
    %11 = sbr.rel (0) target = $region9
  $region8: #{cvae_forward.10} parent=0 // pred_region
    _
  $region9: #{cvae_forward.10} parent=0 // pred_fallthru
    _
  // Predicated region
  $region10: #{cvae_forward.10} parent=0 // pred_check
    _
  $region11: #{cvae_forward.10} parent=0 // pred_check_branch
    %13 = sbr.rel (0) target = $region13
  $region12: #{cvae_forward.10} parent=0 // pred_region
    _
  $region13: #{cvae_forward.10} parent=0 // pred_fallthru
    _
  %p14 = scmp.eq.s32.totalorder 0, 0
  // Predicated region
  $region14: #{cvae_forward.10} parent=0 // pred_check
    %p15 = pneg %p14
  $region15: #{cvae_forward.10} parent=0 // pred_check_branch
    %17 = sbr.rel (%p15) target = $region17
  $region16: #{cvae_forward.10} parent=0 // pred_region
    %18 = vst [vmem:[#allocation2] sm:$0xff] 0.0
    %19 = vst [vmem:[#allocation2 + $0x8] sm:$0xff] 0.0
    %20 = vst [vmem:[#allocation2 + $0x10] sm:$0xff] 0.0
    %21 = vst [vmem:[#allocation2 + $0x18] sm:$0xff] 0.0
    %22 = vst [vmem:[#allocation2 + $0x20] sm:$0xff] 0.0
    %23 = vst [vmem:[#allocation2 + $0x28] sm:$0xff] 0.0
    %24 = vst [vmem:[#allocation2 + $0x30] sm:$0xff] 0.0
    %25 = vst [vmem:[#allocation2 + $0x38] sm:$0xff] 0.0
    %26 = vst [vmem:[#allocation2 + $0x40] sm:$0xff] 0.0
    %27 = vst [vmem:[#allocation2 + $0x48] sm:$0xff] 0.0
    %28 = vst [vmem:[#allocation2 + $0x50] sm:$0xff] 0.0
    %29 = vst [vmem:[#allocation2 + $0x58] sm:$0xff] 0.0
    %30 = vst [vmem:[#allocation2 + $0x60] sm:$0xff] 0.0
    %31 = vst [vmem:[#allocation2 + $0x68] sm:$0xff] 0.0
  $region17: #{cvae_forward.10} parent=0 // pred_fallthru
    _
  %v32 = vld [vmem:[#allocation2] sm:$0xff]
  %v33 = vld [vmem:[#allocation2 + $0x8] sm:$0xff]
  %v34 = vld [vmem:[#allocation2 + $0x10] sm:$0xff]
  %v35 = vld [vmem:[#allocation2 + $0x18] sm:$0xff]
  %v36 = vld [vmem:[#allocation2 + $0x20] sm:$0xff]
  %v37 = vld [vmem:[#allocation2 + $0x28] sm:$0xff]
  %v38 = vld [vmem:[#allocation2 + $0x30] sm:$0xff]
  %v39 = vld [vmem:[#allocation2 + $0x38] sm:$0xff]
  %v40 = vld [vmem:[#allocation2 + $0x40] sm:$0xff]
  %v41 = vld [vmem:[#allocation2 + $0x48] sm:$0xff]
  %v42 = vld [vmem:[#allocation2 + $0x50] sm:$0xff]
  %v43 = vld [vmem:[#allocation2 + $0x58] sm:$0xff]
  %v44 = vld [vmem:[#allocation2 + $0x60] sm:$0xff]
  %v45 = vld [vmem:[#allocation2 + $0x68] sm:$0xff]
  %v46 = vld [vmem:[%s0] sm:$0xff]
  %v47 = vld [vmem:[%s0 + $0x8] sm:$0xff]
  %v48 = vld [vmem:[%s0 + $0x10] sm:$0xff]
  %v49 = vld [vmem:[%s0 + $0x18] sm:$0xff]
  %v50 = vld [vmem:[%s0 + $0x20] sm:$0xff]
  %v51 = vld [vmem:[%s0 + $0x28] sm:$0xff]
  %v52 = vld [vmem:[%s0 + $0x30] sm:$0xff]
  %v53 = vld [vmem:[%s0 + $0x38] sm:$0xff]
  %v54 = vld [vmem:[%s0 + $0x40] sm:$0xff]
  %v55 = vld [vmem:[%s0 + $0x48] sm:$0xff]
  %v56 = vld [vmem:[%s0 + $0x50] sm:$0xff]
  %v57 = vld [vmem:[%s0 + $0x58] sm:$0xff]
  %v58 = vld [vmem:[%s0 + $0x60] sm:$0xff]
  %v59 = vld [vmem:[%s0 + $0x68] sm:$0xff]
  %v60 = vld [vmem:[%s1] sm:$0xff]
  %v61 = vld [vmem:[%s1 + $0x8] sm:$0xff]
  %v62 = vld [vmem:[%s1 + $0x10] sm:$0xff]
  %v63 = vld [vmem:[%s1 + $0x18] sm:$0xff]
  %v64 = vld [vmem:[%s1 + $0x20] sm:$0xff]
  %v65 = vld [vmem:[%s1 + $0x28] sm:$0xff]
  %v66 = vld [vmem:[%s1 + $0x30] sm:$0xff]
  %v67 = vld [vmem:[%s1 + $0x38] sm:$0xff]
  %v68 = vld [vmem:[%s1 + $0x40] sm:$0xff]
  %v69 = vld [vmem:[%s1 + $0x48] sm:$0xff]
  %v70 = vld [vmem:[%s1 + $0x50] sm:$0xff]
  %v71 = vld [vmem:[%s1 + $0x58] sm:$0xff]
  %v72 = vld [vmem:[%s1 + $0x60] sm:$0xff]
  %v73 = vld [vmem:[%s1 + $0x68] sm:$0xff]
  %v74 = vld [vmem:[%s1 + $0x70] sm:$0xff]
  %v75 = vld [vmem:[%s1 + $0x78] sm:$0xff]
  %v76 = vld [vmem:[%s1 + $0x80] sm:$0xff]
  %v77 = vld [vmem:[%s1 + $0x88] sm:$0xff]
  %v78 = vld [vmem:[%s1 + $0x90] sm:$0xff]
  %v79 = vld [vmem:[%s1 + $0x98] sm:$0xff]
  %v80 = vld [vmem:[%s1 + $0xa0] sm:$0xff]
  %v81 = vld [vmem:[%s1 + $0xa8] sm:$0xff]
  %v82 = vld [vmem:[%s1 + $0xb0] sm:$0xff]
  %v83 = vld [vmem:[%s1 + $0xb8] sm:$0xff]
  %v84 = vld [vmem:[%s1 + $0xc0] sm:$0xff]
  %v85 = vld [vmem:[%s1 + $0xc8] sm:$0xff]
  %v86 = vld [vmem:[%s1 + $0xd0] sm:$0xff]
  %v87 = vld [vmem:[%s1 + $0xd8] sm:$0xff]
  %v88 = vld [vmem:[%s1 + $0xe0] sm:$0xff]
  %v89 = vld [vmem:[%s1 + $0xe8] sm:$0xff]
  %v90 = vld [vmem:[%s1 + $0xf0] sm:$0xff]
  %v91 = vld [vmem:[%s1 + $0xf8] sm:$0xff]
  %v92 = vld [vmem:[%s1 + $0x100] sm:$0xff]
  %v93 = vld [vmem:[%s1 + $0x108] sm:$0xff]
  %v94 = vld [vmem:[%s1 + $0x110] sm:$0xff]
  %v95 = vld [vmem:[%s1 + $0x118] sm:$0xff]
  %v96 = vld [vmem:[%s1 + $0x120] sm:$0xff]
  %v97 = vld [vmem:[%s1 + $0x128] sm:$0xff]
  %v98 = vld [vmem:[%s1 + $0x130] sm:$0xff]
  %v99 = vld [vmem:[%s1 + $0x138] sm:$0xff]
  %v100 = vld [vmem:[%s1 + $0x140] sm:$0xff]
  %v101 = vld [vmem:[%s1 + $0x148] sm:$0xff]
  %v102 = vld [vmem:[%s1 + $0x150] sm:$0xff]
  %v103 = vld [vmem:[%s1 + $0x158] sm:$0xff]
  %v104 = vld [vmem:[%s1 + $0x160] sm:$0xff]
  %v105 = vld [vmem:[%s1 + $0x168] sm:$0xff]
  %v106 = vld [vmem:[%s1 + $0x170] sm:$0xff]
  %v107 = vld [vmem:[%s1 + $0x178] sm:$0xff]
  %v108 = vld [vmem:[%s1 + $0x180] sm:$0xff]
  %v109 = vld [vmem:[%s1 + $0x188] sm:$0xff]
  %v110 = vld [vmem:[%s1 + $0x190] sm:$0xff]
  %v111 = vld [vmem:[%s1 + $0x198] sm:$0xff]
  %v112 = vld [vmem:[%s1 + $0x1a0] sm:$0xff]
  %v113 = vld [vmem:[%s1 + $0x1a8] sm:$0xff]
  %v114 = vld [vmem:[%s1 + $0x1b0] sm:$0xff]
  %v115 = vld [vmem:[%s1 + $0x1b8] sm:$0xff]
  %v116 = vld [vmem:[%s1 + $0x1c0] sm:$0xff]
  %v117 = vld [vmem:[%s1 + $0x1c8] sm:$0xff]
  %v118 = vld [vmem:[%s1 + $0x1d0] sm:$0xff]
  %v119 = vld [vmem:[%s1 + $0x1d8] sm:$0xff]
  %v120 = vld [vmem:[%s1 + $0x1e0] sm:$0xff]
  %v121 = vld [vmem:[%s1 + $0x1e8] sm:$0xff]
  %v122 = vld [vmem:[%s1 + $0x1f0] sm:$0xff]
  %v123 = vld [vmem:[%s1 + $0x1f8] sm:$0xff]
  %v138 = vunpack.c.l.b16 %v46
  %v139 = vunpack.c.h.b16 %v46
  %v140 = vunpack.c.l.b16 %v47
  %v141 = vunpack.c.h.b16 %v47
  %v142 = vunpack.c.l.b16 %v48
  %v143 = vunpack.c.h.b16 %v48
  %v144 = vunpack.c.l.b16 %v49
  %v145 = vunpack.c.h.b16 %v49
  %v146 = vunpack.c.l.b16 %v50
  %v147 = vunpack.c.h.b16 %v50
  %v148 = vunpack.c.l.b16 %v51
  %v149 = vunpack.c.h.b16 %v51
  %v150 = vunpack.c.l.b16 %v52
  %v151 = vunpack.c.h.b16 %v52
  %v152 = vunpack.c.l.b16 %v53
  %v153 = vunpack.c.h.b16 %v53
  %v154 = vunpack.c.l.b16 %v54
  %v155 = vunpack.c.h.b16 %v54
  %v156 = vunpack.c.l.b16 %v55
  %v157 = vunpack.c.h.b16 %v55
  %v158 = vunpack.c.l.b16 %v56
  %v159 = vunpack.c.h.b16 %v56
  %v160 = vunpack.c.l.b16 %v57
  %v161 = vunpack.c.h.b16 %v57
  %v162 = vunpack.c.l.b16 %v58
  %v163 = vunpack.c.h.b16 %v58
  %v164 = vunpack.c.l.b16 %v59
  %v165 = vunpack.c.h.b16 %v59
  %v166 = vpack.c.b16 %v142, %v138
  %v167 = vpack.c.b16 %v143, %v139
  %v168 = vpack.c.b16 %v144, %v140
  %v169 = vpack.c.b16 %v145, %v141
  %v170 = vpack.c.b16 %v150, %v146
  %v171 = vpack.c.b16 %v151, %v147
  %v172 = vpack.c.b16 %v152, %v148
  %v173 = vpack.c.b16 %v153, %v149
  %v174 = vpack.c.b16 %v158, %v154
  %v175 = vpack.c.b16 %v159, %v155
  %v176 = vpack.c.b16 %v160, %v156
  %v177 = vpack.c.b16 %v161, %v157
  %v178 = vpack.c.b16 %v162, %v162
  %v179 = vpack.c.b16 %v163, %v163
  %v180 = vpack.c.b16 %v164, %v164
  %v181 = vpack.c.b16 %v165, %v165
  %v262 = vunpack.c.l.b16 %v60
  %v263 = vunpack.c.h.b16 %v60
  %v264 = vunpack.c.l.b16 %v61
  %v265 = vunpack.c.h.b16 %v61
  %v266 = vunpack.c.l.b16 %v62
  %v267 = vunpack.c.h.b16 %v62
  %v268 = vunpack.c.l.b16 %v63
  %v269 = vunpack.c.h.b16 %v63
  %v270 = vunpack.c.l.b16 %v64
  %v271 = vunpack.c.h.b16 %v64
  %v272 = vunpack.c.l.b16 %v65
  %v273 = vunpack.c.h.b16 %v65
  %v274 = vunpack.c.l.b16 %v66
  %v275 = vunpack.c.h.b16 %v66
  %v276 = vunpack.c.l.b16 %v67
  %v277 = vunpack.c.h.b16 %v67
  %v278 = vunpack.c.l.b16 %v68
  %v279 = vunpack.c.h.b16 %v68
  %v280 = vunpack.c.l.b16 %v69
  %v281 = vunpack.c.h.b16 %v69
  %v282 = vunpack.c.l.b16 %v70
  %v283 = vunpack.c.h.b16 %v70
  %v284 = vunpack.c.l.b16 %v71
  %v285 = vunpack.c.h.b16 %v71
  %v286 = vunpack.c.l.b16 %v72
  %v287 = vunpack.c.h.b16 %v72
  %v288 = vunpack.c.l.b16 %v73
  %v289 = vunpack.c.h.b16 %v73
  %v290 = vunpack.c.l.b16 %v74
  %v291 = vunpack.c.h.b16 %v74
  %v292 = vunpack.c.l.b16 %v75
  %v293 = vunpack.c.h.b16 %v75
  %v294 = vunpack.c.l.b16 %v76
  %v295 = vunpack.c.h.b16 %v76
  %v296 = vunpack.c.l.b16 %v77
  %v297 = vunpack.c.h.b16 %v77
  %v298 = vunpack.c.l.b16 %v78
  %v299 = vunpack.c.h.b16 %v78
  %v300 = vunpack.c.l.b16 %v79
  %v301 = vunpack.c.h.b16 %v79
  %v302 = vunpack.c.l.b16 %v80
  %v303 = vunpack.c.h.b16 %v80
  %v304 = vunpack.c.l.b16 %v81
  %v305 = vunpack.c.h.b16 %v81
  %v306 = vunpack.c.l.b16 %v82
  %v307 = vunpack.c.h.b16 %v82
  %v308 = vunpack.c.l.b16 %v83
  %v309 = vunpack.c.h.b16 %v83
  %v310 = vunpack.c.l.b16 %v84
  %v311 = vunpack.c.h.b16 %v84
  %v312 = vunpack.c.l.b16 %v85
  %v313 = vunpack.c.h.b16 %v85
  %v314 = vunpack.c.l.b16 %v86
  %v315 = vunpack.c.h.b16 %v86
  %v316 = vunpack.c.l.b16 %v87
  %v317 = vunpack.c.h.b16 %v87
  %v318 = vunpack.c.l.b16 %v88
  %v319 = vunpack.c.h.b16 %v88
  %v320 = vunpack.c.l.b16 %v89
  %v321 = vunpack.c.h.b16 %v89
  %v322 = vunpack.c.l.b16 %v90
  %v323 = vunpack.c.h.b16 %v90
  %v324 = vunpack.c.l.b16 %v91
  %v325 = vunpack.c.h.b16 %v91
  %v326 = vunpack.c.l.b16 %v92
  %v327 = vunpack.c.h.b16 %v92
  %v328 = vunpack.c.l.b16 %v93
  %v329 = vunpack.c.h.b16 %v93
  %v330 = vunpack.c.l.b16 %v94
  %v331 = vunpack.c.h.b16 %v94
  %v332 = vunpack.c.l.b16 %v95
  %v333 = vunpack.c.h.b16 %v95
  %v334 = vunpack.c.l.b16 %v96
  %v335 = vunpack.c.h.b16 %v96
  %v336 = vunpack.c.l.b16 %v97
  %v337 = vunpack.c.h.b16 %v97
  %v338 = vunpack.c.l.b16 %v98
  %v339 = vunpack.c.h.b16 %v98
  %v340 = vunpack.c.l.b16 %v99
  %v341 = vunpack.c.h.b16 %v99
  %v342 = vunpack.c.l.b16 %v100
  %v343 = vunpack.c.h.b16 %v100
  %v344 = vunpack.c.l.b16 %v101
  %v345 = vunpack.c.h.b16 %v101
  %v346 = vunpack.c.l.b16 %v102
  %v347 = vunpack.c.h.b16 %v102
  %v348 = vunpack.c.l.b16 %v103
  %v349 = vunpack.c.h.b16 %v103
  %v350 = vunpack.c.l.b16 %v104
  %v351 = vunpack.c.h.b16 %v104
  %v352 = vunpack.c.l.b16 %v105
  %v353 = vunpack.c.h.b16 %v105
  %v354 = vunpack.c.l.b16 %v106
  %v355 = vunpack.c.h.b16 %v106
  %v356 = vunpack.c.l.b16 %v107
  %v357 = vunpack.c.h.b16 %v107
  %v358 = vunpack.c.l.b16 %v108
  %v359 = vunpack.c.h.b16 %v108
  %v360 = vunpack.c.l.b16 %v109
  %v361 = vunpack.c.h.b16 %v109
  %v362 = vunpack.c.l.b16 %v110
  %v363 = vunpack.c.h.b16 %v110
  %v364 = vunpack.c.l.b16 %v111
  %v365 = vunpack.c.h.b16 %v111
  %v366 = vunpack.c.l.b16 %v112
  %v367 = vunpack.c.h.b16 %v112
  %v368 = vunpack.c.l.b16 %v113
  %v369 = vunpack.c.h.b16 %v113
  %v370 = vunpack.c.l.b16 %v114
  %v371 = vunpack.c.h.b16 %v114
  %v372 = vunpack.c.l.b16 %v115
  %v373 = vunpack.c.h.b16 %v115
  %v374 = vunpack.c.l.b16 %v116
  %v375 = vunpack.c.h.b16 %v116
  %v376 = vunpack.c.l.b16 %v117
  %v377 = vunpack.c.h.b16 %v117
  %v378 = vunpack.c.l.b16 %v118
  %v379 = vunpack.c.h.b16 %v118
  %v380 = vunpack.c.l.b16 %v119
  %v381 = vunpack.c.h.b16 %v119
  %v382 = vunpack.c.l.b16 %v120
  %v383 = vunpack.c.h.b16 %v120
  %v384 = vunpack.c.l.b16 %v121
  %v385 = vunpack.c.h.b16 %v121
  %v386 = vunpack.c.l.b16 %v122
  %v387 = vunpack.c.h.b16 %v122
  %v388 = vunpack.c.l.b16 %v123
  %v389 = vunpack.c.h.b16 %v123
  %v390 = vpack.c.b16 %v264, %v262
  %v391 = vpack.c.b16 %v265, %v263
  %v392 = vpack.c.b16 %v268, %v266
  %v393 = vpack.c.b16 %v269, %v267
  %v394 = vpack.c.b16 %v272, %v270
  %v395 = vpack.c.b16 %v273, %v271
  %v396 = vpack.c.b16 %v276, %v274
  %v397 = vpack.c.b16 %v277, %v275
  %v398 = vpack.c.b16 %v280, %v278
  %v399 = vpack.c.b16 %v281, %v279
  %v400 = vpack.c.b16 %v284, %v282
  %v401 = vpack.c.b16 %v285, %v283
  %v402 = vpack.c.b16 %v288, %v286
  %v403 = vpack.c.b16 %v289, %v287
  %v404 = vpack.c.b16 %v292, %v290
  %v405 = vpack.c.b16 %v293, %v291
  %v406 = vpack.c.b16 %v296, %v294
  %v407 = vpack.c.b16 %v297, %v295
  %v408 = vpack.c.b16 %v300, %v298
  %v409 = vpack.c.b16 %v301, %v299
  %v410 = vpack.c.b16 %v304, %v302
  %v411 = vpack.c.b16 %v305, %v303
  %v412 = vpack.c.b16 %v308, %v306
  %v413 = vpack.c.b16 %v309, %v307
  %v414 = vpack.c.b16 %v312, %v310
  %v415 = vpack.c.b16 %v313, %v311
  %v416 = vpack.c.b16 %v316, %v314
  %v417 = vpack.c.b16 %v317, %v315
  %v418 = vpack.c.b16 %v320, %v318
  %v419 = vpack.c.b16 %v321, %v319
  %v420 = vpack.c.b16 %v324, %v322
  %v421 = vpack.c.b16 %v325, %v323
  %v422 = vpack.c.b16 %v328, %v326
  %v423 = vpack.c.b16 %v329, %v327
  %v424 = vpack.c.b16 %v332, %v330
  %v425 = vpack.c.b16 %v333, %v331
  %v426 = vpack.c.b16 %v336, %v334
  %v427 = vpack.c.b16 %v337, %v335
  %v428 = vpack.c.b16 %v340, %v338
  %v429 = vpack.c.b16 %v341, %v339
  %v430 = vpack.c.b16 %v344, %v342
  %v431 = vpack.c.b16 %v345, %v343
  %v432 = vpack.c.b16 %v348, %v346
  %v433 = vpack.c.b16 %v349, %v347
  %v434 = vpack.c.b16 %v352, %v350
  %v435 = vpack.c.b16 %v353, %v351
  %v436 = vpack.c.b16 %v356, %v354
  %v437 = vpack.c.b16 %v357, %v355
  %v438 = vpack.c.b16 %v360, %v358
  %v439 = vpack.c.b16 %v361, %v359
  %v440 = vpack.c.b16 %v364, %v362
  %v441 = vpack.c.b16 %v365, %v363
  %v442 = vpack.c.b16 %v368, %v366
  %v443 = vpack.c.b16 %v369, %v367
  %v444 = vpack.c.b16 %v372, %v370
  %v445 = vpack.c.b16 %v373, %v371
  %v446 = vpack.c.b16 %v376, %v374
  %v447 = vpack.c.b16 %v377, %v375
  %v448 = vpack.c.b16 %v380, %v378
  %v449 = vpack.c.b16 %v381, %v379
  %v450 = vpack.c.b16 %v384, %v382
  %v451 = vpack.c.b16 %v385, %v383
  %v452 = vpack.c.b16 %v388, %v386
  %v453 = vpack.c.b16 %v389, %v387
  %518 = vmatpush.bf16.msra.mxu0 %v404
  %519 = vmatpush.bf16.msra.mxu0 %v402
  %520 = vmatpush.bf16.msra.mxu0 %v400
  %521 = vmatpush.bf16.msra.mxu0 %v398
  %522 = vmatpush.bf16.msra.mxu0 %v396
  %523 = vmatpush.bf16.msra.mxu0 %v394
  %524 = vmatpush.bf16.msra.mxu0 %v392
  %525 = vmatpush.bf16.msra.mxu0 %v390
  %526 = vmatmul.bf16.gmra.mxu0 %v166
  %v527 = vpop.f32.mrf.mxu0
  %v528 = vadd.f32 0.0, %v527
  %v529 = vpop.f32.mrf.mxu0
  %v530 = vadd.f32 0.0, %v529
  %531 = vmatmul.bf16.gmra.mxu0 %v170
  %v532 = vpop.f32.mrf.mxu0
  %v533 = vadd.f32 0.0, %v532
  %v534 = vpop.f32.mrf.mxu0
  %v535 = vadd.f32 0.0, %v534
  %536 = vmatmul.bf16.gmra.mxu0 %v174
  %v537 = vpop.f32.mrf.mxu0
  %v538 = vadd.f32 0.0, %v537
  %v539 = vpop.f32.mrf.mxu0
  %v540 = vadd.f32 0.0, %v539
  %541 = vmatmul.bf16.gmra.mxu0 %v178
  %v542 = vpop.f32.mrf.mxu0
  %v543 = vadd.f32 0.0, %v542
  %v544 = vpop.f32.mrf.mxu0
  %545 = vdwg.mxu0
  %546 = vmatpush.bf16.msra.mxu0 %v420
  %547 = vmatpush.bf16.msra.mxu0 %v418
  %548 = vmatpush.bf16.msra.mxu0 %v416
  %549 = vmatpush.bf16.msra.mxu0 %v414
  %550 = vmatpush.bf16.msra.mxu0 %v412
  %551 = vmatpush.bf16.msra.mxu0 %v410
  %552 = vmatpush.bf16.msra.mxu0 %v408
  %553 = vmatpush.bf16.msra.mxu0 %v406
  %554 = vmatmul.bf16.gmra.mxu0 %v167
  %v555 = vpop.f32.mrf.mxu0
  %v556 = vadd.f32 %v528, %v555
  %v557 = vpop.f32.mrf.mxu0
  %v558 = vadd.f32 %v530, %v557
  %559 = vmatmul.bf16.gmra.mxu0 %v171
  %v560 = vpop.f32.mrf.mxu0
  %v561 = vadd.f32 %v533, %v560
  %v562 = vpop.f32.mrf.mxu0
  %v563 = vadd.f32 %v535, %v562
  %564 = vmatmul.bf16.gmra.mxu0 %v175
  %v565 = vpop.f32.mrf.mxu0
  %v566 = vadd.f32 %v538, %v565
  %v567 = vpop.f32.mrf.mxu0
  %v568 = vadd.f32 %v540, %v567
  %569 = vmatmul.bf16.gmra.mxu0 %v179
  %v570 = vpop.f32.mrf.mxu0
  %v571 = vadd.f32 %v543, %v570
  %v572 = vpop.f32.mrf.mxu0
  %573 = vdwg.mxu0
  %574 = vmatpush.bf16.msra.mxu0 %v436
  %575 = vmatpush.bf16.msra.mxu0 %v434
  %576 = vmatpush.bf16.msra.mxu0 %v432
  %577 = vmatpush.bf16.msra.mxu0 %v430
  %578 = vmatpush.bf16.msra.mxu0 %v428
  %579 = vmatpush.bf16.msra.mxu0 %v426
  %580 = vmatpush.bf16.msra.mxu0 %v424
  %581 = vmatpush.bf16.msra.mxu0 %v422
  %582 = vmatmul.bf16.gmra.mxu0 %v168
  %v583 = vpop.f32.mrf.mxu0
  %v584 = vadd.f32 %v556, %v583
  %v585 = vpop.f32.mrf.mxu0
  %v586 = vadd.f32 %v558, %v585
  %587 = vmatmul.bf16.gmra.mxu0 %v172
  %v588 = vpop.f32.mrf.mxu0
  %v589 = vadd.f32 %v561, %v588
  %v590 = vpop.f32.mrf.mxu0
  %v591 = vadd.f32 %v563, %v590
  %592 = vmatmul.bf16.gmra.mxu0 %v176
  %v593 = vpop.f32.mrf.mxu0
  %v594 = vadd.f32 %v566, %v593
  %v595 = vpop.f32.mrf.mxu0
  %v596 = vadd.f32 %v568, %v595
  %597 = vmatmul.bf16.gmra.mxu0 %v180
  %v598 = vpop.f32.mrf.mxu0
  %v599 = vadd.f32 %v571, %v598
  %v600 = vpop.f32.mrf.mxu0
  %601 = vdwg.mxu0
  %602 = vmatpush.bf16.msra.mxu0 %v452
  %603 = vmatpush.bf16.msra.mxu0 %v450
  %604 = vmatpush.bf16.msra.mxu0 %v448
  %605 = vmatpush.bf16.msra.mxu0 %v446
  %606 = vmatpush.bf16.msra.mxu0 %v444
  %607 = vmatpush.bf16.msra.mxu0 %v442
  %608 = vmatpush.bf16.msra.mxu0 %v440
  %609 = vmatpush.bf16.msra.mxu0 %v438
  %610 = vmatmul.bf16.gmra.mxu0 %v169
  %v611 = vpop.f32.mrf.mxu0
  %v612 = vadd.f32 %v584, %v611
  %v613 = vpop.f32.mrf.mxu0
  %v614 = vadd.f32 %v586, %v613
  %615 = vmatmul.bf16.gmra.mxu0 %v173
  %v616 = vpop.f32.mrf.mxu0
  %v617 = vadd.f32 %v589, %v616
  %v618 = vpop.f32.mrf.mxu0
  %v619 = vadd.f32 %v591, %v618
  %620 = vmatmul.bf16.gmra.mxu0 %v177
  %v621 = vpop.f32.mrf.mxu0
  %v622 = vadd.f32 %v594, %v621
  %v623 = vpop.f32.mrf.mxu0
  %v624 = vadd.f32 %v596, %v623
  %625 = vmatmul.bf16.gmra.mxu0 %v181
  %v626 = vpop.f32.mrf.mxu0
  %v627 = vadd.f32 %v599, %v626
  %v628 = vpop.f32.mrf.mxu0
  %629 = vdwg.mxu0
  %630 = vmatpush.bf16.msra.mxu0 %v405
  %631 = vmatpush.bf16.msra.mxu0 %v403
  %632 = vmatpush.bf16.msra.mxu0 %v401
  %633 = vmatpush.bf16.msra.mxu0 %v399
  %634 = vmatpush.bf16.msra.mxu0 %v397
  %635 = vmatpush.bf16.msra.mxu0 %v395
  %636 = vmatpush.bf16.msra.mxu0 %v393
  %637 = vmatpush.bf16.msra.mxu0 %v391
  %638 = vmatmul.bf16.gmra.mxu0 %v166
  %v639 = vpop.f32.mrf.mxu0
  %v640 = vadd.f32 0.0, %v639
  %v641 = vpop.f32.mrf.mxu0
  %v642 = vadd.f32 0.0, %v641
  %643 = vmatmul.bf16.gmra.mxu0 %v170
  %v644 = vpop.f32.mrf.mxu0
  %v645 = vadd.f32 0.0, %v644
  %v646 = vpop.f32.mrf.mxu0
  %v647 = vadd.f32 0.0, %v646
  %648 = vmatmul.bf16.gmra.mxu0 %v174
  %v649 = vpop.f32.mrf.mxu0
  %v650 = vadd.f32 0.0, %v649
  %v651 = vpop.f32.mrf.mxu0
  %v652 = vadd.f32 0.0, %v651
  %653 = vmatmul.bf16.gmra.mxu0 %v178
  %v654 = vpop.f32.mrf.mxu0
  %v655 = vadd.f32 0.0, %v654
  %v656 = vpop.f32.mrf.mxu0
  %657 = vdwg.mxu0
  %658 = vmatpush.bf16.msra.mxu0 %v421
  %659 = vmatpush.bf16.msra.mxu0 %v419
  %660 = vmatpush.bf16.msra.mxu0 %v417
  %661 = vmatpush.bf16.msra.mxu0 %v415
  %662 = vmatpush.bf16.msra.mxu0 %v413
  %663 = vmatpush.bf16.msra.mxu0 %v411
  %664 = vmatpush.bf16.msra.mxu0 %v409
  %665 = vmatpush.bf16.msra.mxu0 %v407
  %666 = vmatmul.bf16.gmra.mxu0 %v167
  %v667 = vpop.f32.mrf.mxu0
  %v668 = vadd.f32 %v640, %v667
  %v669 = vpop.f32.mrf.mxu0
  %v670 = vadd.f32 %v642, %v669
  %671 = vmatmul.bf16.gmra.mxu0 %v171
  %v672 = vpop.f32.mrf.mxu0
  %v673 = vadd.f32 %v645, %v672
  %v674 = vpop.f32.mrf.mxu0
  %v675 = vadd.f32 %v647, %v674
  %676 = vmatmul.bf16.gmra.mxu0 %v175
  %v677 = vpop.f32.mrf.mxu0
  %v678 = vadd.f32 %v650, %v677
  %v679 = vpop.f32.mrf.mxu0
  %v680 = vadd.f32 %v652, %v679
  %681 = vmatmul.bf16.gmra.mxu0 %v179
  %v682 = vpop.f32.mrf.mxu0
  %v683 = vadd.f32 %v655, %v682
  %v684 = vpop.f32.mrf.mxu0
  %685 = vdwg.mxu0
  %686 = vmatpush.bf16.msra.mxu0 %v437
  %687 = vmatpush.bf16.msra.mxu0 %v435
  %688 = vmatpush.bf16.msra.mxu0 %v433
  %689 = vmatpush.bf16.msra.mxu0 %v431
  %690 = vmatpush.bf16.msra.mxu0 %v429
  %691 = vmatpush.bf16.msra.mxu0 %v427
  %692 = vmatpush.bf16.msra.mxu0 %v425
  %693 = vmatpush.bf16.msra.mxu0 %v423
  %694 = vmatmul.bf16.gmra.mxu0 %v168
  %v695 = vpop.f32.mrf.mxu0
  %v696 = vadd.f32 %v668, %v695
  %v697 = vpop.f32.mrf.mxu0
  %v698 = vadd.f32 %v670, %v697
  %699 = vmatmul.bf16.gmra.mxu0 %v172
  %v700 = vpop.f32.mrf.mxu0
  %v701 = vadd.f32 %v673, %v700
  %v702 = vpop.f32.mrf.mxu0
  %v703 = vadd.f32 %v675, %v702
  %704 = vmatmul.bf16.gmra.mxu0 %v176
  %v705 = vpop.f32.mrf.mxu0
  %v706 = vadd.f32 %v678, %v705
  %v707 = vpop.f32.mrf.mxu0
  %v708 = vadd.f32 %v680, %v707
  %709 = vmatmul.bf16.gmra.mxu0 %v180
  %v710 = vpop.f32.mrf.mxu0
  %v711 = vadd.f32 %v683, %v710
  %v712 = vpop.f32.mrf.mxu0
  %713 = vdwg.mxu0
  %714 = vmatpush.bf16.msra.mxu0 %v453
  %715 = vmatpush.bf16.msra.mxu0 %v451
  %716 = vmatpush.bf16.msra.mxu0 %v449
  %717 = vmatpush.bf16.msra.mxu0 %v447
  %718 = vmatpush.bf16.msra.mxu0 %v445
  %719 = vmatpush.bf16.msra.mxu0 %v443
  %720 = vmatpush.bf16.msra.mxu0 %v441
  %721 = vmatpush.bf16.msra.mxu0 %v439
  %722 = vmatmul.bf16.gmra.mxu0 %v169
  %v723 = vpop.f32.mrf.mxu0
  %v724 = vadd.f32 %v696, %v723
  %v725 = vpop.f32.mrf.mxu0
  %v726 = vadd.f32 %v698, %v725
  %727 = vmatmul.bf16.gmra.mxu0 %v173
  %v728 = vpop.f32.mrf.mxu0
  %v729 = vadd.f32 %v701, %v728
  %v730 = vpop.f32.mrf.mxu0
  %v731 = vadd.f32 %v703, %v730
  %732 = vmatmul.bf16.gmra.mxu0 %v177
  %v733 = vpop.f32.mrf.mxu0
  %v734 = vadd.f32 %v706, %v733
  %v735 = vpop.f32.mrf.mxu0
  %v736 = vadd.f32 %v708, %v735
  %737 = vmatmul.bf16.gmra.mxu0 %v181
  %v738 = vpop.f32.mrf.mxu0
  %v739 = vadd.f32 %v711, %v738
  %v740 = vpop.f32.mrf.mxu0
  %741 = vdwg.mxu0
  %v742 = vadd.f32 %v32, %v612
  %v743 = vadd.f32 %v33, %v724
  %v744 = vadd.f32 %v34, %v614
  %v745 = vadd.f32 %v35, %v726
  %v746 = vadd.f32 %v36, %v617
  %v747 = vadd.f32 %v37, %v729
  %v748 = vadd.f32 %v38, %v619
  %v749 = vadd.f32 %v39, %v731
  %v750 = vadd.f32 %v40, %v622
  %v751 = vadd.f32 %v41, %v734
  %v752 = vadd.f32 %v42, %v624
  %v753 = vadd.f32 %v43, %v736
  %v754 = vadd.f32 %v44, %v627
  %v755 = vadd.f32 %v45, %v739
  %756 = vst [vmem:[#allocation2] sm:$0xff] %v742
  %757 = vst [vmem:[#allocation2 + $0x8] sm:$0xff] %v743
  %758 = vst [vmem:[#allocation2 + $0x10] sm:$0xff] %v744
  %759 = vst [vmem:[#allocation2 + $0x18] sm:$0xff] %v745
  %760 = vst [vmem:[#allocation2 + $0x20] sm:$0xff] %v746
  %761 = vst [vmem:[#allocation2 + $0x28] sm:$0xff] %v747
  %762 = vst [vmem:[#allocation2 + $0x30] sm:$0xff] %v748
  %763 = vst [vmem:[#allocation2 + $0x38] sm:$0xff] %v749
  %764 = vst [vmem:[#allocation2 + $0x40] sm:$0xff] %v750
  %765 = vst [vmem:[#allocation2 + $0x48] sm:$0xff] %v751
  %766 = vst [vmem:[#allocation2 + $0x50] sm:$0xff] %v752
  %767 = vst [vmem:[#allocation2 + $0x58] sm:$0xff] %v753
  %768 = vst [vmem:[#allocation2 + $0x60] sm:$0xff] %v754
  %769 = vst [vmem:[#allocation2 + $0x68] sm:$0xff] %v755
  // Predicated region
  $region18: #{cvae_forward.10} parent=0 // pred_check
    %p770 = pneg %p14
  $region19: #{cvae_forward.10} parent=0 // pred_check_branch
    %772 = sbr.rel (%p770) target = $region21
  $region20: #{cvae_forward.10} parent=0 // pred_region
    %v773 = vld [vmem:[#allocation2] sm:$0xff]
    %v774 = vld [vmem:[#allocation2 + $0x8] sm:$0xff]
    %v775 = vld [vmem:[#allocation2 + $0x10] sm:$0xff]
    %v776 = vld [vmem:[#allocation2 + $0x18] sm:$0xff]
    %v777 = vld [vmem:[#allocation2 + $0x20] sm:$0xff]
    %v778 = vld [vmem:[#allocation2 + $0x28] sm:$0xff]
    %v779 = vld [vmem:[#allocation2 + $0x30] sm:$0xff]
    %v780 = vld [vmem:[#allocation2 + $0x38] sm:$0xff]
    %v781 = vld [vmem:[#allocation2 + $0x40] sm:$0xff]
    %v782 = vld [vmem:[#allocation2 + $0x48] sm:$0xff]
    %v783 = vld [vmem:[#allocation2 + $0x50] sm:$0xff]
    %v784 = vld [vmem:[#allocation2 + $0x58] sm:$0xff]
    %v785 = vld [vmem:[#allocation2 + $0x60] sm:$0xff]
    %v786 = vld [vmem:[#allocation2 + $0x68] sm:$0xff]
    %v787 = vld [vmem:[%s2] sm:$0x3]
    %v789 = vperm.slane %v787, 0
    %v790 = vperm.slane %v787, 1
    %v793 = vadd.f32 %v773, %v789
    %v794 = vadd.f32 %v774, %v790
    %v795 = vadd.f32 %v775, %v789
    %v796 = vadd.f32 %v776, %v790
    %v797 = vadd.f32 %v777, %v789
    %v798 = vadd.f32 %v778, %v790
    %v799 = vadd.f32 %v779, %v789
    %v800 = vadd.f32 %v780, %v790
    %v801 = vadd.f32 %v781, %v789
    %v802 = vadd.f32 %v782, %v790
    %v803 = vadd.f32 %v783, %v789
    %v804 = vadd.f32 %v784, %v790
    %v805 = vadd.f32 %v785, %v789
    %v806 = vadd.f32 %v786, %v790
    %v807 = vmax.f32 %v793, 0.0
    %v808 = vmax.f32 %v794, 0.0
    %v809 = vmax.f32 %v795, 0.0
    %v810 = vmax.f32 %v796, 0.0
    %v811 = vmax.f32 %v797, 0.0
    %v812 = vmax.f32 %v798, 0.0
    %v813 = vmax.f32 %v799, 0.0
    %v814 = vmax.f32 %v800, 0.0
    %v815 = vmax.f32 %v801, 0.0
    %v816 = vmax.f32 %v802, 0.0
    %v817 = vmax.f32 %v803, 0.0
    %v818 = vmax.f32 %v804, 0.0
    %v819 = vmax.f32 %v805, 0.0
    %v820 = vmax.f32 %v806, 0.0
    %821 = vst [vmem:[%s3] sm:$0xff] %v807
    %822 = vst [vmem:[%s3 + $0x8] sm:$0xff] %v808
    %823 = vst [vmem:[%s3 + $0x10] sm:$0xff] %v809
    %824 = vst [vmem:[%s3 + $0x18] sm:$0xff] %v810
    %825 = vst [vmem:[%s3 + $0x20] sm:$0xff] %v811
    %826 = vst [vmem:[%s3 + $0x28] sm:$0xff] %v812
    %827 = vst [vmem:[%s3 + $0x30] sm:$0xff] %v813
    %828 = vst [vmem:[%s3 + $0x38] sm:$0xff] %v814
    %829 = vst [vmem:[%s3 + $0x40] sm:$0xff] %v815
    %830 = vst [vmem:[%s3 + $0x48] sm:$0xff] %v816
    %831 = vst [vmem:[%s3 + $0x50] sm:$0xff] %v817
    %832 = vst [vmem:[%s3 + $0x58] sm:$0xff] %v818
    %833 = vst [vmem:[%s3 + $0x60] sm:$0xff] %v819
    %834 = vst [vmem:[%s3 + $0x68] sm:$0xff] %v820
  $region21: #{cvae_forward.10} parent=0 // pred_fallthru
    _
  // Predicated region
  $region22: #{cvae_forward.10} parent=0 // pred_check
    _
  $region23: #{cvae_forward.10} parent=0 // pred_check_branch
    %836 = sbr.rel (0) target = $region25
  $region24: #{cvae_forward.10} parent=0 // pred_region
    _
  $region25: #{cvae_forward.10} parent=0 // pred_fallthru
    _
  // Predicated region
  $region26: #{cvae_forward.10} parent=0 // pred_check
    _
  $region27: #{cvae_forward.10} parent=0 // pred_check_branch
    %838 = sbr.rel (0) target = $region29
  $region28: #{cvae_forward.10} parent=0 // pred_region
    _
  $region29: #{cvae_forward.10} parent=0 // pred_fallthru
    _

// kernel: cvae_forward.11
$region0: #{cvae_forward.11}
  #allocation0 [shape = 'u32[]', space=smem, size = 0x4, offset = 0x4, fixed_abs, tag = 'smem constant byte address 0x4 - core index']
  #allocation1 [shape = 'u32[72,128]{1,0:T(1,128)}', space=vmem, size = 0x9000, scoped, tag = 'internal scratch']
  #allocation2 [shape = 'f32[168,128]{1,0:T(8,128)}', space=vmem, size = 0x15000, scoped, tag = 'scratch operand']
  %s0 = inlined_call_operand.vmem [shape: bf16[168,256], index: 0, kind: input, shape index: {}]
  %s1 = inlined_call_operand.vmem [shape: bf16[256,128], index: 1, kind: input, shape index: {}]
  %s2 = inlined_call_operand.vmem [shape: f32[1,128], index: 2, kind: input, shape index: {}]
  %s3 = inlined_call_operand.vmem [shape: f32[168,128], index: 3, kind: output, shape index: {}]
  %s4 = sld [smem:[#allocation0]]
  $region30: #{cvae_forward.11} parent=0
    _
  %s6 = ssub.s32 1, %s4
  %s7 = scalar_select 0, %s6, %s4
  // Predicated region
  $region2: #{cvae_forward.11} parent=0 // pred_check
    _
  $region3: #{cvae_forward.11} parent=0 // pred_check_branch
    %9 = sbr.rel (0) target = $region5
  $region4: #{cvae_forward.11} parent=0 // pred_region
    _
  $region5: #{cvae_forward.11} parent=0 // pred_fallthru
    _
  // Predicated region
  $region6: #{cvae_forward.11} parent=0 // pred_check
    _
  $region7: #{cvae_forward.11} parent=0 // pred_check_branch
    %11 = sbr.rel (0) target = $region9
  $region8: #{cvae_forward.11} parent=0 // pred_region
    _
  $region9: #{cvae_forward.11} parent=0 // pred_fallthru
    _
  // Predicated region
  $region10: #{cvae_forward.11} parent=0 // pred_check
    _
  $region11: #{cvae_forward.11} parent=0 // pred_check_branch
    %13 = sbr.rel (0) target = $region13
  $region12: #{cvae_forward.11} parent=0 // pred_region
    _
  $region13: #{cvae_forward.11} parent=0 // pred_fallthru
    _
  %p14 = scmp.eq.s32.totalorder 0, 0
  // Predicated region
  $region14: #{cvae_forward.11} parent=0 // pred_check
    %p15 = pneg %p14
  $region15: #{cvae_forward.11} parent=0 // pred_check_branch
    %17 = sbr.rel (%p15) target = $region17
  $region16: #{cvae_forward.11} parent=0 // pred_region
    %18 = vst [vmem:[#allocation2] sm:$0xff] 0.0
    %19 = vst [vmem:[#allocation2 + $0x8] sm:$0xff] 0.0
    %20 = vst [vmem:[#allocation2 + $0x10] sm:$0xff] 0.0
    %21 = vst [vmem:[#allocation2 + $0x18] sm:$0xff] 0.0
    %22 = vst [vmem:[#allocation2 + $0x20] sm:$0xff] 0.0
    %23 = vst [vmem:[#allocation2 + $0x28] sm:$0xff] 0.0
    %24 = vst [vmem:[#allocation2 + $0x30] sm:$0xff] 0.0
    %25 = vst [vmem:[#allocation2 + $0x38] sm:$0xff] 0.0
    %26 = vst [vmem:[#allocation2 + $0x40] sm:$0xff] 0.0
    %27 = vst [vmem:[#allocation2 + $0x48] sm:$0xff] 0.0
    %28 = vst [vmem:[#allocation2 + $0x50] sm:$0xff] 0.0
    %29 = vst [vmem:[#allocation2 + $0x58] sm:$0xff] 0.0
    %30 = vst [vmem:[#allocation2 + $0x60] sm:$0xff] 0.0
    %31 = vst [vmem:[#allocation2 + $0x68] sm:$0xff] 0.0
    %32 = vst [vmem:[#allocation2 + $0x70] sm:$0xff] 0.0
    %33 = vst [vmem:[#allocation2 + $0x78] sm:$0xff] 0.0
    %34 = vst [vmem:[#allocation2 + $0x80] sm:$0xff] 0.0
    %35 = vst [vmem:[#allocation2 + $0x88] sm:$0xff] 0.0
    %36 = vst [vmem:[#allocation2 + $0x90] sm:$0xff] 0.0
    %37 = vst [vmem:[#allocation2 + $0x98] sm:$0xff] 0.0
    %38 = vst [vmem:[#allocation2 + $0xa0] sm:$0xff] 0.0
  $region17: #{cvae_forward.11} parent=0 // pred_fallthru
    _
  %v39 = vld [vmem:[#allocation2] sm:$0xff]
  %v40 = vld [vmem:[#allocation2 + $0x8] sm:$0xff]
  %v41 = vld [vmem:[#allocation2 + $0x10] sm:$0xff]
  %v42 = vld [vmem:[#allocation2 + $0x18] sm:$0xff]
  %v43 = vld [vmem:[#allocation2 + $0x20] sm:$0xff]
  %v44 = vld [vmem:[#allocation2 + $0x28] sm:$0xff]
  %v45 = vld [vmem:[#allocation2 + $0x30] sm:$0xff]
  %v46 = vld [vmem:[#allocation2 + $0x38] sm:$0xff]
  %v47 = vld [vmem:[#allocation2 + $0x40] sm:$0xff]
  %v48 = vld [vmem:[#allocation2 + $0x48] sm:$0xff]
  %v49 = vld [vmem:[#allocation2 + $0x50] sm:$0xff]
  %v50 = vld [vmem:[#allocation2 + $0x58] sm:$0xff]
  %v51 = vld [vmem:[#allocation2 + $0x60] sm:$0xff]
  %v52 = vld [vmem:[#allocation2 + $0x68] sm:$0xff]
  %v53 = vld [vmem:[#allocation2 + $0x70] sm:$0xff]
  %v54 = vld [vmem:[#allocation2 + $0x78] sm:$0xff]
  %v55 = vld [vmem:[#allocation2 + $0x80] sm:$0xff]
  %v56 = vld [vmem:[#allocation2 + $0x88] sm:$0xff]
  %v57 = vld [vmem:[#allocation2 + $0x90] sm:$0xff]
  %v58 = vld [vmem:[#allocation2 + $0x98] sm:$0xff]
  %v59 = vld [vmem:[#allocation2 + $0xa0] sm:$0xff]
  %v60 = vld [vmem:[%s0] sm:$0xff]
  %v61 = vld [vmem:[%s0 + $0x8] sm:$0xff]
  %v62 = vld [vmem:[%s0 + $0x10] sm:$0xff]
  %v63 = vld [vmem:[%s0 + $0x18] sm:$0xff]
  %v64 = vld [vmem:[%s0 + $0x20] sm:$0xff]
  %v65 = vld [vmem:[%s0 + $0x28] sm:$0xff]
  %v66 = vld [vmem:[%s0 + $0x30] sm:$0xff]
  %v67 = vld [vmem:[%s0 + $0x38] sm:$0xff]
  %v68 = vld [vmem:[%s0 + $0x40] sm:$0xff]
  %v69 = vld [vmem:[%s0 + $0x48] sm:$0xff]
  %v70 = vld [vmem:[%s0 + $0x50] sm:$0xff]
  %v71 = vld [vmem:[%s0 + $0x58] sm:$0xff]
  %v72 = vld [vmem:[%s0 + $0x60] sm:$0xff]
  %v73 = vld [vmem:[%s0 + $0x68] sm:$0xff]
  %v74 = vld [vmem:[%s0 + $0x70] sm:$0xff]
  %v75 = vld [vmem:[%s0 + $0x78] sm:$0xff]
  %v76 = vld [vmem:[%s0 + $0x80] sm:$0xff]
  %v77 = vld [vmem:[%s0 + $0x88] sm:$0xff]
  %v78 = vld [vmem:[%s0 + $0x90] sm:$0xff]
  %v79 = vld [vmem:[%s0 + $0x98] sm:$0xff]
  %v80 = vld [vmem:[%s0 + $0xa0] sm:$0xff]
  %v81 = vld [vmem:[%s1] sm:$0xf]
  %v82 = vld [vmem:[%s1 + $0x4] sm:$0xf]
  %v83 = vld [vmem:[%s1 + $0x8] sm:$0xf]
  %v84 = vld [vmem:[%s1 + $0xc] sm:$0xf]
  %v85 = vld [vmem:[%s1 + $0x10] sm:$0xf]
  %v86 = vld [vmem:[%s1 + $0x14] sm:$0xf]
  %v87 = vld [vmem:[%s1 + $0x18] sm:$0xf]
  %v88 = vld [vmem:[%s1 + $0x1c] sm:$0xf]
  %v89 = vld [vmem:[%s1 + $0x20] sm:$0xf]
  %v90 = vld [vmem:[%s1 + $0x24] sm:$0xf]
  %v91 = vld [vmem:[%s1 + $0x28] sm:$0xf]
  %v92 = vld [vmem:[%s1 + $0x2c] sm:$0xf]
  %v93 = vld [vmem:[%s1 + $0x30] sm:$0xf]
  %v94 = vld [vmem:[%s1 + $0x34] sm:$0xf]
  %v95 = vld [vmem:[%s1 + $0x38] sm:$0xf]
  %v96 = vld [vmem:[%s1 + $0x3c] sm:$0xf]
  %v97 = vld [vmem:[%s1 + $0x40] sm:$0xf]
  %v98 = vld [vmem:[%s1 + $0x44] sm:$0xf]
  %v99 = vld [vmem:[%s1 + $0x48] sm:$0xf]
  %v100 = vld [vmem:[%s1 + $0x4c] sm:$0xf]
  %v101 = vld [vmem:[%s1 + $0x50] sm:$0xf]
  %v102 = vld [vmem:[%s1 + $0x54] sm:$0xf]
  %v103 = vld [vmem:[%s1 + $0x58] sm:$0xf]
  %v104 = vld [vmem:[%s1 + $0x5c] sm:$0xf]
  %v105 = vld [vmem:[%s1 + $0x60] sm:$0xf]
  %v106 = vld [vmem:[%s1 + $0x64] sm:$0xf]
  %v107 = vld [vmem:[%s1 + $0x68] sm:$0xf]
  %v108 = vld [vmem:[%s1 + $0x6c] sm:$0xf]
  %v109 = vld [vmem:[%s1 + $0x70] sm:$0xf]
  %v110 = vld [vmem:[%s1 + $0x74] sm:$0xf]
  %v111 = vld [vmem:[%s1 + $0x78] sm:$0xf]
  %v112 = vld [vmem:[%s1 + $0x7c] sm:$0xf]
  %v134 = vunpack.c.l.b16 %v60
  %v135 = vunpack.c.h.b16 %v60
  %v136 = vunpack.c.l.b16 %v61
  %v137 = vunpack.c.h.b16 %v61
  %v138 = vunpack.c.l.b16 %v62
  %v139 = vunpack.c.h.b16 %v62
  %v140 = vunpack.c.l.b16 %v63
  %v141 = vunpack.c.h.b16 %v63
  %v142 = vunpack.c.l.b16 %v64
  %v143 = vunpack.c.h.b16 %v64
  %v144 = vunpack.c.l.b16 %v65
  %v145 = vunpack.c.h.b16 %v65
  %v146 = vunpack.c.l.b16 %v66
  %v147 = vunpack.c.h.b16 %v66
  %v148 = vunpack.c.l.b16 %v67
  %v149 = vunpack.c.h.b16 %v67
  %v150 = vunpack.c.l.b16 %v68
  %v151 = vunpack.c.h.b16 %v68
  %v152 = vunpack.c.l.b16 %v69
  %v153 = vunpack.c.h.b16 %v69
  %v154 = vunpack.c.l.b16 %v70
  %v155 = vunpack.c.h.b16 %v70
  %v156 = vunpack.c.l.b16 %v71
  %v157 = vunpack.c.h.b16 %v71
  %v158 = vunpack.c.l.b16 %v72
  %v159 = vunpack.c.h.b16 %v72
  %v160 = vunpack.c.l.b16 %v73
  %v161 = vunpack.c.h.b16 %v73
  %v162 = vunpack.c.l.b16 %v74
  %v163 = vunpack.c.h.b16 %v74
  %v164 = vunpack.c.l.b16 %v75
  %v165 = vunpack.c.h.b16 %v75
  %v166 = vunpack.c.l.b16 %v76
  %v167 = vunpack.c.h.b16 %v76
  %v168 = vunpack.c.l.b16 %v77
  %v169 = vunpack.c.h.b16 %v77
  %v170 = vunpack.c.l.b16 %v78
  %v171 = vunpack.c.h.b16 %v78
  %v172 = vunpack.c.l.b16 %v79
  %v173 = vunpack.c.h.b16 %v79
  %v174 = vunpack.c.l.b16 %v80
  %v175 = vunpack.c.h.b16 %v80
  %v176 = vpack.c.b16 %v136, %v134
  %v177 = vpack.c.b16 %v137, %v135
  %v178 = vpack.c.b16 %v140, %v138
  %v179 = vpack.c.b16 %v141, %v139
  %v180 = vpack.c.b16 %v144, %v142
  %v181 = vpack.c.b16 %v145, %v143
  %v182 = vpack.c.b16 %v148, %v146
  %v183 = vpack.c.b16 %v149, %v147
  %v184 = vpack.c.b16 %v152, %v150
  %v185 = vpack.c.b16 %v153, %v151
  %v186 = vpack.c.b16 %v156, %v154
  %v187 = vpack.c.b16 %v157, %v155
  %v188 = vpack.c.b16 %v160, %v158
  %v189 = vpack.c.b16 %v161, %v159
  %v190 = vpack.c.b16 %v164, %v162
  %v191 = vpack.c.b16 %v165, %v163
  %v192 = vpack.c.b16 %v168, %v166
  %v193 = vpack.c.b16 %v169, %v167
  %v194 = vpack.c.b16 %v172, %v170
  %v195 = vpack.c.b16 %v173, %v171
  %v196 = vpack.c.b16 %v174, %v174
  %v197 = vpack.c.b16 %v175, %v175
  %v252 = vunpack.c.l.b16 %v81
  %v253 = vunpack.c.l.b16 %v82
  %v254 = vunpack.c.l.b16 %v83
  %v255 = vunpack.c.l.b16 %v84
  %v256 = vunpack.c.l.b16 %v85
  %v257 = vunpack.c.l.b16 %v86
  %v258 = vunpack.c.l.b16 %v87
  %v259 = vunpack.c.l.b16 %v88
  %v260 = vunpack.c.l.b16 %v89
  %v261 = vunpack.c.l.b16 %v90
  %v262 = vunpack.c.l.b16 %v91
  %v263 = vunpack.c.l.b16 %v92
  %v264 = vunpack.c.l.b16 %v93
  %v265 = vunpack.c.l.b16 %v94
  %v266 = vunpack.c.l.b16 %v95
  %v267 = vunpack.c.l.b16 %v96
  %v268 = vunpack.c.l.b16 %v97
  %v269 = vunpack.c.l.b16 %v98
  %v270 = vunpack.c.l.b16 %v99
  %v271 = vunpack.c.l.b16 %v100
  %v272 = vunpack.c.l.b16 %v101
  %v273 = vunpack.c.l.b16 %v102
  %v274 = vunpack.c.l.b16 %v103
  %v275 = vunpack.c.l.b16 %v104
  %v276 = vunpack.c.l.b16 %v105
  %v277 = vunpack.c.l.b16 %v106
  %v278 = vunpack.c.l.b16 %v107
  %v279 = vunpack.c.l.b16 %v108
  %v280 = vunpack.c.l.b16 %v109
  %v281 = vunpack.c.l.b16 %v110
  %v282 = vunpack.c.l.b16 %v111
  %v283 = vunpack.c.l.b16 %v112
  %v284 = vpack.c.b16 %v253, %v252
  %v285 = vpack.c.b16 %v255, %v254
  %v286 = vpack.c.b16 %v257, %v256
  %v287 = vpack.c.b16 %v259, %v258
  %v288 = vpack.c.b16 %v261, %v260
  %v289 = vpack.c.b16 %v263, %v262
  %v290 = vpack.c.b16 %v265, %v264
  %v291 = vpack.c.b16 %v267, %v266
  %v292 = vpack.c.b16 %v269, %v268
  %v293 = vpack.c.b16 %v271, %v270
  %v294 = vpack.c.b16 %v273, %v272
  %v295 = vpack.c.b16 %v275, %v274
  %v296 = vpack.c.b16 %v277, %v276
  %v297 = vpack.c.b16 %v279, %v278
  %v298 = vpack.c.b16 %v281, %v280
  %v299 = vpack.c.b16 %v283, %v282
  %316 = vmatpush.bf16.msra.mxu0 %v291
  %317 = vmatpush.bf16.msra.mxu0 %v290
  %318 = vmatpush.bf16.msra.mxu0 %v289
  %319 = vmatpush.bf16.msra.mxu0 %v288
  %320 = vmatpush.bf16.msra.mxu0 %v287
  %321 = vmatpush.bf16.msra.mxu0 %v286
  %322 = vmatpush.bf16.msra.mxu0 %v285
  %323 = vmatpush.bf16.msra.mxu0 %v284
  %324 = vmatmul.bf16.gmra.mxu0 %v176
  %v325 = vpop.f32.mrf.mxu0
  %v326 = vadd.f32 0.0, %v325
  %v327 = vpop.f32.mrf.mxu0
  %v328 = vadd.f32 0.0, %v327
  %329 = vmatmul.bf16.gmra.mxu0 %v178
  %v330 = vpop.f32.mrf.mxu0
  %v331 = vadd.f32 0.0, %v330
  %v332 = vpop.f32.mrf.mxu0
  %v333 = vadd.f32 0.0, %v332
  %334 = vmatmul.bf16.gmra.mxu0 %v180
  %v335 = vpop.f32.mrf.mxu0
  %v336 = vadd.f32 0.0, %v335
  %v337 = vpop.f32.mrf.mxu0
  %v338 = vadd.f32 0.0, %v337
  %339 = vmatmul.bf16.gmra.mxu0 %v182
  %v340 = vpop.f32.mrf.mxu0
  %v341 = vadd.f32 0.0, %v340
  %v342 = vpop.f32.mrf.mxu0
  %v343 = vadd.f32 0.0, %v342
  %344 = vmatmul.bf16.gmra.mxu0 %v184
  %v345 = vpop.f32.mrf.mxu0
  %v346 = vadd.f32 0.0, %v345
  %v347 = vpop.f32.mrf.mxu0
  %v348 = vadd.f32 0.0, %v347
  %349 = vmatmul.bf16.gmra.mxu0 %v186
  %v350 = vpop.f32.mrf.mxu0
  %v351 = vadd.f32 0.0, %v350
  %v352 = vpop.f32.mrf.mxu0
  %v353 = vadd.f32 0.0, %v352
  %354 = vmatmul.bf16.gmra.mxu0 %v188
  %v355 = vpop.f32.mrf.mxu0
  %v356 = vadd.f32 0.0, %v355
  %v357 = vpop.f32.mrf.mxu0
  %v358 = vadd.f32 0.0, %v357
  %359 = vmatmul.bf16.gmra.mxu0 %v190
  %v360 = vpop.f32.mrf.mxu0
  %v361 = vadd.f32 0.0, %v360
  %v362 = vpop.f32.mrf.mxu0
  %v363 = vadd.f32 0.0, %v362
  %364 = vmatmul.bf16.gmra.mxu0 %v192
  %v365 = vpop.f32.mrf.mxu0
  %v366 = vadd.f32 0.0, %v365
  %v367 = vpop.f32.mrf.mxu0
  %v368 = vadd.f32 0.0, %v367
  %369 = vmatmul.bf16.gmra.mxu0 %v194
  %v370 = vpop.f32.mrf.mxu0
  %v371 = vadd.f32 0.0, %v370
  %v372 = vpop.f32.mrf.mxu0
  %v373 = vadd.f32 0.0, %v372
  %374 = vmatmul.bf16.gmra.mxu0 %v196
  %v375 = vpop.f32.mrf.mxu0
  %v376 = vadd.f32 0.0, %v375
  %v377 = vpop.f32.mrf.mxu0
  %378 = vdwg.mxu0
  %379 = vmatpush.bf16.msra.mxu0 %v299
  %380 = vmatpush.bf16.msra.mxu0 %v298
  %381 = vmatpush.bf16.msra.mxu0 %v297
  %382 = vmatpush.bf16.msra.mxu0 %v296
  %383 = vmatpush.bf16.msra.mxu0 %v295
  %384 = vmatpush.bf16.msra.mxu0 %v294
  %385 = vmatpush.bf16.msra.mxu0 %v293
  %386 = vmatpush.bf16.msra.mxu0 %v292
  %387 = vmatmul.bf16.gmra.mxu0 %v177
  %v388 = vpop.f32.mrf.mxu0
  %v389 = vadd.f32 %v326, %v388
  %v390 = vpop.f32.mrf.mxu0
  %v391 = vadd.f32 %v328, %v390
  %392 = vmatmul.bf16.gmra.mxu0 %v179
  %v393 = vpop.f32.mrf.mxu0
  %v394 = vadd.f32 %v331, %v393
  %v395 = vpop.f32.mrf.mxu0
  %v396 = vadd.f32 %v333, %v395
  %397 = vmatmul.bf16.gmra.mxu0 %v181
  %v398 = vpop.f32.mrf.mxu0
  %v399 = vadd.f32 %v336, %v398
  %v400 = vpop.f32.mrf.mxu0
  %v401 = vadd.f32 %v338, %v400
  %402 = vmatmul.bf16.gmra.mxu0 %v183
  %v403 = vpop.f32.mrf.mxu0
  %v404 = vadd.f32 %v341, %v403
  %v405 = vpop.f32.mrf.mxu0
  %v406 = vadd.f32 %v343, %v405
  %407 = vmatmul.bf16.gmra.mxu0 %v185
  %v408 = vpop.f32.mrf.mxu0
  %v409 = vadd.f32 %v346, %v408
  %v410 = vpop.f32.mrf.mxu0
  %v411 = vadd.f32 %v348, %v410
  %412 = vmatmul.bf16.gmra.mxu0 %v187
  %v413 = vpop.f32.mrf.mxu0
  %v414 = vadd.f32 %v351, %v413
  %v415 = vpop.f32.mrf.mxu0
  %v416 = vadd.f32 %v353, %v415
  %417 = vmatmul.bf16.gmra.mxu0 %v189
  %v418 = vpop.f32.mrf.mxu0
  %v419 = vadd.f32 %v356, %v418
  %v420 = vpop.f32.mrf.mxu0
  %v421 = vadd.f32 %v358, %v420
  %422 = vmatmul.bf16.gmra.mxu0 %v191
  %v423 = vpop.f32.mrf.mxu0
  %v424 = vadd.f32 %v361, %v423
  %v425 = vpop.f32.mrf.mxu0
  %v426 = vadd.f32 %v363, %v425
  %427 = vmatmul.bf16.gmra.mxu0 %v193
  %v428 = vpop.f32.mrf.mxu0
  %v429 = vadd.f32 %v366, %v428
  %v430 = vpop.f32.mrf.mxu0
  %v431 = vadd.f32 %v368, %v430
  %432 = vmatmul.bf16.gmra.mxu0 %v195
  %v433 = vpop.f32.mrf.mxu0
  %v434 = vadd.f32 %v371, %v433
  %v435 = vpop.f32.mrf.mxu0
  %v436 = vadd.f32 %v373, %v435
  %437 = vmatmul.bf16.gmra.mxu0 %v197
  %v438 = vpop.f32.mrf.mxu0
  %v439 = vadd.f32 %v376, %v438
  %v440 = vpop.f32.mrf.mxu0
  %441 = vdwg.mxu0
  %v442 = vadd.f32 %v39, %v389
  %v443 = vadd.f32 %v40, %v391
  %v444 = vadd.f32 %v41, %v394
  %v445 = vadd.f32 %v42, %v396
  %v446 = vadd.f32 %v43, %v399
  %v447 = vadd.f32 %v44, %v401
  %v448 = vadd.f32 %v45, %v404
  %v449 = vadd.f32 %v46, %v406
  %v450 = vadd.f32 %v47, %v409
  %v451 = vadd.f32 %v48, %v411
  %v452 = vadd.f32 %v49, %v414
  %v453 = vadd.f32 %v50, %v416
  %v454 = vadd.f32 %v51, %v419
  %v455 = vadd.f32 %v52, %v421
  %v456 = vadd.f32 %v53, %v424
  %v457 = vadd.f32 %v54, %v426
  %v458 = vadd.f32 %v55, %v429
  %v459 = vadd.f32 %v56, %v431
  %v460 = vadd.f32 %v57, %v434
  %v461 = vadd.f32 %v58, %v436
  %v462 = vadd.f32 %v59, %v439
  %463 = vst [vmem:[#allocation2] sm:$0xff] %v442
  %464 = vst [vmem:[#allocation2 + $0x8] sm:$0xff] %v443
  %465 = vst [vmem:[#allocation2 + $0x10] sm:$0xff] %v444
  %466 = vst [vmem:[#allocation2 + $0x18] sm:$0xff] %v445
  %467 = vst [vmem:[#allocation2 + $0x20] sm:$0xff] %v446
  %468 = vst [vmem:[#allocation2 + $0x28] sm:$0xff] %v447
  %469 = vst [vmem:[#allocation2 + $0x30] sm:$0xff] %v448
  %470 = vst [vmem:[#allocation2 + $0x38] sm:$0xff] %v449
  %471 = vst [vmem:[#allocation2 + $0x40] sm:$0xff] %v450
  %472 = vst [vmem:[#allocation2 + $0x48] sm:$0xff] %v451
  %473 = vst [vmem:[#allocation2 + $0x50] sm:$0xff] %v452
  %474 = vst [vmem:[#allocation2 + $0x58] sm:$0xff] %v453
  %475 = vst [vmem:[#allocation2 + $0x60] sm:$0xff] %v454
  %476 = vst [vmem:[#allocation2 + $0x68] sm:$0xff] %v455
  %477 = vst [vmem:[#allocation2 + $0x70] sm:$0xff] %v456
  %478 = vst [vmem:[#allocation2 + $0x78] sm:$0xff] %v457
  %479 = vst [vmem:[#allocation2 + $0x80] sm:$0xff] %v458
  %480 = vst [vmem:[#allocation2 + $0x88] sm:$0xff] %v459
  %481 = vst [vmem:[#allocation2 + $0x90] sm:$0xff] %v460
  %482 = vst [vmem:[#allocation2 + $0x98] sm:$0xff] %v461
  %483 = vst [vmem:[#allocation2 + $0xa0] sm:$0xff] %v462
  // Predicated region
  $region18: #{cvae_forward.11} parent=0 // pred_check
    %p484 = pneg %p14
  $region19: #{cvae_forward.11} parent=0 // pred_check_branch
    %486 = sbr.rel (%p484) target = $region21
  $region20: #{cvae_forward.11} parent=0 // pred_region
    %v487 = vld [vmem:[#allocation2] sm:$0xff]
    %v488 = vld [vmem:[#allocation2 + $0x8] sm:$0xff]
    %v489 = vld [vmem:[#allocation2 + $0x10] sm:$0xff]
    %v490 = vld [vmem:[#allocation2 + $0x18] sm:$0xff]
    %v491 = vld [vmem:[#allocation2 + $0x20] sm:$0xff]
    %v492 = vld [vmem:[#allocation2 + $0x28] sm:$0xff]
    %v493 = vld [vmem:[#allocation2 + $0x30] sm:$0xff]
    %v494 = vld [vmem:[#allocation2 + $0x38] sm:$0xff]
    %v495 = vld [vmem:[#allocation2 + $0x40] sm:$0xff]
    %v496 = vld [vmem:[#allocation2 + $0x48] sm:$0xff]
    %v497 = vld [vmem:[#allocation2 + $0x50] sm:$0xff]
    %v498 = vld [vmem:[#allocation2 + $0x58] sm:$0xff]
    %v499 = vld [vmem:[#allocation2 + $0x60] sm:$0xff]
    %v500 = vld [vmem:[#allocation2 + $0x68] sm:$0xff]
    %v501 = vld [vmem:[#allocation2 + $0x70] sm:$0xff]
    %v502 = vld [vmem:[#allocation2 + $0x78] sm:$0xff]
    %v503 = vld [vmem:[#allocation2 + $0x80] sm:$0xff]
    %v504 = vld [vmem:[#allocation2 + $0x88] sm:$0xff]
    %v505 = vld [vmem:[#allocation2 + $0x90] sm:$0xff]
    %v506 = vld [vmem:[#allocation2 + $0x98] sm:$0xff]
    %v507 = vld [vmem:[#allocation2 + $0xa0] sm:$0xff]
    %v508 = vld [vmem:[%s2] sm:$0x1]
    %v510 = vperm.slane %v508, 0
    %v512 = vadd.f32 %v487, %v510
    %v513 = vadd.f32 %v488, %v510
    %v514 = vadd.f32 %v489, %v510
    %v515 = vadd.f32 %v490, %v510
    %v516 = vadd.f32 %v491, %v510
    %v517 = vadd.f32 %v492, %v510
    %v518 = vadd.f32 %v493, %v510
    %v519 = vadd.f32 %v494, %v510
    %v520 = vadd.f32 %v495, %v510
    %v521 = vadd.f32 %v496, %v510
    %v522 = vadd.f32 %v497, %v510
    %v523 = vadd.f32 %v498, %v510
    %v524 = vadd.f32 %v499, %v510
    %v525 = vadd.f32 %v500, %v510
    %v526 = vadd.f32 %v501, %v510
    %v527 = vadd.f32 %v502, %v510
    %v528 = vadd.f32 %v503, %v510
    %v529 = vadd.f32 %v504, %v510
    %v530 = vadd.f32 %v505, %v510
    %v531 = vadd.f32 %v506, %v510
    %v532 = vadd.f32 %v507, %v510
    %533 = vst [vmem:[%s3] sm:$0xff] %v512
    %534 = vst [vmem:[%s3 + $0x8] sm:$0xff] %v513
    %535 = vst [vmem:[%s3 + $0x10] sm:$0xff] %v514
    %536 = vst [vmem:[%s3 + $0x18] sm:$0xff] %v515
    %537 = vst [vmem:[%s3 + $0x20] sm:$0xff] %v516
    %538 = vst [vmem:[%s3 + $0x28] sm:$0xff] %v517
    %539 = vst [vmem:[%s3 + $0x30] sm:$0xff] %v518
    %540 = vst [vmem:[%s3 + $0x38] sm:$0xff] %v519
    %541 = vst [vmem:[%s3 + $0x40] sm:$0xff] %v520
    %542 = vst [vmem:[%s3 + $0x48] sm:$0xff] %v521
    %543 = vst [vmem:[%s3 + $0x50] sm:$0xff] %v522
    %544 = vst [vmem:[%s3 + $0x58] sm:$0xff] %v523
    %545 = vst [vmem:[%s3 + $0x60] sm:$0xff] %v524
    %546 = vst [vmem:[%s3 + $0x68] sm:$0xff] %v525
    %547 = vst [vmem:[%s3 + $0x70] sm:$0xff] %v526
    %548 = vst [vmem:[%s3 + $0x78] sm:$0xff] %v527
    %549 = vst [vmem:[%s3 + $0x80] sm:$0xff] %v528
    %550 = vst [vmem:[%s3 + $0x88] sm:$0xff] %v529
    %551 = vst [vmem:[%s3 + $0x90] sm:$0xff] %v530
    %552 = vst [vmem:[%s3 + $0x98] sm:$0xff] %v531
    %553 = vst [vmem:[%s3 + $0xa0] sm:$0xff] %v532
  $region21: #{cvae_forward.11} parent=0 // pred_fallthru
    _
  // Predicated region
  $region22: #{cvae_forward.11} parent=0 // pred_check
    _
  $region23: #{cvae_forward.11} parent=0 // pred_check_branch
    %555 = sbr.rel (0) target = $region25
  $region24: #{cvae_forward.11} parent=0 // pred_region
    _
  $region25: #{cvae_forward.11} parent=0 // pred_fallthru
    _
  // Predicated region
  $region26: #{cvae_forward.11} parent=0 // pred_check
    _
  $region27: #{cvae_forward.11} parent=0 // pred_check_branch
    %557 = sbr.rel (0) target = $region29
  $region28: #{cvae_forward.11} parent=0 // pred_region
    _
  $region29: #{cvae_forward.11} parent=0 // pred_fallthru
    _

</llo_original>
